<compile_context>
chip_gen: v7x
topology: tpu7x:2x2x1
jax: 0.10.0
libtpu: 0.0.40
codegen_flags: <defaults>
</compile_context>

<pallas_src>
import functools

import jax
import jax.numpy as jnp
from jax import lax
from jax.experimental import pallas as pl
from jax.experimental.pallas import tpu as pltpu

IN_CH = 3
OUT_CH = 9
BASE_CH = 16
NUM_LAYER = 4
NEG_SLOPE = 0.01  # nn.LeakyReLU default


def _leaky_relu(x):
    return jnp.where(x > 0, x, NEG_SLOPE * x)


def _pick_block_n(n, hw):
    """Images per grid step (Bt). Keeps lane-dense blocks and grid >= 2."""
    if hw % 128 != 0:
        return n                       # full-array block satisfies tiling rules
    best = 1
    for bt in range(1, n + 1):
        if n % bt:
            continue
        if bt * hw > 2048:
            break
        if n // bt < 2 and n >= 2:     # keep >= 2 grid steps (v7x megacore)
            continue
        best = bt
    return best


def cnnest_kernel(x_ref, wmask_ref, w_in_ref, b_in_ref, w1_ref, b1_ref,
                  w2_ref, b2_ref, w_out_ref, b_out_ref, o_ref,
                  pad_ref, patch_ref, *, H, W, Bt, OFF):
    HW = H * W
    C = BASE_CH
    cdt = patch_ref.dtype

    # Zero the flat padded staging buffer; only the interior is ever written
    # afterwards, so the border provides the vertical (H) zero padding.
    pad_ref[...] = jnp.zeros_like(pad_ref)

    # Horizontal-tap validity masks (True => keep), shape (1, HW).
    m_w0 = wmask_ref[0:1, :] > 0.5      # dx == 0 tap is invalid at w == 0
    m_w2 = wmask_ref[1:2, :] > 0.5      # dx == 2 tap is invalid at w == W-1

    def conv3x3(v, w_mat, b_col):
        """v: (C, Bt*HW) f32 conv input. Returns (C, Bt*HW) f32, bias added."""
        # Stage the input into the zero-padded flat buffer (one cast per conv).
        for b in range(Bt):
            pad_ref[:, b, pl.ds(OFF, HW)] = (
                v[:, b * HW:(b + 1) * HW].astype(cdt))
        # im2col: 9 shifted windows -> (9*C, Bt*HW) patch matrix in VMEM.
        for tap in range(9):
            dy, dx = tap // 3, tap % 3
            start = OFF + (dy - 1) * W + (dx - 1)
            for b in range(Bt):
                win = pad_ref[:, b, pl.ds(start, HW)]
                if dx == 0:
                    win = jnp.where(m_w0, win, jnp.zeros_like(win))
                elif dx == 2:
                    win = jnp.where(m_w2, win, jnp.zeros_like(win))
                patch_ref[tap * C:(tap + 1) * C, b * HW:(b + 1) * HW] = win
        # Single K=144 MXU matmul, f32 accumulation.
        y = jnp.dot(w_mat, patch_ref[...], preferred_element_type=jnp.float32)
        return y + b_col

    # Head: 1x1 conv == (16, 3) @ (3, M) matmul.
    h = jnp.dot(w_in_ref[...], x_ref[...],
                preferred_element_type=jnp.float32) + b_in_ref[...]
    h = _leaky_relu(h)

    # Residual blocks (bn=False), live ranges bounded by fori_loop.
    def block_body(i, h):
        y = conv3x3(h, w1_ref[i], b1_ref[i])
        y = _leaky_relu(y)
        y = conv3x3(y, w2_ref[i], b2_ref[i])
        return h + y

    h = lax.fori_loop(0, NUM_LAYER, block_body, h)

    # Tail: LeakyReLU -> 1x1 conv (9, 16) @ (16, M).
    h = _leaky_relu(h)
    out = jnp.dot(w_out_ref[...], h.astype(cdt),
                  preferred_element_type=jnp.float32) + b_out_ref[...]
    o_ref[...] = out.astype(o_ref.dtype)


def cnnest_forward(x_nchw, params, compute_dtype=jnp.float32):
    """x_nchw: (N, IN_CH, H, W) float32. Returns (N, OUT_CH, H, W) float32."""
    w_in, b_in, w1, b1, w2, b2, w_out, b_out = params
    N, _, H, W = x_nchw.shape
    HW = H * W

    Bt = _pick_block_n(N, HW)
    M = Bt * HW
    OFF = ((W + 1 + 127) // 128) * 128          # lane-aligned interior offset
    PADL = OFF + HW + W + 2                     # flat padded row length
    cdt = jnp.dtype(compute_dtype)

    # ---- layout plumbing, done once outside the kernel -------------------
    # Channel-major, fully flattened pixels -> lane-dense HBM blocks.
    x_cm = jnp.transpose(x_nchw, (1, 0, 2, 3)).reshape(IN_CH, N * HW)
    x_cm = x_cm.astype(cdt)

    # 1x1 convs as (Cout, Cin) matmuls; 3x3 convs as (Cout, 9*Cin) im2col
    # matmuls with rows ordered (dy, dx, cin) to match the kernel's patch.
    w_in_t = w_in.T.astype(cdt)                                      # (16, 3)
    b_in_c = b_in.reshape(BASE_CH, 1).astype(jnp.float32)            # (16, 1)
    w1_m = jnp.transpose(
        w1.reshape(NUM_LAYER, 9 * BASE_CH, BASE_CH), (0, 2, 1)).astype(cdt)
    b1_c = b1.reshape(NUM_LAYER, BASE_CH, 1).astype(jnp.float32)
    w2_m = jnp.transpose(
        w2.reshape(NUM_LAYER, 9 * BASE_CH, BASE_CH), (0, 2, 1)).astype(cdt)
    b2_c = b2.reshape(NUM_LAYER, BASE_CH, 1).astype(jnp.float32)
    w_out_t = w_out.T.astype(cdt)                                    # (9, 16)
    b_out_c = b_out.reshape(OUT_CH, 1).astype(jnp.float32)           # (9, 1)

    # Horizontal-tap validity masks (row 0: dx=0 taps, row 1: dx=2 taps).
    col = jnp.arange(HW, dtype=jnp.int32) % W
    wmask = jnp.stack([(col != 0), (col != W - 1)]).astype(jnp.float32)

    def _const(shape):
        nd = len(shape)
        return pl.BlockSpec(shape, lambda n, _nd=nd: (0,) * _nd)

    const_ins = (wmask, w_in_t, b_in_c, w1_m, b1_c, w2_m, b2_c,
                 w_out_t, b_out_c)

    flops = 2 * N * HW * (IN_CH * BASE_CH
                          + NUM_LAYER * 2 * 9 * BASE_CH * BASE_CH
                          + BASE_CH * OUT_CH)
    bytes_accessed = int(x_cm.size * x_cm.dtype.itemsize
                         + N * HW * OUT_CH * 4
                         + sum(a.size * a.dtype.itemsize for a in const_ins))
    cost = pl.CostEstimate(flops=int(flops), transcendentals=0,
                           bytes_accessed=bytes_accessed)

    # Per-step VMEM footprint (double-buffered I/O + weights + scratch +
    # live f32 activations) with headroom; stays far below v7x's 64 MiB.
    est = (2 * (IN_CH * M * cdt.itemsize + OUT_CH * M * 4)
           + 2 * sum(a.size * a.dtype.itemsize for a in const_ins)
           + (BASE_CH * Bt * PADL + 9 * BASE_CH * M) * cdt.itemsize
           + 4 * BASE_CH * M * 4)
    vmem_limit = int(min(32 * 2**20, max(8 * 2**20, 4 * est)))

    kernel = functools.partial(cnnest_kernel, H=H, W=W, Bt=Bt, OFF=OFF)

    # NOTE: for large H*W, tile spatially (row blocks with a 1-row halo)
    # instead of keeping whole-image activations resident in VMEM.
    out_cm = pl.pallas_call(
        kernel,
        out_shape=jax.ShapeDtypeStruct((OUT_CH, N * HW), jnp.float32),
        grid_spec=pltpu.PrefetchScalarGridSpec(
            num_scalar_prefetch=0,
            grid=(N // Bt,),
            in_specs=[
                pl.BlockSpec((IN_CH, M), lambda n: (0, n)),
                _const(wmask.shape),
                _const(w_in_t.shape), _const(b_in_c.shape),
                _const(w1_m.shape), _const(b1_c.shape),
                _const(w2_m.shape), _const(b2_c.shape),
                _const(w_out_t.shape), _const(b_out_c.shape),
            ],
            out_specs=pl.BlockSpec((OUT_CH, M), lambda n: (0, n)),
            scratch_shapes=[
                pltpu.VMEM((BASE_CH, Bt, PADL), cdt),   # flat padded staging
                pltpu.VMEM((9 * BASE_CH, M), cdt),      # im2col patch matrix
            ],
        ),
        compiler_params=pltpu.CompilerParams(
            dimension_semantics=("parallel",),
            vmem_limit_bytes=vmem_limit),
        cost_estimate=cost,
    )(x_cm, wmask, w_in_t, b_in_c, w1_m, b1_c, w2_m, b2_c, w_out_t, b_out_c)

    out = out_cm.reshape(OUT_CH, N, H, W)
    return jnp.transpose(out, (1, 0, 2, 3))


def init_params(key):
    ks = jax.random.split(key, 8)
    scale = 0.1
    w_in = scale * jax.random.normal(ks[0], (IN_CH, BASE_CH), jnp.float32)
    b_in = scale * jax.random.normal(ks[1], (1, BASE_CH), jnp.float32)
    w1 = scale * jax.random.normal(
        ks[2], (NUM_LAYER, 3, 3, BASE_CH, BASE_CH), jnp.float32)
    b1 = scale * jax.random.normal(ks[3], (NUM_LAYER, BASE_CH), jnp.float32)
    w2 = scale * jax.random.normal(
        ks[4], (NUM_LAYER, 3, 3, BASE_CH, BASE_CH), jnp.float32)
    b2 = scale * jax.random.normal(ks[5], (NUM_LAYER, BASE_CH), jnp.float32)
    w_out = scale * jax.random.normal(ks[6], (BASE_CH, OUT_CH), jnp.float32)
    b_out = scale * jax.random.normal(ks[7], (1, OUT_CH), jnp.float32)
    return (w_in, b_in, w1, b1, w2, b2, w_out, b_out)


def reference_forward(x_nchw, params):
    """Pure-JAX NHWC reference (mirrors the PyTorch semantics)."""
    w_in, b_in, w1, b1, w2, b2, w_out, b_out = params
    x = jnp.transpose(x_nchw, (0, 2, 3, 1))

    def conv3x3(x, w, b):
        y = lax.conv_general_dilated(
            x, w, window_strides=(1, 1), padding="SAME",
            dimension_numbers=("NHWC", "HWIO", "NHWC"))
        return y + b

    lrelu = lambda v: jnp.where(v > 0, v, NEG_SLOPE * v)

    h = lrelu(jnp.einsum("nhwc,cd->nhwd", x, w_in) + b_in[0])
    for i in range(NUM_LAYER):
        y = conv3x3(h, w1[i], b1[i])
        y = lrelu(y)
        y = conv3x3(y, w2[i], b2[i])
        h = h + y
    h = lrelu(h)
    out = jnp.einsum("nhwc,cd->nhwd", h, w_out) + b_out[0]
    return jnp.transpose(out, (0, 3, 1, 2))


if __name__ == "__main__":
    key = jax.random.PRNGKey(0)
    k_x, k_p = jax.random.split(key)

    N, H, W = 2, 16, 16
    x = jax.random.normal(k_x, (N, IN_CH, H, W), jnp.float32)
    params = init_params(k_p)

    ref = reference_forward(x, params)

    # f32 path: exact module semantics.
    out_f32 = jax.block_until_ready(cnnest_forward(x, params))
    assert out_f32.shape == (N, OUT_CH, H, W)
    assert jnp.allclose(out_f32, ref, rtol=1e-3, atol=1e-3), (
        float(jnp.max(jnp.abs(out_f32 - ref))))

    # bf16 matmul-operand path (f32 accumulation / elementwise).
    out_bf16 = jax.block_until_ready(
        cnnest_forward(x, params, compute_dtype=jnp.bfloat16))
    assert jnp.allclose(out_bf16, ref, rtol=5e-2, atol=5e-2), (
        float(jnp.max(jnp.abs(out_bf16 - ref))))

    print("KERNEL_OK")
</pallas_src>

<mosaic_0001>
module attributes {stable_mosaic.version = 11 : i64} {
  func.func @cnnest_kernel(%arg0: i32, %arg1: memref<3x256xf32, #tpu.memory_space<vmem>>, %arg2: memref<2x256xf32, #tpu.memory_space<vmem>>, %arg3: memref<16x3xf32, #tpu.memory_space<vmem>>, %arg4: memref<16x1xf32, #tpu.memory_space<vmem>>, %arg5: memref<4x16x144xf32, #tpu.memory_space<vmem>>, %arg6: memref<4x16x1xf32, #tpu.memory_space<vmem>>, %arg7: memref<4x16x144xf32, #tpu.memory_space<vmem>>, %arg8: memref<4x16x1xf32, #tpu.memory_space<vmem>>, %arg9: memref<9x16xf32, #tpu.memory_space<vmem>>, %arg10: memref<9x1xf32, #tpu.memory_space<vmem>>, %arg11: memref<9x256xf32, #tpu.memory_space<vmem>>, %arg12: memref<16x1x402xf32, #tpu.memory_space<vmem>>, %arg13: memref<144x256xf32, #tpu.memory_space<vmem>>) attributes {dimension_semantics = [#tpu.dimension_semantics<parallel>], iteration_bounds = array<i64: 2>, scalar_prefetch = 0 : i64, scratch_operands = 2 : i64, tpu.core_type = #tpu.core_type<tc>, window_params = [{transform_indices = @transform_0, window_bounds = array<i64: 3, 256>}, {pipeline_mode = #tpu.pipeline_mode<synchronous>, transform_indices = @transform_1, window_bounds = array<i64: 2, 256>}, {pipeline_mode = #tpu.pipeline_mode<synchronous>, transform_indices = @transform_2, window_bounds = array<i64: 16, 3>}, {pipeline_mode = #tpu.pipeline_mode<synchronous>, transform_indices = @transform_3, window_bounds = array<i64: 16, 1>}, {pipeline_mode = #tpu.pipeline_mode<synchronous>, transform_indices = @transform_4, window_bounds = array<i64: 4, 16, 144>}, {pipeline_mode = #tpu.pipeline_mode<synchronous>, transform_indices = @transform_5, window_bounds = array<i64: 4, 16, 1>}, {pipeline_mode = #tpu.pipeline_mode<synchronous>, transform_indices = @transform_6, window_bounds = array<i64: 4, 16, 144>}, {pipeline_mode = #tpu.pipeline_mode<synchronous>, transform_indices = @transform_7, window_bounds = array<i64: 4, 16, 1>}, {pipeline_mode = #tpu.pipeline_mode<synchronous>, transform_indices = @transform_8, window_bounds = array<i64: 9, 16>}, {pipeline_mode = #tpu.pipeline_mode<synchronous>, transform_indices = @transform_9, window_bounds = array<i64: 9, 1>}, {transform_indices = @transform_10, window_bounds = array<i64: 9, 256>}]} {
    %cst = arith.constant 0.000000e+00 : f32
    %0 = vector.broadcast %cst : f32 to vector<16x1x402xf32>
    %c0 = arith.constant 0 : index
    %c0_0 = arith.constant 0 : index
    %c0_1 = arith.constant 0 : index
    %1 = vector.load %arg12[%c0, %c0_0, %c0_1] : memref<16x1x402xf32, #tpu.memory_space<vmem>>, vector<16x1x402xf32>
    tpu.vector_store %arg12[%c0, %c0_0, %c0_1], %0 {strides = array<i32>} : memref<16x1x402xf32, #tpu.memory_space<vmem>>, vector<16x1x402xf32>,
    %c0_2 = arith.constant 0 : index
    %c0_3 = arith.constant 0 : index
    %2 = vector.load %arg2[%c0_2, %c0_3] : memref<2x256xf32, #tpu.memory_space<vmem>>, vector<1x256xf32>
    %cst_4 = arith.constant 5.000000e-01 : f32
    %3 = vector.broadcast %cst_4 : f32 to vector<1x256xf32>
    %4 = arith.cmpf ogt, %2, %3 : vector<1x256xf32>
    %c1 = arith.constant 1 : index
    %c0_5 = arith.constant 0 : index
    %5 = vector.load %arg2[%c1, %c0_5] : memref<2x256xf32, #tpu.memory_space<vmem>>, vector<1x256xf32>
    %cst_6 = arith.constant 5.000000e-01 : f32
    %6 = vector.broadcast %cst_6 : f32 to vector<1x256xf32>
    %7 = arith.cmpf ogt, %5, %6 : vector<1x256xf32>
    %c0_7 = arith.constant 0 : index
    %c0_8 = arith.constant 0 : index
    %8 = vector.load %arg3[%c0_7, %c0_8] : memref<16x3xf32, #tpu.memory_space<vmem>>, vector<16x3xf32>
    %c0_9 = arith.constant 0 : index
    %c0_10 = arith.constant 0 : index
    %9 = vector.load %arg1[%c0_9, %c0_10] : memref<3x256xf32, #tpu.memory_space<vmem>>, vector<3x256xf32>
    %cst_11 = arith.constant dense<0.000000e+00> : vector<16x256xf32>
    %10 = tpu.matmul %8, %9, %cst_11 {dimension_numbers = #tpu.dot_dimension_numbers<[1], [0], [0], [1], [0, 0, 1, 1], [], []>} : vector<16x3xf32>, vector<3x256xf32>, vector<16x256xf32> -> vector<16x256xf32>
    %c0_12 = arith.constant 0 : index
    %c0_13 = arith.constant 0 : index
    %11 = vector.load %arg4[%c0_12, %c0_13] : memref<16x1xf32, #tpu.memory_space<vmem>>, vector<16x1xf32>
    %12 = vector.broadcast %11 : vector<16x1xf32> to vector<16x256xf32>
    %13 = arith.addf %10, %12 : vector<16x256xf32>
    %cst_14 = arith.constant 0.000000e+00 : f32
    %14 = vector.broadcast %cst_14 : f32 to vector<16x256xf32>
    %15 = arith.cmpf ogt, %13, %14 : vector<16x256xf32>
    %cst_15 = arith.constant 0.00999999977 : f32
    %16 = vector.broadcast %cst_15 : f32 to vector<16x256xf32>
    %17 = arith.mulf %16, %13 : vector<16x256xf32>
    %18 = arith.select %15, %13, %17 : vector<16x256xi1>, vector<16x256xf32>
    %c0_i32 = arith.constant 0 : i32
    %c4_i32 = arith.constant 4 : i32
    %19 = arith.addi %c0_i32, %c4_i32 : i32
    %c1_i32 = arith.constant 1 : i32
    %20 = scf.for %arg14 = %c0_i32 to %19 step %c1_i32 iter_args(%arg15 = %18) -> (vector<16x256xf32>)  : i32 {
      %32 = arith.index_cast %arg14 : i32 to index
      %c0_26 = arith.constant 0 : index
      %c0_27 = arith.constant 0 : index
      %33 = vector.load %arg5[%32, %c0_26, %c0_27] : memref<4x16x144xf32, #tpu.memory_space<vmem>>, vector<1x16x144xf32>
      %34 = vector.shape_cast %33 : vector<1x16x144xf32> to vector<16x144xf32>
      %35 = arith.index_cast %arg14 : i32 to index
      %c0_28 = arith.constant 0 : index
      %c0_29 = arith.constant 0 : index
      %36 = vector.load %arg6[%35, %c0_28, %c0_29] : memref<4x16x1xf32, #tpu.memory_space<vmem>>, vector<1x16x1xf32>
      %37 = vector.shape_cast %36 : vector<1x16x1xf32> to vector<16x1xf32>
      %c0_30 = arith.constant 0 : index
      %c0_31 = arith.constant 0 : index
      %c128 = arith.constant 128 : index
      %38 = vector.load %arg12[%c0_30, %c0_31, %c128] : memref<16x1x402xf32, #tpu.memory_space<vmem>>, vector<16x1x256xf32>
      %39 = vector.shape_cast %38 : vector<16x1x256xf32> to vector<16x256xf32>
      %40 = vector.shape_cast %arg15 : vector<16x256xf32> to vector<16x1x256xf32>
      tpu.vector_store %arg12[%c0_30, %c0_31, %c128], %40 {strides = array<i32>} : memref<16x1x402xf32, #tpu.memory_space<vmem>>, vector<16x1x256xf32>,
      %c0_32 = arith.constant 0 : index
      %c0_33 = arith.constant 0 : index
      %c111 = arith.constant 111 : index
      %41 = vector.load %arg12[%c0_32, %c0_33, %c111] : memref<16x1x402xf32, #tpu.memory_space<vmem>>, vector<16x1x256xf32>
      %42 = vector.shape_cast %41 : vector<16x1x256xf32> to vector<16x256xf32>
      %cst_34 = arith.constant 0.000000e+00 : f32
      %43 = vector.broadcast %cst_34 : f32 to vector<16x256xf32>
      %44 = vector.shape_cast %4 : vector<1x256xi1> to vector<1x256xi1>
      %45 = vector.broadcast %44 : vector<1x256xi1> to vector<16x256xi1>
      %46 = arith.select %45, %42, %43 : vector<16x256xi1>, vector<16x256xf32>
      %c0_35 = arith.constant 0 : index
      %c0_36 = arith.constant 0 : index
      %47 = vector.load %arg13[%c0_35, %c0_36] : memref<144x256xf32, #tpu.memory_space<vmem>>, vector<16x256xf32>
      tpu.vector_store %arg13[%c0_35, %c0_36], %46 {strides = array<i32>} : memref<144x256xf32, #tpu.memory_space<vmem>>, vector<16x256xf32>,
      %c0_37 = arith.constant 0 : index
      %c0_38 = arith.constant 0 : index
      %c112 = arith.constant 112 : index
      %48 = vector.load %arg12[%c0_37, %c0_38, %c112] : memref<16x1x402xf32, #tpu.memory_space<vmem>>, vector<16x1x256xf32>
      %49 = vector.shape_cast %48 : vector<16x1x256xf32> to vector<16x256xf32>
      %c16 = arith.constant 16 : index
      %c0_39 = arith.constant 0 : index
      %50 = vector.load %arg13[%c16, %c0_39] : memref<144x256xf32, #tpu.memory_space<vmem>>, vector<16x256xf32>
      tpu.vector_store %arg13[%c16, %c0_39], %49 {strides = array<i32>} : memref<144x256xf32, #tpu.memory_space<vmem>>, vector<16x256xf32>,
      %c0_40 = arith.constant 0 : index
      %c0_41 = arith.constant 0 : index
      %c113 = arith.constant 113 : index
      %51 = vector.load %arg12[%c0_40, %c0_41, %c113] : memref<16x1x402xf32, #tpu.memory_space<vmem>>, vector<16x1x256xf32>
      %52 = vector.shape_cast %51 : vector<16x1x256xf32> to vector<16x256xf32>
      %cst_42 = arith.constant 0.000000e+00 : f32
      %53 = vector.broadcast %cst_42 : f32 to vector<16x256xf32>
      %54 = vector.shape_cast %7 : vector<1x256xi1> to vector<1x256xi1>
      %55 = vector.broadcast %54 : vector<1x256xi1> to vector<16x256xi1>
      %56 = arith.select %55, %52, %53 : vector<16x256xi1>, vector<16x256xf32>
      %c32 = arith.constant 32 : index
      %c0_43 = arith.constant 0 : index
      %57 = vector.load %arg13[%c32, %c0_43] : memref<144x256xf32, #tpu.memory_space<vmem>>, vector<16x256xf32>
      tpu.vector_store %arg13[%c32, %c0_43], %56 {strides = array<i32>} : memref<144x256xf32, #tpu.memory_space<vmem>>, vector<16x256xf32>,
      %c0_44 = arith.constant 0 : index
      %c0_45 = arith.constant 0 : index
      %c127 = arith.constant 127 : index
      %58 = vector.load %arg12[%c0_44, %c0_45, %c127] : memref<16x1x402xf32, #tpu.memory_space<vmem>>, vector<16x1x256xf32>
      %59 = vector.shape_cast %58 : vector<16x1x256xf32> to vector<16x256xf32>
      %cst_46 = arith.constant 0.000000e+00 : f32
      %60 = vector.broadcast %cst_46 : f32 to vector<16x256xf32>
      %61 = vector.shape_cast %4 : vector<1x256xi1> to vector<1x256xi1>
      %62 = vector.broadcast %61 : vector<1x256xi1> to vector<16x256xi1>
      %63 = arith.select %62, %59, %60 : vector<16x256xi1>, vector<16x256xf32>
      %c48 = arith.constant 48 : index
      %c0_47 = arith.constant 0 : index
      %64 = vector.load %arg13[%c48, %c0_47] : memref<144x256xf32, #tpu.memory_space<vmem>>, vector<16x256xf32>
      tpu.vector_store %arg13[%c48, %c0_47], %63 {strides = array<i32>} : memref<144x256xf32, #tpu.memory_space<vmem>>, vector<16x256xf32>,
      %c0_48 = arith.constant 0 : index
      %c0_49 = arith.constant 0 : index
      %c128_50 = arith.constant 128 : index
      %65 = vector.load %arg12[%c0_48, %c0_49, %c128_50] : memref<16x1x402xf32, #tpu.memory_space<vmem>>, vector<16x1x256xf32>
      %66 = vector.shape_cast %65 : vector<16x1x256xf32> to vector<16x256xf32>
      %c64 = arith.constant 64 : index
      %c0_51 = arith.constant 0 : index
      %67 = vector.load %arg13[%c64, %c0_51] : memref<144x256xf32, #tpu.memory_space<vmem>>, vector<16x256xf32>
      tpu.vector_store %arg13[%c64, %c0_51], %66 {strides = array<i32>} : memref<144x256xf32, #tpu.memory_space<vmem>>, vector<16x256xf32>,
      %c0_52 = arith.constant 0 : index
      %c0_53 = arith.constant 0 : index
      %c129 = arith.constant 129 : index
      %68 = vector.load %arg12[%c0_52, %c0_53, %c129] : memref<16x1x402xf32, #tpu.memory_space<vmem>>, vector<16x1x256xf32>
      %69 = vector.shape_cast %68 : vector<16x1x256xf32> to vector<16x256xf32>
      %cst_54 = arith.constant 0.000000e+00 : f32
      %70 = vector.broadcast %cst_54 : f32 to vector<16x256xf32>
      %71 = vector.shape_cast %7 : vector<1x256xi1> to vector<1x256xi1>
      %72 = vector.broadcast %71 : vector<1x256xi1> to vector<16x256xi1>
      %73 = arith.select %72, %69, %70 : vector<16x256xi1>, vector<16x256xf32>
      %c80 = arith.constant 80 : index
      %c0_55 = arith.constant 0 : index
      %74 = vector.load %arg13[%c80, %c0_55] : memref<144x256xf32, #tpu.memory_space<vmem>>, vector<16x256xf32>
      tpu.vector_store %arg13[%c80, %c0_55], %73 {strides = array<i32>} : memref<144x256xf32, #tpu.memory_space<vmem>>, vector<16x256xf32>,
      %c0_56 = arith.constant 0 : index
      %c0_57 = arith.constant 0 : index
      %c143 = arith.constant 143 : index
      %75 = vector.load %arg12[%c0_56, %c0_57, %c143] : memref<16x1x402xf32, #tpu.memory_space<vmem>>, vector<16x1x256xf32>
      %76 = vector.shape_cast %75 : vector<16x1x256xf32> to vector<16x256xf32>
      %cst_58 = arith.constant 0.000000e+00 : f32
      %77 = vector.broadcast %cst_58 : f32 to vector<16x256xf32>
      %78 = vector.shape_cast %4 : vector<1x256xi1> to vector<1x256xi1>
      %79 = vector.broadcast %78 : vector<1x256xi1> to vector<16x256xi1>
      %80 = arith.select %79, %76, %77 : vector<16x256xi1>, vector<16x256xf32>
      %c96 = arith.constant 96 : index
      %c0_59 = arith.constant 0 : index
      %81 = vector.load %arg13[%c96, %c0_59] : memref<144x256xf32, #tpu.memory_space<vmem>>, vector<16x256xf32>
      tpu.vector_store %arg13[%c96, %c0_59], %80 {strides = array<i32>} : memref<144x256xf32, #tpu.memory_space<vmem>>, vector<16x256xf32>,
      %c0_60 = arith.constant 0 : index
      %c0_61 = arith.constant 0 : index
      %c144 = arith.constant 144 : index
      %82 = vector.load %arg12[%c0_60, %c0_61, %c144] : memref<16x1x402xf32, #tpu.memory_space<vmem>>, vector<16x1x256xf32>
      %83 = vector.shape_cast %82 : vector<16x1x256xf32> to vector<16x256xf32>
      %c112_62 = arith.constant 112 : index
      %c0_63 = arith.constant 0 : index
      %84 = vector.load %arg13[%c112_62, %c0_63] : memref<144x256xf32, #tpu.memory_space<vmem>>, vector<16x256xf32>
      tpu.vector_store %arg13[%c112_62, %c0_63], %83 {strides = array<i32>} : memref<144x256xf32, #tpu.memory_space<vmem>>, vector<16x256xf32>,
      %c0_64 = arith.constant 0 : index
      %c0_65 = arith.constant 0 : index
      %c145 = arith.constant 145 : index
      %85 = vector.load %arg12[%c0_64, %c0_65, %c145] : memref<16x1x402xf32, #tpu.memory_space<vmem>>, vector<16x1x256xf32>
      %86 = vector.shape_cast %85 : vector<16x1x256xf32> to vector<16x256xf32>
      %cst_66 = arith.constant 0.000000e+00 : f32
      %87 = vector.broadcast %cst_66 : f32 to vector<16x256xf32>
      %88 = vector.shape_cast %7 : vector<1x256xi1> to vector<1x256xi1>
      %89 = vector.broadcast %88 : vector<1x256xi1> to vector<16x256xi1>
      %90 = arith.select %89, %86, %87 : vector<16x256xi1>, vector<16x256xf32>
      %c128_67 = arith.constant 128 : index
      %c0_68 = arith.constant 0 : index
      %91 = vector.load %arg13[%c128_67, %c0_68] : memref<144x256xf32, #tpu.memory_space<vmem>>, vector<16x256xf32>
      tpu.vector_store %arg13[%c128_67, %c0_68], %90 {strides = array<i32>} : memref<144x256xf32, #tpu.memory_space<vmem>>, vector<16x256xf32>,
      %c0_69 = arith.constant 0 : index
      %c0_70 = arith.constant 0 : index
      %92 = vector.load %arg13[%c0_69, %c0_70] : memref<144x256xf32, #tpu.memory_space<vmem>>, vector<144x256xf32>
      %cst_71 = arith.constant dense<0.000000e+00> : vector<16x256xf32>
      %93 = tpu.matmul %34, %92, %cst_71 {dimension_numbers = #tpu.dot_dimension_numbers<[1], [0], [0], [1], [0, 0, 1, 1], [], []>} : vector<16x144xf32>, vector<144x256xf32>, vector<16x256xf32> -> vector<16x256xf32>
      %94 = vector.broadcast %37 : vector<16x1xf32> to vector<16x256xf32>
      %95 = arith.addf %93, %94 : vector<16x256xf32>
      %cst_72 = arith.constant 0.000000e+00 : f32
      %96 = vector.broadcast %cst_72 : f32 to vector<16x256xf32>
      %97 = arith.cmpf ogt, %95, %96 : vector<16x256xf32>
      %cst_73 = arith.constant 0.00999999977 : f32
      %98 = vector.broadcast %cst_73 : f32 to vector<16x256xf32>
      %99 = arith.mulf %98, %95 : vector<16x256xf32>
      %100 = arith.select %97, %95, %99 : vector<16x256xi1>, vector<16x256xf32>
      %101 = arith.index_cast %arg14 : i32 to index
      %c0_74 = arith.constant 0 : index
      %c0_75 = arith.constant 0 : index
      %102 = vector.load %arg7[%101, %c0_74, %c0_75] : memref<4x16x144xf32, #tpu.memory_space<vmem>>, vector<1x16x144xf32>
      %103 = vector.shape_cast %102 : vector<1x16x144xf32> to vector<16x144xf32>
      %104 = arith.index_cast %arg14 : i32 to index
      %c0_76 = arith.constant 0 : index
      %c0_77 = arith.constant 0 : index
      %105 = vector.load %arg8[%104, %c0_76, %c0_77] : memref<4x16x1xf32, #tpu.memory_space<vmem>>, vector<1x16x1xf32>
      %106 = vector.shape_cast %105 : vector<1x16x1xf32> to vector<16x1xf32>
      %c0_78 = arith.constant 0 : index
      %c0_79 = arith.constant 0 : index
      %c128_80 = arith.constant 128 : index
      %107 = vector.load %arg12[%c0_78, %c0_79, %c128_80] : memref<16x1x402xf32, #tpu.memory_space<vmem>>, vector<16x1x256xf32>
      %108 = vector.shape_cast %107 : vector<16x1x256xf32> to vector<16x256xf32>
      %109 = vector.shape_cast %100 : vector<16x256xf32> to vector<16x1x256xf32>
      tpu.vector_store %arg12[%c0_78, %c0_79, %c128_80], %109 {strides = array<i32>} : memref<16x1x402xf32, #tpu.memory_space<vmem>>, vector<16x1x256xf32>,
      %c0_81 = arith.constant 0 : index
      %c0_82 = arith.constant 0 : index
      %c111_83 = arith.constant 111 : index
      %110 = vector.load %arg12[%c0_81, %c0_82, %c111_83] : memref<16x1x402xf32, #tpu.memory_space<vmem>>, vector<16x1x256xf32>
      %111 = vector.shape_cast %110 : vector<16x1x256xf32> to vector<16x256xf32>
      %cst_84 = arith.constant 0.000000e+00 : f32
      %112 = vector.broadcast %cst_84 : f32 to vector<16x256xf32>
      %113 = vector.shape_cast %4 : vector<1x256xi1> to vector<1x256xi1>
      %114 = vector.broadcast %113 : vector<1x256xi1> to vector<16x256xi1>
      %115 = arith.select %114, %111, %112 : vector<16x256xi1>, vector<16x256xf32>
      %c0_85 = arith.constant 0 : index
      %c0_86 = arith.constant 0 : index
      %116 = vector.load %arg13[%c0_85, %c0_86] : memref<144x256xf32, #tpu.memory_space<vmem>>, vector<16x256xf32>
      tpu.vector_store %arg13[%c0_85, %c0_86], %115 {strides = array<i32>} : memref<144x256xf32, #tpu.memory_space<vmem>>, vector<16x256xf32>,
      %c0_87 = arith.constant 0 : index
      %c0_88 = arith.constant 0 : index
      %c112_89 = arith.constant 112 : index
      %117 = vector.load %arg12[%c0_87, %c0_88, %c112_89] : memref<16x1x402xf32, #tpu.memory_space<vmem>>, vector<16x1x256xf32>
      %118 = vector.shape_cast %117 : vector<16x1x256xf32> to vector<16x256xf32>
      %c16_90 = arith.constant 16 : index
      %c0_91 = arith.constant 0 : index
      %119 = vector.load %arg13[%c16_90, %c0_91] : memref<144x256xf32, #tpu.memory_space<vmem>>, vector<16x256xf32>
      tpu.vector_store %arg13[%c16_90, %c0_91], %118 {strides = array<i32>} : memref<144x256xf32, #tpu.memory_space<vmem>>, vector<16x256xf32>,
      %c0_92 = arith.constant 0 : index
      %c0_93 = arith.constant 0 : index
      %c113_94 = arith.constant 113 : index
      %120 = vector.load %arg12[%c0_92, %c0_93, %c113_94] : memref<16x1x402xf32, #tpu.memory_space<vmem>>, vector<16x1x256xf32>
      %121 = vector.shape_cast %120 : vector<16x1x256xf32> to vector<16x256xf32>
      %cst_95 = arith.constant 0.000000e+00 : f32
      %122 = vector.broadcast %cst_95 : f32 to vector<16x256xf32>
      %123 = vector.shape_cast %7 : vector<1x256xi1> to vector<1x256xi1>
      %124 = vector.broadcast %123 : vector<1x256xi1> to vector<16x256xi1>
      %125 = arith.select %124, %121, %122 : vector<16x256xi1>, vector<16x256xf32>
      %c32_96 = arith.constant 32 : index
      %c0_97 = arith.constant 0 : index
      %126 = vector.load %arg13[%c32_96, %c0_97] : memref<144x256xf32, #tpu.memory_space<vmem>>, vector<16x256xf32>
      tpu.vector_store %arg13[%c32_96, %c0_97], %125 {strides = array<i32>} : memref<144x256xf32, #tpu.memory_space<vmem>>, vector<16x256xf32>,
      %c0_98 = arith.constant 0 : index
      %c0_99 = arith.constant 0 : index
      %c127_100 = arith.constant 127 : index
      %127 = vector.load %arg12[%c0_98, %c0_99, %c127_100] : memref<16x1x402xf32, #tpu.memory_space<vmem>>, vector<16x1x256xf32>
      %128 = vector.shape_cast %127 : vector<16x1x256xf32> to vector<16x256xf32>
      %cst_101 = arith.constant 0.000000e+00 : f32
      %129 = vector.broadcast %cst_101 : f32 to vector<16x256xf32>
      %130 = vector.shape_cast %4 : vector<1x256xi1> to vector<1x256xi1>
      %131 = vector.broadcast %130 : vector<1x256xi1> to vector<16x256xi1>
      %132 = arith.select %131, %128, %129 : vector<16x256xi1>, vector<16x256xf32>
      %c48_102 = arith.constant 48 : index
      %c0_103 = arith.constant 0 : index
      %133 = vector.load %arg13[%c48_102, %c0_103] : memref<144x256xf32, #tpu.memory_space<vmem>>, vector<16x256xf32>
      tpu.vector_store %arg13[%c48_102, %c0_103], %132 {strides = array<i32>} : memref<144x256xf32, #tpu.memory_space<vmem>>, vector<16x256xf32>,
      %c0_104 = arith.constant 0 : index
      %c0_105 = arith.constant 0 : index
      %c128_106 = arith.constant 128 : index
      %134 = vector.load %arg12[%c0_104, %c0_105, %c128_106] : memref<16x1x402xf32, #tpu.memory_space<vmem>>, vector<16x1x256xf32>
      %135 = vector.shape_cast %134 : vector<16x1x256xf32> to vector<16x256xf32>
      %c64_107 = arith.constant 64 : index
      %c0_108 = arith.constant 0 : index
      %136 = vector.load %arg13[%c64_107, %c0_108] : memref<144x256xf32, #tpu.memory_space<vmem>>, vector<16x256xf32>
      tpu.vector_store %arg13[%c64_107, %c0_108], %135 {strides = array<i32>} : memref<144x256xf32, #tpu.memory_space<vmem>>, vector<16x256xf32>,
      %c0_109 = arith.constant 0 : index
      %c0_110 = arith.constant 0 : index
      %c129_111 = arith.constant 129 : index
      %137 = vector.load %arg12[%c0_109, %c0_110, %c129_111] : memref<16x1x402xf32, #tpu.memory_space<vmem>>, vector<16x1x256xf32>
      %138 = vector.shape_cast %137 : vector<16x1x256xf32> to vector<16x256xf32>
      %cst_112 = arith.constant 0.000000e+00 : f32
      %139 = vector.broadcast %cst_112 : f32 to vector<16x256xf32>
      %140 = vector.shape_cast %7 : vector<1x256xi1> to vector<1x256xi1>
      %141 = vector.broadcast %140 : vector<1x256xi1> to vector<16x256xi1>
      %142 = arith.select %141, %138, %139 : vector<16x256xi1>, vector<16x256xf32>
      %c80_113 = arith.constant 80 : index
      %c0_114 = arith.constant 0 : index
      %143 = vector.load %arg13[%c80_113, %c0_114] : memref<144x256xf32, #tpu.memory_space<vmem>>, vector<16x256xf32>
      tpu.vector_store %arg13[%c80_113, %c0_114], %142 {strides = array<i32>} : memref<144x256xf32, #tpu.memory_space<vmem>>, vector<16x256xf32>,
      %c0_115 = arith.constant 0 : index
      %c0_116 = arith.constant 0 : index
      %c143_117 = arith.constant 143 : index
      %144 = vector.load %arg12[%c0_115, %c0_116, %c143_117] : memref<16x1x402xf32, #tpu.memory_space<vmem>>, vector<16x1x256xf32>
      %145 = vector.shape_cast %144 : vector<16x1x256xf32> to vector<16x256xf32>
      %cst_118 = arith.constant 0.000000e+00 : f32
      %146 = vector.broadcast %cst_118 : f32 to vector<16x256xf32>
      %147 = vector.shape_cast %4 : vector<1x256xi1> to vector<1x256xi1>
      %148 = vector.broadcast %147 : vector<1x256xi1> to vector<16x256xi1>
      %149 = arith.select %148, %145, %146 : vector<16x256xi1>, vector<16x256xf32>
      %c96_119 = arith.constant 96 : index
      %c0_120 = arith.constant 0 : index
      %150 = vector.load %arg13[%c96_119, %c0_120] : memref<144x256xf32, #tpu.memory_space<vmem>>, vector<16x256xf32>
      tpu.vector_store %arg13[%c96_119, %c0_120], %149 {strides = array<i32>} : memref<144x256xf32, #tpu.memory_space<vmem>>, vector<16x256xf32>,
      %c0_121 = arith.constant 0 : index
      %c0_122 = arith.constant 0 : index
      %c144_123 = arith.constant 144 : index
      %151 = vector.load %arg12[%c0_121, %c0_122, %c144_123] : memref<16x1x402xf32, #tpu.memory_space<vmem>>, vector<16x1x256xf32>
      %152 = vector.shape_cast %151 : vector<16x1x256xf32> to vector<16x256xf32>
      %c112_124 = arith.constant 112 : index
      %c0_125 = arith.constant 0 : index
      %153 = vector.load %arg13[%c112_124, %c0_125] : memref<144x256xf32, #tpu.memory_space<vmem>>, vector<16x256xf32>
      tpu.vector_store %arg13[%c112_124, %c0_125], %152 {strides = array<i32>} : memref<144x256xf32, #tpu.memory_space<vmem>>, vector<16x256xf32>,
      %c0_126 = arith.constant 0 : index
      %c0_127 = arith.constant 0 : index
      %c145_128 = arith.constant 145 : index
      %154 = vector.load %arg12[%c0_126, %c0_127, %c145_128] : memref<16x1x402xf32, #tpu.memory_space<vmem>>, vector<16x1x256xf32>
      %155 = vector.shape_cast %154 : vector<16x1x256xf32> to vector<16x256xf32>
      %cst_129 = arith.constant 0.000000e+00 : f32
      %156 = vector.broadcast %cst_129 : f32 to vector<16x256xf32>
      %157 = vector.shape_cast %7 : vector<1x256xi1> to vector<1x256xi1>
      %158 = vector.broadcast %157 : vector<1x256xi1> to vector<16x256xi1>
      %159 = arith.select %158, %155, %156 : vector<16x256xi1>, vector<16x256xf32>
      %c128_130 = arith.constant 128 : index
      %c0_131 = arith.constant 0 : index
      %160 = vector.load %arg13[%c128_130, %c0_131] : memref<144x256xf32, #tpu.memory_space<vmem>>, vector<16x256xf32>
      tpu.vector_store %arg13[%c128_130, %c0_131], %159 {strides = array<i32>} : memref<144x256xf32, #tpu.memory_space<vmem>>, vector<16x256xf32>,
      %c0_132 = arith.constant 0 : index
      %c0_133 = arith.constant 0 : index
      %161 = vector.load %arg13[%c0_132, %c0_133] : memref<144x256xf32, #tpu.memory_space<vmem>>, vector<144x256xf32>
      %cst_134 = arith.constant dense<0.000000e+00> : vector<16x256xf32>
      %162 = tpu.matmul %103, %161, %cst_134 {dimension_numbers = #tpu.dot_dimension_numbers<[1], [0], [0], [1], [0, 0, 1, 1], [], []>} : vector<16x144xf32>, vector<144x256xf32>, vector<16x256xf32> -> vector<16x256xf32>
      %163 = vector.broadcast %106 : vector<16x1xf32> to vector<16x256xf32>
      %164 = arith.addf %162, %163 : vector<16x256xf32>
      %165 = arith.addf %arg15, %164 : vector<16x256xf32>
      scf.yield %165 : vector<16x256xf32>
    }
    %c4_i32_16 = arith.constant 4 : i32
    %cst_17 = arith.constant 0.000000e+00 : f32
    %21 = vector.broadcast %cst_17 : f32 to vector<16x256xf32>
    %22 = arith.cmpf ogt, %20, %21 : vector<16x256xf32>
    %cst_18 = arith.constant 0.00999999977 : f32
    %23 = vector.broadcast %cst_18 : f32 to vector<16x256xf32>
    %24 = arith.mulf %23, %20 : vector<16x256xf32>
    %25 = arith.select %22, %20, %24 : vector<16x256xi1>, vector<16x256xf32>
    %c0_19 = arith.constant 0 : index
    %c0_20 = arith.constant 0 : index
    %26 = vector.load %arg9[%c0_19, %c0_20] : memref<9x16xf32, #tpu.memory_space<vmem>>, vector<9x16xf32>
    %cst_21 = arith.constant dense<0.000000e+00> : vector<9x256xf32>
    %27 = tpu.matmul %26, %25, %cst_21 {dimension_numbers = #tpu.dot_dimension_numbers<[1], [0], [0], [1], [0, 0, 1, 1], [], []>} : vector<9x16xf32>, vector<16x256xf32>, vector<9x256xf32> -> vector<9x256xf32>
    %c0_22 = arith.constant 0 : index
    %c0_23 = arith.constant 0 : index
    %28 = vector.load %arg10[%c0_22, %c0_23] : memref<9x1xf32, #tpu.memory_space<vmem>>, vector<9x1xf32>
    %29 = vector.broadcast %28 : vector<9x1xf32> to vector<9x256xf32>
    %30 = arith.addf %27, %29 : vector<9x256xf32>
    %c0_24 = arith.constant 0 : index
    %c0_25 = arith.constant 0 : index
    %31 = vector.load %arg11[%c0_24, %c0_25] : memref<9x256xf32, #tpu.memory_space<vmem>>, vector<9x256xf32>
    tpu.vector_store %arg11[%c0_24, %c0_25], %30 {strides = array<i32>} : memref<9x256xf32, #tpu.memory_space<vmem>>, vector<9x256xf32>,
    return
  }
  func.func @transform_0(%arg0: i32) -> (i32, i32) {
    %c0_i32 = arith.constant 0 : i32
    %c0_i32_0 = arith.constant 0 : i32
    return %c0_i32, %arg0 : i32, i32
  }
  func.func @transform_1(%arg0: i32) -> (i32, i32) {
    %c0_i32 = arith.constant 0 : i32
    %c0_i32_0 = arith.constant 0 : i32
    %c0_i32_1 = arith.constant 0 : i32
    return %c0_i32, %c0_i32_0 : i32, i32
  }
  func.func @transform_2(%arg0: i32) -> (i32, i32) {
    %c0_i32 = arith.constant 0 : i32
    %c0_i32_0 = arith.constant 0 : i32
    %c0_i32_1 = arith.constant 0 : i32
    return %c0_i32, %c0_i32_0 : i32, i32
  }
  func.func @transform_3(%arg0: i32) -> (i32, i32) {
    %c0_i32 = arith.constant 0 : i32
    %c0_i32_0 = arith.constant 0 : i32
    %c0_i32_1 = arith.constant 0 : i32
    return %c0_i32, %c0_i32_0 : i32, i32
  }
  func.func @transform_4(%arg0: i32) -> (i32, i32, i32) {
    %c0_i32 = arith.constant 0 : i32
    %c0_i32_0 = arith.constant 0 : i32
    %c0_i32_1 = arith.constant 0 : i32
    %c0_i32_2 = arith.constant 0 : i32
    return %c0_i32, %c0_i32_0, %c0_i32_1 : i32, i32, i32
  }
  func.func @transform_5(%arg0: i32) -> (i32, i32, i32) {
    %c0_i32 = arith.constant 0 : i32
    %c0_i32_0 = arith.constant 0 : i32
    %c0_i32_1 = arith.constant 0 : i32
    %c0_i32_2 = arith.constant 0 : i32
    return %c0_i32, %c0_i32_0, %c0_i32_1 : i32, i32, i32
  }
  func.func @transform_6(%arg0: i32) -> (i32, i32, i32) {
    %c0_i32 = arith.constant 0 : i32
    %c0_i32_0 = arith.constant 0 : i32
    %c0_i32_1 = arith.constant 0 : i32
    %c0_i32_2 = arith.constant 0 : i32
    return %c0_i32, %c0_i32_0, %c0_i32_1 : i32, i32, i32
  }
  func.func @transform_7(%arg0: i32) -> (i32, i32, i32) {
    %c0_i32 = arith.constant 0 : i32
    %c0_i32_0 = arith.constant 0 : i32
    %c0_i32_1 = arith.constant 0 : i32
    %c0_i32_2 = arith.constant 0 : i32
    return %c0_i32, %c0_i32_0, %c0_i32_1 : i32, i32, i32
  }
  func.func @transform_8(%arg0: i32) -> (i32, i32) {
    %c0_i32 = arith.constant 0 : i32
    %c0_i32_0 = arith.constant 0 : i32
    %c0_i32_1 = arith.constant 0 : i32
    return %c0_i32, %c0_i32_0 : i32, i32
  }
  func.func @transform_9(%arg0: i32) -> (i32, i32) {
    %c0_i32 = arith.constant 0 : i32
    %c0_i32_0 = arith.constant 0 : i32
    %c0_i32_1 = arith.constant 0 : i32
    return %c0_i32, %c0_i32_0 : i32, i32
  }
  func.func @transform_10(%arg0: i32) -> (i32, i32) {
    %c0_i32 = arith.constant 0 : i32
    %c0_i32_0 = arith.constant 0 : i32
    return %c0_i32, %arg0 : i32, i32
  }
}

</mosaic_0001>

<llo_original>
// kernel: tpu_custom_call.1
$region0: #{tpu_custom_call.1}
  #allocation0 [shape = 'u32[]', space=smem, size = 0x4, offset = 0x4, fixed_abs, tag = 'smem constant byte address 0x4 - core index']
  #allocation1 [shape = 'u32[144,128]{1,0:T(1,128)}', space=vmem, size = 0x12000, scoped, tag = 'internal scratch']
  #allocation2 [shape = 'f32[16,1,402]{2,1,0:T(1,128)}', space=vmem, size = 0x8000, scoped, tag = 'scratch operand']
  #allocation3 [shape = 'f32[144,256]{1,0:T(8,128)}', space=vmem, size = 0x24000, scoped, tag = 'scratch operand']
  %s0 = inlined_call_operand.vmem [shape: f32[3,512], index: 0, kind: input, shape index: {}]
  %s1 = inlined_call_operand.vmem [shape: f32[2,256], index: 1, kind: input, shape index: {}]
  %s2 = inlined_call_operand.vmem [shape: f32[16,3], index: 2, kind: input, shape index: {}]
  %s3 = inlined_call_operand.vmem [shape: f32[16,1], index: 3, kind: input, shape index: {}]
  %s4 = inlined_call_operand.vmem [shape: f32[4,16,144], index: 4, kind: input, shape index: {}]
  %s5 = inlined_call_operand.vmem [shape: f32[4,16,1], index: 5, kind: input, shape index: {}]
  %s6 = inlined_call_operand.hbm [shape: f32[4,16,144], index: 6, kind: input, shape index: {}]
  %s7 = inlined_call_operand.vmem [shape: f32[4,16,1], index: 7, kind: input, shape index: {}]
  %s8 = inlined_call_operand.vmem [shape: f32[9,16], index: 8, kind: input, shape index: {}]
  %s9 = inlined_call_operand.vmem [shape: f32[9,1], index: 9, kind: input, shape index: {}]
  %s10 = inlined_call_operand.hbm [shape: f32[9,512], index: 10, kind: output, shape index: {}]
  %s11 = sld [smem:[#allocation0]]
  $region84: #{tpu_custom_call.1} parent=0
    _
  %s13 = ssub.s32 1, %s11
  %s14 = scalar_select 0, %s13, %s11
  $region1: #{tpu_custom_call.1} parent=0
    #allocation4 [shape = 'u8[65536]{0}', space=vmem, size = 0x10000, scoped, tag = 'input window, operand 6, single buffered']
    #allocation5 [shape = 's32[2]{0}', space=sflag, size = 0x8, scoped, tag = 'scoped memory for tpu_custom_call.1']
    #allocation6 [shape = 's32[2]{0}', space=sflag, size = 0x8, scoped, tag = 'scoped memory for tpu_custom_call.1']
    #allocation7 [shape = 'u8[32768]{0}', space=vmem, size = 0x8000, scoped, tag = 'output window, operand 0']
    %15 = vsyncpa [#allocation5], 0
    %16 = vsyncpa [#allocation6], 0
    %s17 = scalar_lea.sflag [#allocation6], 1
    %18 = vsyncpa %s17, 0
    loop: start=0, step=1, limit=4
    $region2: #{tpu_custom_call.1} parent=1 // loop_pre_header
      _
    $region3: #{tpu_custom_call.1} parent=1 // loop_header
      %s20 = sphi 0, %s24
      %p21 = scmp.ge.s32.totalorder %s20, 4
      %s30 = sphi 0, %s32
      %s33 = sphi 0, %s30
      %s34 = sphi 0, %s33
      %s50 = sphi 0, %s34
      %s54 = sphi 0, %s54
      %s56 = sphi 0, %s54
      %s57 = sphi 0, %s56
      %s71 = sphi 0, %s57
      %s75 = sphi 0, %s75
      %s77 = sphi 0, %s75
      %s78 = sphi 0, %s77
      %s92 = sphi 0, %s78
      %s96 = sphi 0, %s96
      %s98 = sphi 0, %s96
      %s99 = sphi 0, %s98
      %s113 = sphi 0, %s99
      %s117 = sphi 0, %s117
      %s119 = sphi 0, %s117
      %s120 = sphi 0, %s119
      %s134 = sphi 0, %s120
      %s138 = sphi 0, %s138
      %s140 = sphi 0, %s138
      %s141 = sphi 0, %s140
      %s155 = sphi 0, %s141
      %s159 = sphi 0, %s159
      %s161 = sphi 0, %s159
      %s162 = sphi 0, %s161
      %s176 = sphi 0, %s162
      %s180 = sphi 0, %s180
      %s182 = sphi 0, %s180
      %s183 = sphi 0, %s182
      %s197 = sphi 0, %s183
      %s201 = sphi 0, %s201
      %s203 = sphi 0, %s201
      %s204 = sphi 0, %s203
      %s218 = sphi 0, %s204
      %s222 = sphi 0, %s222
      %s224 = sphi 0, %s222
      %s225 = sphi 0, %s224
      %s239 = sphi 0, %s225
      %s245 = sphi 0, %s247
      %s248 = sphi 0, %s245
      %s249 = sphi 0, %s248
      %s265 = sphi 0, %s249
    $region4: #{tpu_custom_call.1} parent=1 // loop_header_branch
      %23 = sbr.rel (%p21) target = $region8
    $region5: #{tpu_custom_call.1} parent=1 // loop_body
      %s25 = ssub.s32 %s20, 1
      %s26 = ssub.s32 %s20, 2
      %s27 = sadd.s32 %s20, 1
      %s28 = ssub.s32 %s20, %s27
      %p29 = scmp.eq.s32.totalorder %s28, 0
      %s31 = sadd.s32 %s30, 1
      %s32 = scalar_select %p29, %s30, %s31
      %p35 = pneg %p29
      %p36 = scmp.eq.s32.totalorder %s20, 1
      %p37 = por %p35, %p36
      %p38 = scmp.ne.s32.totalorder %s30, %s33
      %p39 = scmp.eq.s32.totalorder %s20, 0
      %p40 = por %p38, %p39
      %p41 = scmp.ne.s32.totalorder %s30, %s33
      %p42 = scmp.eq.s32.totalorder %s25, 1
      %p43 = por %p41, %p42
      %p44 = scmp.ne.s32.totalorder %s33, %s34
      %p45 = scmp.eq.s32.totalorder %s25, 0
      %p46 = por %p44, %p45
      %p47 = scmp.ne.s32.totalorder %s33, %s34
      %p48 = scmp.eq.s32.totalorder %s26, 1
      %p49 = por %p47, %p48
      %p51 = scmp.ne.s32.totalorder %s34, %s50
      %p52 = scmp.eq.s32.totalorder %s26, 0
      %p53 = por %p51, %p52
      %s55 = sadd.s32 %s54, 1
      %p58 = scmp.eq.s32.totalorder %s20, 1
      %p59 = scmp.ne.s32.totalorder %s54, %s56
      %p60 = scmp.eq.s32.totalorder %s20, 0
      %p61 = por %p59, %p60
      %p62 = scmp.ne.s32.totalorder %s54, %s56
      %p63 = scmp.eq.s32.totalorder %s25, 1
      %p64 = por %p62, %p63
      %p65 = scmp.ne.s32.totalorder %s56, %s57
      %p66 = scmp.eq.s32.totalorder %s25, 0
      %p67 = por %p65, %p66
      %p68 = scmp.ne.s32.totalorder %s56, %s57
      %p69 = scmp.eq.s32.totalorder %s26, 1
      %p70 = por %p68, %p69
      %p72 = scmp.ne.s32.totalorder %s57, %s71
      %p73 = scmp.eq.s32.totalorder %s26, 0
      %p74 = por %p72, %p73
      %s76 = sadd.s32 %s75, 1
      %p79 = scmp.eq.s32.totalorder %s20, 1
      %p80 = scmp.ne.s32.totalorder %s75, %s77
      %p81 = scmp.eq.s32.totalorder %s20, 0
      %p82 = por %p80, %p81
      %p83 = scmp.ne.s32.totalorder %s75, %s77
      %p84 = scmp.eq.s32.totalorder %s25, 1
      %p85 = por %p83, %p84
      %p86 = scmp.ne.s32.totalorder %s77, %s78
      %p87 = scmp.eq.s32.totalorder %s25, 0
      %p88 = por %p86, %p87
      %p89 = scmp.ne.s32.totalorder %s77, %s78
      %p90 = scmp.eq.s32.totalorder %s26, 1
      %p91 = por %p89, %p90
      %p93 = scmp.ne.s32.totalorder %s78, %s92
      %p94 = scmp.eq.s32.totalorder %s26, 0
      %p95 = por %p93, %p94
      %s97 = sadd.s32 %s96, 1
      %p100 = scmp.eq.s32.totalorder %s20, 1
      %p101 = scmp.ne.s32.totalorder %s96, %s98
      %p102 = scmp.eq.s32.totalorder %s20, 0
      %p103 = por %p101, %p102
      %p104 = scmp.ne.s32.totalorder %s96, %s98
      %p105 = scmp.eq.s32.totalorder %s25, 1
      %p106 = por %p104, %p105
      %p107 = scmp.ne.s32.totalorder %s98, %s99
      %p108 = scmp.eq.s32.totalorder %s25, 0
      %p109 = por %p107, %p108
      %p110 = scmp.ne.s32.totalorder %s98, %s99
      %p111 = scmp.eq.s32.totalorder %s26, 1
      %p112 = por %p110, %p111
      %p114 = scmp.ne.s32.totalorder %s99, %s113
      %p115 = scmp.eq.s32.totalorder %s26, 0
      %p116 = por %p114, %p115
      %s118 = sadd.s32 %s117, 1
      %p121 = scmp.eq.s32.totalorder %s20, 1
      %p122 = scmp.ne.s32.totalorder %s117, %s119
      %p123 = scmp.eq.s32.totalorder %s20, 0
      %p124 = por %p122, %p123
      %p125 = scmp.ne.s32.totalorder %s117, %s119
      %p126 = scmp.eq.s32.totalorder %s25, 1
      %p127 = por %p125, %p126
      %p128 = scmp.ne.s32.totalorder %s119, %s120
      %p129 = scmp.eq.s32.totalorder %s25, 0
      %p130 = por %p128, %p129
      %p131 = scmp.ne.s32.totalorder %s119, %s120
      %p132 = scmp.eq.s32.totalorder %s26, 1
      %p133 = por %p131, %p132
      %p135 = scmp.ne.s32.totalorder %s120, %s134
      %p136 = scmp.eq.s32.totalorder %s26, 0
      %p137 = por %p135, %p136
      %s139 = sadd.s32 %s138, 1
      %p142 = scmp.eq.s32.totalorder %s20, 1
      %p143 = scmp.ne.s32.totalorder %s138, %s140
      %p144 = scmp.eq.s32.totalorder %s20, 0
      %p145 = por %p143, %p144
      %p146 = scmp.ne.s32.totalorder %s138, %s140
      %p147 = scmp.eq.s32.totalorder %s25, 1
      %p148 = por %p146, %p147
      %p149 = scmp.ne.s32.totalorder %s140, %s141
      %p150 = scmp.eq.s32.totalorder %s25, 0
      %p151 = por %p149, %p150
      %p152 = scmp.ne.s32.totalorder %s140, %s141
      %p153 = scmp.eq.s32.totalorder %s26, 1
      %p154 = por %p152, %p153
      %p156 = scmp.ne.s32.totalorder %s141, %s155
      %p157 = scmp.eq.s32.totalorder %s26, 0
      %p158 = por %p156, %p157
      %s160 = sadd.s32 %s159, 1
      %p163 = scmp.eq.s32.totalorder %s20, 1
      %p164 = scmp.ne.s32.totalorder %s159, %s161
      %p165 = scmp.eq.s32.totalorder %s20, 0
      %p166 = por %p164, %p165
      %p167 = scmp.ne.s32.totalorder %s159, %s161
      %p168 = scmp.eq.s32.totalorder %s25, 1
      %p169 = por %p167, %p168
      %p170 = scmp.ne.s32.totalorder %s161, %s162
      %p171 = scmp.eq.s32.totalorder %s25, 0
      %p172 = por %p170, %p171
      %p173 = scmp.ne.s32.totalorder %s161, %s162
      %p174 = scmp.eq.s32.totalorder %s26, 1
      %p175 = por %p173, %p174
      %p177 = scmp.ne.s32.totalorder %s162, %s176
      %p178 = scmp.eq.s32.totalorder %s26, 0
      %p179 = por %p177, %p178
      %s181 = sadd.s32 %s180, 1
      %p184 = scmp.eq.s32.totalorder %s20, 1
      %p185 = scmp.ne.s32.totalorder %s180, %s182
      %p186 = scmp.eq.s32.totalorder %s20, 0
      %p187 = por %p185, %p186
      %p188 = scmp.ne.s32.totalorder %s180, %s182
      %p189 = scmp.eq.s32.totalorder %s25, 1
      %p190 = por %p188, %p189
      %p191 = scmp.ne.s32.totalorder %s182, %s183
      %p192 = scmp.eq.s32.totalorder %s25, 0
      %p193 = por %p191, %p192
      %p194 = scmp.ne.s32.totalorder %s182, %s183
      %p195 = scmp.eq.s32.totalorder %s26, 1
      %p196 = por %p194, %p195
      %p198 = scmp.ne.s32.totalorder %s183, %s197
      %p199 = scmp.eq.s32.totalorder %s26, 0
      %p200 = por %p198, %p199
      %s202 = sadd.s32 %s201, 1
      %p205 = scmp.eq.s32.totalorder %s20, 1
      %p206 = scmp.ne.s32.totalorder %s201, %s203
      %p207 = scmp.eq.s32.totalorder %s20, 0
      %p208 = por %p206, %p207
      %p209 = scmp.ne.s32.totalorder %s201, %s203
      %p210 = scmp.eq.s32.totalorder %s25, 1
      %p211 = por %p209, %p210
      %p212 = scmp.ne.s32.totalorder %s203, %s204
      %p213 = scmp.eq.s32.totalorder %s25, 0
      %p214 = por %p212, %p213
      %p215 = scmp.ne.s32.totalorder %s203, %s204
      %p216 = scmp.eq.s32.totalorder %s26, 1
      %p217 = por %p215, %p216
      %p219 = scmp.ne.s32.totalorder %s204, %s218
      %p220 = scmp.eq.s32.totalorder %s26, 0
      %p221 = por %p219, %p220
      %s223 = sadd.s32 %s222, 1
      %p226 = scmp.eq.s32.totalorder %s20, 1
      %p227 = scmp.ne.s32.totalorder %s222, %s224
      %p228 = scmp.eq.s32.totalorder %s20, 0
      %p229 = por %p227, %p228
      %p230 = scmp.ne.s32.totalorder %s222, %s224
      %p231 = scmp.eq.s32.totalorder %s25, 1
      %p232 = por %p230, %p231
      %p233 = scmp.ne.s32.totalorder %s224, %s225
      %p234 = scmp.eq.s32.totalorder %s25, 0
      %p235 = por %p233, %p234
      %p236 = scmp.ne.s32.totalorder %s224, %s225
      %p237 = scmp.eq.s32.totalorder %s26, 1
      %p238 = por %p236, %p237
      %p240 = scmp.ne.s32.totalorder %s225, %s239
      %p241 = scmp.eq.s32.totalorder %s26, 0
      %p242 = por %p240, %p241
      %s243 = ssub.s32 %s20, %s27
      %p244 = scmp.eq.s32.totalorder %s243, 0
      %s246 = sadd.s32 %s245, 1
      %s247 = scalar_select %p244, %s245, %s246
      %p250 = pneg %p244
      %p251 = scmp.eq.s32.totalorder %s20, 1
      %p252 = por %p250, %p251
      %p253 = scmp.ne.s32.totalorder %s245, %s248
      %p254 = scmp.eq.s32.totalorder %s20, 0
      %p255 = por %p253, %p254
      %p256 = scmp.ne.s32.totalorder %s245, %s248
      %p257 = scmp.eq.s32.totalorder %s25, 1
      %p258 = por %p256, %p257
      %p259 = scmp.ne.s32.totalorder %s248, %s249
      %p260 = scmp.eq.s32.totalorder %s25, 0
      %p261 = por %p259, %p260
      %p262 = scmp.ne.s32.totalorder %s248, %s249
      %p263 = scmp.eq.s32.totalorder %s26, 1
      %p264 = por %p262, %p263
      %p266 = scmp.ne.s32.totalorder %s249, %s265
      %p267 = scmp.eq.s32.totalorder %s26, 0
      %p268 = por %p266, %p267
      %p269 = scmp.le.s32.totalorder 1, %s20
      %p270 = scmp.lt.s32.totalorder %s20, 3
      %p271 = pnand %p269, %p270
      %p272 = pneg %p271
      // Predicated region
      $region9: #{tpu_custom_call.1} parent=5 // pred_check
        _
      $region10: #{tpu_custom_call.1} parent=5 // pred_check_branch
        %274 = sbr.rel (%p271) target = $region12
      $region11: #{tpu_custom_call.1} parent=5 // pred_region
        %s275 = ssub.s32 %s20, 1
        // Predicated region
        $region13: #{tpu_custom_call.1} parent=11 // pred_check
          %p276 = pneg %p67
        $region14: #{tpu_custom_call.1} parent=11 // pred_check_branch
          %278 = sbr.rel (%p276) target = $region16
        $region15: #{tpu_custom_call.1} parent=11 // pred_region
          _
        $region16: #{tpu_custom_call.1} parent=11 // pred_fallthru
          _
        // Predicated region
        $region17: #{tpu_custom_call.1} parent=11 // pred_check
          %p279 = pneg %p88
        $region18: #{tpu_custom_call.1} parent=11 // pred_check_branch
          %281 = sbr.rel (%p279) target = $region20
        $region19: #{tpu_custom_call.1} parent=11 // pred_region
          _
        $region20: #{tpu_custom_call.1} parent=11 // pred_fallthru
          _
        // Predicated region
        $region21: #{tpu_custom_call.1} parent=11 // pred_check
          %p282 = pneg %p109
        $region22: #{tpu_custom_call.1} parent=11 // pred_check_branch
          %284 = sbr.rel (%p282) target = $region24
        $region23: #{tpu_custom_call.1} parent=11 // pred_region
          _
        $region24: #{tpu_custom_call.1} parent=11 // pred_fallthru
          _
        // Predicated region
        $region25: #{tpu_custom_call.1} parent=11 // pred_check
          %p285 = pneg %p130
        $region26: #{tpu_custom_call.1} parent=11 // pred_check_branch
          %287 = sbr.rel (%p285) target = $region28
        $region27: #{tpu_custom_call.1} parent=11 // pred_region
          _
        $region28: #{tpu_custom_call.1} parent=11 // pred_fallthru
          _
        // Predicated region
        $region29: #{tpu_custom_call.1} parent=11 // pred_check
          %p288 = pneg %p151
        $region30: #{tpu_custom_call.1} parent=11 // pred_check_branch
          %290 = sbr.rel (%p288) target = $region32
        $region31: #{tpu_custom_call.1} parent=11 // pred_region
          _
        $region32: #{tpu_custom_call.1} parent=11 // pred_fallthru
          _
        // Predicated region
        $region33: #{tpu_custom_call.1} parent=11 // pred_check
          %p291 = pneg %p172
        $region34: #{tpu_custom_call.1} parent=11 // pred_check_branch
          %293 = sbr.rel (%p291) target = $region36
        $region35: #{tpu_custom_call.1} parent=11 // pred_region
          %s295 = ssub.s32 2048, 2048
          %296 = vsyncadd [#allocation5], %s295
          %s297 = sshll.u32 [#allocation4], 4
          %s298 = int_to_ptr.vmem [resolvable:$true] %s297
          %303 = dma.hbm_to_vmem [thread:$0]  %s6, 2048, %s298, [#allocation5], 256, 256, 16
        $region36: #{tpu_custom_call.1} parent=11 // pred_fallthru
          _
        // Predicated region
        $region37: #{tpu_custom_call.1} parent=11 // pred_check
          %p304 = pneg %p193
        $region38: #{tpu_custom_call.1} parent=11 // pred_check_branch
          %306 = sbr.rel (%p304) target = $region40
        $region39: #{tpu_custom_call.1} parent=11 // pred_region
          _
        $region40: #{tpu_custom_call.1} parent=11 // pred_fallthru
          _
        // Predicated region
        $region41: #{tpu_custom_call.1} parent=11 // pred_check
          %p307 = pneg %p214
        $region42: #{tpu_custom_call.1} parent=11 // pred_check_branch
          %309 = sbr.rel (%p307) target = $region44
        $region43: #{tpu_custom_call.1} parent=11 // pred_region
          _
        $region44: #{tpu_custom_call.1} parent=11 // pred_fallthru
          _
        // Predicated region
        $region45: #{tpu_custom_call.1} parent=11 // pred_check
          %p310 = pneg %p235
        $region46: #{tpu_custom_call.1} parent=11 // pred_check_branch
          %312 = sbr.rel (%p310) target = $region48
        $region47: #{tpu_custom_call.1} parent=11 // pred_region
          _
        $region48: #{tpu_custom_call.1} parent=11 // pred_fallthru
          _
      $region12: #{tpu_custom_call.1} parent=5 // pred_fallthru
        _
      %p313 = scmp.lt.s32.totalorder %s20, 2
      // Predicated region
      $region49: #{tpu_custom_call.1} parent=5 // pred_check
        %p314 = pneg %p313
      $region50: #{tpu_custom_call.1} parent=5 // pred_check_branch
        %316 = sbr.rel (%p314) target = $region52
      $region51: #{tpu_custom_call.1} parent=5 // pred_region
        // Predicated region
        $region53: #{tpu_custom_call.1} parent=51 // pred_check
          %p317 = pneg %p40
        $region54: #{tpu_custom_call.1} parent=51 // pred_check_branch
          %319 = sbr.rel (%p317) target = $region56
        $region55: #{tpu_custom_call.1} parent=51 // pred_region
          %s320 = smul.u32 2, %s20
          %p321 = scmp.lt.s32.totalorder %s320, 3
          %s322 = scalar_select %p321, %s320, 3
          %s323 = smul.addr %s322, 4
          %s324 = scalar_lea.vmem %s0, %s323
          %s325 = smul.u32 2, %s20
        $region56: #{tpu_custom_call.1} parent=51 // pred_fallthru
          _
      $region52: #{tpu_custom_call.1} parent=5 // pred_fallthru
        _
      %p326 = scmp.le.s32.totalorder 1, %s20
      %p327 = scmp.lt.s32.totalorder %s20, 3
      %p328 = pnand %p326, %p327
      %p329 = pneg %p328
      // Predicated region
      $region57: #{tpu_custom_call.1} parent=5 // pred_check
        _
      $region58: #{tpu_custom_call.1} parent=5 // pred_check_branch
        %331 = sbr.rel (%p328) target = $region60
      $region59: #{tpu_custom_call.1} parent=5 // pred_region
        %s332 = ssub.s32 %s20, 1
        // Predicated region
        $region61: #{tpu_custom_call.1} parent=59 // pred_check
          %p333 = pneg %p172
        $region62: #{tpu_custom_call.1} parent=59 // pred_check_branch
          %335 = sbr.rel (%p333) target = $region64
        $region63: #{tpu_custom_call.1} parent=59 // pred_region
          %336 = dma.done [#allocation5], 2048
        $region64: #{tpu_custom_call.1} parent=59 // pred_fallthru
          _
        %s337 = smul.u32 2, %s25
        %p338 = scmp.lt.s32.totalorder %s337, 3
        %s339 = scalar_select %p338, %s337, 3
        %s340 = smul.addr %s339, 4
        %s341 = scalar_lea.vmem %s0, %s340
        %p342 = pneg %p46
        %p343 = pneg %p43
        %p344 = pneg %p67
        %p345 = pneg %p64
        %p346 = pneg %p88
        %p347 = pneg %p85
        %p348 = pneg %p109
        %p349 = pneg %p106
        %p350 = pneg %p130
        %p351 = pneg %p127
        %p352 = pneg %p151
        %p353 = pneg %p148
        %p354 = pneg %p172
        %p355 = pneg %p169
        %p356 = pneg %p193
        %p357 = pneg %p190
        %p358 = pneg %p214
        %p359 = pneg %p211
        %p360 = pneg %p235
        %p361 = pneg %p232
        %p362 = pneg %p261
        %p363 = pneg %p258
        %s364 = sand.u32 %s248, 1
        %s365 = scalar_lea.sflag [#allocation6], %s364
        %s366 = sand.u32 %s248, 1
        %s367 = smul.addr %s366, 32
        %s368 = scalar_lea.vmem [#allocation7], %s367
        %s369 = smul.u32 2, %s25
        %p370 = scmp.lt.s32.totalorder %s369, 3
        %s371 = scalar_select %p370, %s369, 3
        %s372 = smul.addr %s371, 4
        %s373 = scalar_lea.vmem %s0, %s372
        %s374 = smul.u32 2, %s25
        %s375 = smul.u32 2, %s25
        %v376 = vlaneseq
        %vm377 = vcmp.ge.s32.totalorder %v376, 0
        %vm378 = vcmp.lt.s32.totalorder %v376, 402
        %vm379 = vmand %vm377, %vm378
        %380 = vst.msk [vmem:[#allocation2] sm:$0xf] %vm379, 0.0
        %381 = vst.msk [vmem:[#allocation2 + $0x4] sm:$0xf] %vm379, 0.0
        %382 = vst.msk [vmem:[#allocation2 + $0x8] sm:$0xf] %vm379, 0.0
        %383 = vst.msk [vmem:[#allocation2 + $0xc] sm:$0xf] %vm379, 0.0
        %384 = vst.msk [vmem:[#allocation2 + $0x10] sm:$0xf] %vm379, 0.0
        %385 = vst.msk [vmem:[#allocation2 + $0x14] sm:$0xf] %vm379, 0.0
        %386 = vst.msk [vmem:[#allocation2 + $0x18] sm:$0xf] %vm379, 0.0
        %387 = vst.msk [vmem:[#allocation2 + $0x1c] sm:$0xf] %vm379, 0.0
        %388 = vst.msk [vmem:[#allocation2 + $0x20] sm:$0xf] %vm379, 0.0
        %389 = vst.msk [vmem:[#allocation2 + $0x24] sm:$0xf] %vm379, 0.0
        %390 = vst.msk [vmem:[#allocation2 + $0x28] sm:$0xf] %vm379, 0.0
        %391 = vst.msk [vmem:[#allocation2 + $0x2c] sm:$0xf] %vm379, 0.0
        %392 = vst.msk [vmem:[#allocation2 + $0x30] sm:$0xf] %vm379, 0.0
        %393 = vst.msk [vmem:[#allocation2 + $0x34] sm:$0xf] %vm379, 0.0
        %394 = vst.msk [vmem:[#allocation2 + $0x38] sm:$0xf] %vm379, 0.0
        %395 = vst.msk [vmem:[#allocation2 + $0x3c] sm:$0xf] %vm379, 0.0
        %v396 = vld [vmem:[%s1] ss:$2 sm:$0x3]
        %vm397 = vcmp.gt.f32.partialorder %v396, 0.5
        %s398 = scalar_lea.vmem %s1, 1
        %v399 = vld [vmem:[%s398] ss:$2 sm:$0x3]
        %vm400 = vcmp.gt.f32.partialorder %v399, 0.5
        %v401 = vld [vmem:[%s2] sm:$0xff]
        %v402 = vld [vmem:[%s2 + $0x8] sm:$0xff]
        %v403 = vld [vmem:[%s373] sm:$0x77]
        %v404 = vld [vmem:[%s3] sm:$0xff]
        %v405 = vld [vmem:[%s3 + $0x8] sm:$0xff]
        %407 = vset.pattern.permute.xlu0 0
        %408 = vperm.xlu0 %407, %v404
        %v409 = vpop.permute.xlu0 %408
        %412 = vset.pattern.permute.xlu0 0
        %413 = vperm.xlu0 %412, %v405
        %v414 = vpop.permute.xlu0 %413
        %v417 = vcombine.high %v403, %v403
        %vm418 = vcmask 23552
        %v420 = vsel %vm418, %v401, 0
        %v423 = vsel %vm418, %v402, 0
        %vm425 = vcmask 1042432
        %v426 = vsel %vm425, %v403, 0
        %v428 = vsel %vm425, %v417, 0
        %430 = vmatprep.subr.mxu0 %v428
        %431 = vmatpush1.msra.mxu0 %v426
        %432 = vmatprep.subr.mxu0 0.0
        %433 = vmatpush1.msra.mxu0 0.0
        %434 = vmatprep.subr.mxu0 0.0
        %435 = vmatpush1.msra.mxu0 0.0
        %436 = vmatprep.subr.mxu0 0.0
        %437 = vmatpush1.msra.mxu0 0.0
        %438 = vmatprep.subr.mxu0 0.0
        %439 = vmatpush1.msra.mxu0 0.0
        %440 = vmatprep.subr.mxu0 0.0
        %441 = vmatpush1.msra.mxu0 0.0
        %442 = vmatprep.subr.mxu0 0.0
        %443 = vmatpush1.msra.mxu0 0.0
        %444 = vmatprep.subr.mxu0 0.0
        %445 = vmatpush1.msra.mxu0 0.0
        %446 = vmatprep.subr.mxu0 0.0
        %447 = vmatpush1.msra.mxu0 0.0
        %448 = vmatprep.subr.mxu0 0.0
        %449 = vmatpush1.msra.mxu0 0.0
        %450 = vmatprep.subr.mxu0 0.0
        %451 = vmatpush1.msra.mxu0 0.0
        %452 = vmatprep.subr.mxu0 0.0
        %453 = vmatpush1.msra.mxu0 0.0
        %454 = vmatprep.subr.mxu0 0.0
        %455 = vmatpush1.msra.mxu0 0.0
        %456 = vmatprep.subr.mxu0 0.0
        %457 = vmatpush1.msra.mxu0 0.0
        %458 = vmatprep.subr.mxu0 0.0
        %459 = vmatpush1.msra.mxu0 0.0
        %460 = vmatprep.subr.mxu0 0.0
        %461 = vmatpush1.msra.mxu0 0.0
        %462 = vmatprep.subr.mxu0 0.0
        %463 = vmatpush1.msra.mxu0 0.0
        %464 = vmatprep.subr.mxu0 0.0
        %465 = vmatpush1.msra.mxu0 0.0
        %466 = vmatprep.subr.mxu0 0.0
        %467 = vmatpush1.msra.mxu0 0.0
        %468 = vmatprep.subr.mxu0 0.0
        %469 = vmatpush1.msra.mxu0 0.0
        %470 = vmatprep.subr.mxu0 0.0
        %471 = vmatpush1.msra.mxu0 0.0
        %472 = vmatprep.subr.mxu0 0.0
        %473 = vmatpush1.msra.mxu0 0.0
        %474 = vmatprep.subr.mxu0 0.0
        %475 = vmatpush1.msra.mxu0 0.0
        %476 = vmatprep.subr.mxu0 0.0
        %477 = vmatpush1.msra.mxu0 0.0
        %478 = vmatprep.subr.mxu0 0.0
        %479 = vmatpush1.msra.mxu0 0.0
        %480 = vmatprep.subr.mxu0 0.0
        %481 = vmatpush1.msra.mxu0 0.0
        %482 = vmatprep.subr.mxu0 0.0
        %483 = vmatpush1.msra.mxu0 0.0
        %484 = vmatprep.subr.mxu0 0.0
        %485 = vmatpush1.msra.mxu0 0.0
        %486 = vmatprep.subr.mxu0 0.0
        %487 = vmatpush1.msra.mxu0 0.0
        %488 = vmatprep.subr.mxu0 0.0
        %489 = vmatpush1.msra.mxu0 0.0
        %490 = vmatprep.subr.mxu0 0.0
        %491 = vmatpush1.msra.mxu0 0.0
        %492 = vmatprep.subr.mxu0 0.0
        %493 = vmatpush1.msra.mxu0 0.0
        %494 = vmatprep.mubr.f32.mxu0 0.0
        %495 = vmatmul.mubr.f32.gmra.mrb[0].mxu0 %v420
        %v496 = vpop.f32.mrb[0].mxu0
        %v497 = vadd.f32 %v409, %v496
        %v498 = vpop.f32.mrb[0].mxu0
        %v499 = vadd.f32 %v409, %v498
        %500 = vmatprep.mubr.f32.mxu0 0.0
        %501 = vmatmul.mubr.f32.gmra.mrb[0].mxu0 %v423
        %v502 = vpop.f32.mrb[0].mxu0
        %v503 = vadd.f32 %v414, %v502
        %v504 = vpop.f32.mrb[0].mxu0
        %v505 = vadd.f32 %v414, %v504
        %506 = vdwg.mxu0
        %vm507 = vcmp.gt.f32.partialorder %v497, 0.0
        %vm508 = vcmp.gt.f32.partialorder %v499, 0.0
        %vm509 = vcmp.gt.f32.partialorder %v503, 0.0
        %vm510 = vcmp.gt.f32.partialorder %v505, 0.0
        %v511 = vmul.f32 %v497, 0.01
        %v512 = vmul.f32 %v499, 0.01
        %v513 = vmul.f32 %v503, 0.01
        %v514 = vmul.f32 %v505, 0.01
        %v515 = vsel %vm507, %v497, %v511
        %v516 = vsel %vm508, %v499, %v512
        %v517 = vsel %vm509, %v503, %v513
        %v518 = vsel %vm510, %v505, %v514
        loop: start=0, step=1, limit=4
        $region65: #{tpu_custom_call.1} parent=59 // loop_pre_header
          _
        $region66: #{tpu_custom_call.1} parent=59 // loop_header
          %s520 = sphi 0, %s524
          %p521 = scmp.ge.s32.totalorder %s520, 4
          %v525 = vphi %v515, %v4555
          %v526 = vphi %v516, %v4556
          %v527 = vphi %v517, %v4557
          %v528 = vphi %v518, %v4558
        $region67: #{tpu_custom_call.1} parent=59 // loop_header_branch
          %523 = sbr.rel (%p521) target = $region71
        $region68: #{tpu_custom_call.1} parent=59 // loop_body
          %s529 = smul.u32 %s520, 4
          %s530 = smul.addr %s529, 8
          %s531 = scalar_lea.vmem %s4, %s530
          %v532 = vld [vmem:[%s531] sm:$0xff]
          %v533 = vld [vmem:[%s531 + $0x8] sm:$0xff]
          %v534 = vld [vmem:[%s531 + $0x10] sm:$0xff]
          %v535 = vld [vmem:[%s531 + $0x18] sm:$0xff]
          %s536 = smul.u32 %s520, 16
          %s537 = scalar_lea.vmem %s5, %s536
          %v538 = vld [vmem:[%s537] sm:$0xff]
          %v539 = vld [vmem:[%s537 + $0x8] sm:$0xff]
          %v544 = vcombine.low %v525, %v526
          %v545 = vcombine.high %v525, %v526
          %v547 = vunpack.c.l.s4 1966171168
          %v548 = vunpack.c.0.s8 %v547
          %v549 = vlaneseq
          %v550 = vshrl.u32 %v549, 7
          %v551 = vsub.s32 %v548, %v550
          %v552 = vrot.slane %v544, %v551
          %v554 = vunpack.c.l.s4 1966171168
          %v555 = vunpack.c.0.s8 %v554
          %v556 = vlaneseq
          %v557 = vshrl.u32 %v556, 7
          %v558 = vsub.s32 %v555, %v557
          %v559 = vrot.slane %v545, %v558
          %v560 = vcombine.high %v552, %v552
          %v561 = vcombine.high %v559, %v559
          %v563 = vunpack.c.l.s4 1966171168
          %v564 = vunpack.c.0.s8 %v563
          %v565 = vlaneseq
          %v566 = vshrl.u32 %v565, 7
          %v567 = vsub.s32 %v564, %v566
          %v568 = vrot.slane %v552, %v567
          %v570 = vunpack.c.l.s4 1966171168
          %v571 = vunpack.c.0.s8 %v570
          %v572 = vlaneseq
          %v573 = vshrl.u32 %v572, 7
          %v574 = vsub.s32 %v571, %v573
          %v575 = vrot.slane %v559, %v574
          %v577 = vunpack.c.l.s4 1966171168
          %v578 = vunpack.c.0.s8 %v577
          %v579 = vlaneseq
          %v580 = vshrl.u32 %v579, 7
          %v581 = vsub.s32 %v578, %v580
          %v582 = vrot.slane %v560, %v581
          %v584 = vunpack.c.l.s4 1966171168
          %v585 = vunpack.c.0.s8 %v584
          %v586 = vlaneseq
          %v587 = vshrl.u32 %v586, 7
          %v588 = vsub.s32 %v585, %v587
          %v589 = vrot.slane %v561, %v588
          %v590 = vcombine.high %v568, %v568
          %v591 = vcombine.high %v575, %v575
          %v592 = vcombine.high %v582, %v582
          %v593 = vcombine.high %v589, %v589
          %v594 = vcombine.low %v527, %v528
          %v595 = vcombine.high %v527, %v528
          %v597 = vunpack.c.l.s4 1966171168
          %v598 = vunpack.c.0.s8 %v597
          %v599 = vlaneseq
          %v600 = vshrl.u32 %v599, 7
          %v601 = vsub.s32 %v598, %v600
          %v602 = vrot.slane %v594, %v601
          %v604 = vunpack.c.l.s4 1966171168
          %v605 = vunpack.c.0.s8 %v604
          %v606 = vlaneseq
          %v607 = vshrl.u32 %v606, 7
          %v608 = vsub.s32 %v605, %v607
          %v609 = vrot.slane %v595, %v608
          %v610 = vcombine.high %v602, %v602
          %v611 = vcombine.high %v609, %v609
          %v613 = vunpack.c.l.s4 1966171168
          %v614 = vunpack.c.0.s8 %v613
          %v615 = vlaneseq
          %v616 = vshrl.u32 %v615, 7
          %v617 = vsub.s32 %v614, %v616
          %v618 = vrot.slane %v602, %v617
          %v620 = vunpack.c.l.s4 1966171168
          %v621 = vunpack.c.0.s8 %v620
          %v622 = vlaneseq
          %v623 = vshrl.u32 %v622, 7
          %v624 = vsub.s32 %v621, %v623
          %v625 = vrot.slane %v609, %v624
          %v627 = vunpack.c.l.s4 1966171168
          %v628 = vunpack.c.0.s8 %v627
          %v629 = vlaneseq
          %v630 = vshrl.u32 %v629, 7
          %v631 = vsub.s32 %v628, %v630
          %v632 = vrot.slane %v610, %v631
          %v634 = vunpack.c.l.s4 1966171168
          %v635 = vunpack.c.0.s8 %v634
          %v636 = vlaneseq
          %v637 = vshrl.u32 %v636, 7
          %v638 = vsub.s32 %v635, %v637
          %v639 = vrot.slane %v611, %v638
          %v640 = vcombine.high %v618, %v618
          %v641 = vcombine.high %v625, %v625
          %v642 = vcombine.high %v632, %v632
          %v643 = vcombine.high %v639, %v639
          %vm660 = vcmp.lt.s32.totalorder %v376, 256
          %vm661 = vmand %vm377, %vm660
          %662 = vst.msk [vmem:[#allocation2 + $0x1] sm:$0x3] %vm661, %v568
          %663 = vst.msk [vmem:[#allocation2 + $0x5] sm:$0x3] %vm661, %v582
          %664 = vst.msk [vmem:[#allocation2 + $0x9] sm:$0x3] %vm661, %v590
          %665 = vst.msk [vmem:[#allocation2 + $0xd] sm:$0x3] %vm661, %v592
          %666 = vst.msk [vmem:[#allocation2 + $0x11] sm:$0x3] %vm661, %v575
          %667 = vst.msk [vmem:[#allocation2 + $0x15] sm:$0x3] %vm661, %v589
          %668 = vst.msk [vmem:[#allocation2 + $0x19] sm:$0x3] %vm661, %v591
          %669 = vst.msk [vmem:[#allocation2 + $0x1d] sm:$0x3] %vm661, %v593
          %670 = vst.msk [vmem:[#allocation2 + $0x21] sm:$0x3] %vm661, %v618
          %671 = vst.msk [vmem:[#allocation2 + $0x25] sm:$0x3] %vm661, %v632
          %672 = vst.msk [vmem:[#allocation2 + $0x29] sm:$0x3] %vm661, %v640
          %673 = vst.msk [vmem:[#allocation2 + $0x2d] sm:$0x3] %vm661, %v642
          %674 = vst.msk [vmem:[#allocation2 + $0x31] sm:$0x3] %vm661, %v625
          %675 = vst.msk [vmem:[#allocation2 + $0x35] sm:$0x3] %vm661, %v639
          %676 = vst.msk [vmem:[#allocation2 + $0x39] sm:$0x3] %vm661, %v641
          %677 = vst.msk [vmem:[#allocation2 + $0x3d] sm:$0x3] %vm661, %v643
          %v678 = vld [vmem:[#allocation2] sm:$0x7]
          %v679 = vld [vmem:[#allocation2 + $0x4] sm:$0x7]
          %v680 = vld [vmem:[#allocation2 + $0x8] sm:$0x7]
          %v681 = vld [vmem:[#allocation2 + $0xc] sm:$0x7]
          %v682 = vld [vmem:[#allocation2 + $0x10] sm:$0x7]
          %v683 = vld [vmem:[#allocation2 + $0x14] sm:$0x7]
          %v684 = vld [vmem:[#allocation2 + $0x18] sm:$0x7]
          %v685 = vld [vmem:[#allocation2 + $0x1c] sm:$0x7]
          %v686 = vld [vmem:[#allocation2 + $0x20] sm:$0x7]
          %v687 = vld [vmem:[#allocation2 + $0x24] sm:$0x7]
          %v688 = vld [vmem:[#allocation2 + $0x28] sm:$0x7]
          %v689 = vld [vmem:[#allocation2 + $0x2c] sm:$0x7]
          %v690 = vld [vmem:[#allocation2 + $0x30] sm:$0x7]
          %v691 = vld [vmem:[#allocation2 + $0x34] sm:$0x7]
          %v692 = vld [vmem:[#allocation2 + $0x38] sm:$0x7]
          %v693 = vld [vmem:[#allocation2 + $0x3c] sm:$0x7]
          %v694 = vsel %vm397, 1, 0
          %v695 = vlaneseq
          %v696 = vshrl.u32 %v695, 7
          %v697 = vsub.s32 0, %v696
          %v698 = vrot.slane %v694, %v697
          %v699 = vlaneseq
          %v700 = vshrl.u32 %v699, 7
          %v701 = vsub.s32 1, %v700
          %v702 = vrot.slane %v694, %v701
          %vm703 = vcmp.eq.s32.totalorder %v698, 1
          %vm704 = vcmp.eq.s32.totalorder %v702, 1
          %v721 = vcombine.low %v678, %v679
          %v722 = vcombine.low %v680, %v681
          %v723 = vcombine.low %v682, %v683
          %v724 = vcombine.low %v684, %v685
          %v726 = vunpack.c.l.s4 1966171168
          %v727 = vunpack.c.0.s8 %v726
          %v728 = vlaneseq
          %v729 = vshrl.u32 %v728, 7
          %v730 = vsub.s32 %v727, %v729
          %v731 = vrot.slane %v721, %v730
          %v733 = vunpack.c.l.s4 1966171168
          %v734 = vunpack.c.0.s8 %v733
          %v735 = vlaneseq
          %v736 = vshrl.u32 %v735, 7
          %v737 = vsub.s32 %v734, %v736
          %v738 = vrot.slane %v722, %v737
          %v740 = vunpack.c.l.s4 1966171168
          %v741 = vunpack.c.0.s8 %v740
          %v742 = vlaneseq
          %v743 = vshrl.u32 %v742, 7
          %v744 = vsub.s32 %v741, %v743
          %v745 = vrot.slane %v723, %v744
          %v747 = vunpack.c.l.s4 1966171168
          %v748 = vunpack.c.0.s8 %v747
          %v749 = vlaneseq
          %v750 = vshrl.u32 %v749, 7
          %v751 = vsub.s32 %v748, %v750
          %v752 = vrot.slane %v724, %v751
          %v753 = vcombine.low %v731, %v738
          %v754 = vcombine.high %v731, %v738
          %v755 = vcombine.low %v745, %v752
          %v756 = vcombine.high %v745, %v752
          %v758 = vunpack.c.l.s4 1966171168
          %v759 = vunpack.c.0.s8 %v758
          %v760 = vlaneseq
          %v761 = vshrl.u32 %v760, 7
          %v762 = vsub.s32 %v759, %v761
          %v763 = vrot.slane %v753, %v762
          %v765 = vunpack.c.l.s4 1966171168
          %v766 = vunpack.c.0.s8 %v765
          %v767 = vlaneseq
          %v768 = vshrl.u32 %v767, 7
          %v769 = vsub.s32 %v766, %v768
          %v770 = vrot.slane %v754, %v769
          %v772 = vunpack.c.l.s4 1966171168
          %v773 = vunpack.c.0.s8 %v772
          %v774 = vlaneseq
          %v775 = vshrl.u32 %v774, 7
          %v776 = vsub.s32 %v773, %v775
          %v777 = vrot.slane %v755, %v776
          %v779 = vunpack.c.l.s4 1966171168
          %v780 = vunpack.c.0.s8 %v779
          %v781 = vlaneseq
          %v782 = vshrl.u32 %v781, 7
          %v783 = vsub.s32 %v780, %v782
          %v784 = vrot.slane %v756, %v783
          %v785 = vcombine.low %v763, %v777
          %v786 = vcombine.high %v763, %v777
          %v787 = vcombine.low %v770, %v784
          %v788 = vcombine.low %v686, %v687
          %v789 = vcombine.low %v688, %v689
          %v790 = vcombine.low %v690, %v691
          %v791 = vcombine.low %v692, %v693
          %v793 = vunpack.c.l.s4 1966171168
          %v794 = vunpack.c.0.s8 %v793
          %v795 = vlaneseq
          %v796 = vshrl.u32 %v795, 7
          %v797 = vsub.s32 %v794, %v796
          %v798 = vrot.slane %v788, %v797
          %v800 = vunpack.c.l.s4 1966171168
          %v801 = vunpack.c.0.s8 %v800
          %v802 = vlaneseq
          %v803 = vshrl.u32 %v802, 7
          %v804 = vsub.s32 %v801, %v803
          %v805 = vrot.slane %v789, %v804
          %v807 = vunpack.c.l.s4 1966171168
          %v808 = vunpack.c.0.s8 %v807
          %v809 = vlaneseq
          %v810 = vshrl.u32 %v809, 7
          %v811 = vsub.s32 %v808, %v810
          %v812 = vrot.slane %v790, %v811
          %v814 = vunpack.c.l.s4 1966171168
          %v815 = vunpack.c.0.s8 %v814
          %v816 = vlaneseq
          %v817 = vshrl.u32 %v816, 7
          %v818 = vsub.s32 %v815, %v817
          %v819 = vrot.slane %v791, %v818
          %v820 = vcombine.low %v798, %v805
          %v821 = vcombine.high %v798, %v805
          %v822 = vcombine.low %v812, %v819
          %v823 = vcombine.high %v812, %v819
          %v825 = vunpack.c.l.s4 1966171168
          %v826 = vunpack.c.0.s8 %v825
          %v827 = vlaneseq
          %v828 = vshrl.u32 %v827, 7
          %v829 = vsub.s32 %v826, %v828
          %v830 = vrot.slane %v820, %v829
          %v832 = vunpack.c.l.s4 1966171168
          %v833 = vunpack.c.0.s8 %v832
          %v834 = vlaneseq
          %v835 = vshrl.u32 %v834, 7
          %v836 = vsub.s32 %v833, %v835
          %v837 = vrot.slane %v821, %v836
          %v839 = vunpack.c.l.s4 1966171168
          %v840 = vunpack.c.0.s8 %v839
          %v841 = vlaneseq
          %v842 = vshrl.u32 %v841, 7
          %v843 = vsub.s32 %v840, %v842
          %v844 = vrot.slane %v822, %v843
          %v846 = vunpack.c.l.s4 1966171168
          %v847 = vunpack.c.0.s8 %v846
          %v848 = vlaneseq
          %v849 = vshrl.u32 %v848, 7
          %v850 = vsub.s32 %v847, %v849
          %v851 = vrot.slane %v823, %v850
          %v852 = vcombine.low %v830, %v844
          %v853 = vcombine.high %v830, %v844
          %v854 = vcombine.low %v837, %v851
          %855 = vrot.lane.b32.xlu0 %v785, 17
          %v856 = vpop.permute.xlu0 %855
          %857 = vrot.lane.b32.xlu0 %v787, 17
          %v858 = vpop.permute.xlu0 %857
          %859 = vrot.lane.b32.xlu0 %v786, 17
          %v860 = vpop.permute.xlu0 %859
          %861 = vrot.lane.b32.xlu0 %v852, 17
          %v862 = vpop.permute.xlu0 %861
          %863 = vrot.lane.b32.xlu0 %v854, 17
          %v864 = vpop.permute.xlu0 %863
          %865 = vrot.lane.b32.xlu0 %v853, 17
          %v866 = vpop.permute.xlu0 %865
          %vm867 = vcmask 138240
          %v868 = vsel %vm867, %v856, %v858
          %v869 = vsel %vm867, %v858, %v860
          %v870 = vsel %vm867, %v862, %v864
          %v871 = vsel %vm867, %v864, %v866
          %v876 = vsel %vm703, %v868, 0.0
          %v877 = vsel %vm704, %v869, 0.0
          %v878 = vsel %vm703, %v870, 0.0
          %v879 = vsel %vm704, %v871, 0.0
          %880 = vst [vmem:[#allocation3] sm:$0xff] %v876
          %881 = vst [vmem:[#allocation3 + $0x8] sm:$0xff] %v877
          %882 = vst [vmem:[#allocation3 + $0x10] sm:$0xff] %v878
          %883 = vst [vmem:[#allocation3 + $0x18] sm:$0xff] %v879
          %v884 = vld [vmem:[#allocation2] sm:$0x7]
          %v885 = vld [vmem:[#allocation2 + $0x4] sm:$0x7]
          %v886 = vld [vmem:[#allocation2 + $0x8] sm:$0x7]
          %v887 = vld [vmem:[#allocation2 + $0xc] sm:$0x7]
          %v888 = vld [vmem:[#allocation2 + $0x10] sm:$0x7]
          %v889 = vld [vmem:[#allocation2 + $0x14] sm:$0x7]
          %v890 = vld [vmem:[#allocation2 + $0x18] sm:$0x7]
          %v891 = vld [vmem:[#allocation2 + $0x1c] sm:$0x7]
          %v892 = vld [vmem:[#allocation2 + $0x20] sm:$0x7]
          %v893 = vld [vmem:[#allocation2 + $0x24] sm:$0x7]
          %v894 = vld [vmem:[#allocation2 + $0x28] sm:$0x7]
          %v895 = vld [vmem:[#allocation2 + $0x2c] sm:$0x7]
          %v896 = vld [vmem:[#allocation2 + $0x30] sm:$0x7]
          %v897 = vld [vmem:[#allocation2 + $0x34] sm:$0x7]
          %v898 = vld [vmem:[#allocation2 + $0x38] sm:$0x7]
          %v899 = vld [vmem:[#allocation2 + $0x3c] sm:$0x7]
          %v916 = vcombine.low %v884, %v885
          %v917 = vcombine.low %v886, %v887
          %v918 = vcombine.low %v888, %v889
          %v919 = vcombine.low %v890, %v891
          %v921 = vunpack.c.l.s4 1966171168
          %v922 = vunpack.c.0.s8 %v921
          %v923 = vlaneseq
          %v924 = vshrl.u32 %v923, 7
          %v925 = vsub.s32 %v922, %v924
          %v926 = vrot.slane %v916, %v925
          %v928 = vunpack.c.l.s4 1966171168
          %v929 = vunpack.c.0.s8 %v928
          %v930 = vlaneseq
          %v931 = vshrl.u32 %v930, 7
          %v932 = vsub.s32 %v929, %v931
          %v933 = vrot.slane %v917, %v932
          %v935 = vunpack.c.l.s4 1966171168
          %v936 = vunpack.c.0.s8 %v935
          %v937 = vlaneseq
          %v938 = vshrl.u32 %v937, 7
          %v939 = vsub.s32 %v936, %v938
          %v940 = vrot.slane %v918, %v939
          %v942 = vunpack.c.l.s4 1966171168
          %v943 = vunpack.c.0.s8 %v942
          %v944 = vlaneseq
          %v945 = vshrl.u32 %v944, 7
          %v946 = vsub.s32 %v943, %v945
          %v947 = vrot.slane %v919, %v946
          %v948 = vcombine.low %v926, %v933
          %v949 = vcombine.high %v926, %v933
          %v950 = vcombine.low %v940, %v947
          %v951 = vcombine.high %v940, %v947
          %v953 = vunpack.c.l.s4 1966171168
          %v954 = vunpack.c.0.s8 %v953
          %v955 = vlaneseq
          %v956 = vshrl.u32 %v955, 7
          %v957 = vsub.s32 %v954, %v956
          %v958 = vrot.slane %v948, %v957
          %v960 = vunpack.c.l.s4 1966171168
          %v961 = vunpack.c.0.s8 %v960
          %v962 = vlaneseq
          %v963 = vshrl.u32 %v962, 7
          %v964 = vsub.s32 %v961, %v963
          %v965 = vrot.slane %v949, %v964
          %v967 = vunpack.c.l.s4 1966171168
          %v968 = vunpack.c.0.s8 %v967
          %v969 = vlaneseq
          %v970 = vshrl.u32 %v969, 7
          %v971 = vsub.s32 %v968, %v970
          %v972 = vrot.slane %v950, %v971
          %v974 = vunpack.c.l.s4 1966171168
          %v975 = vunpack.c.0.s8 %v974
          %v976 = vlaneseq
          %v977 = vshrl.u32 %v976, 7
          %v978 = vsub.s32 %v975, %v977
          %v979 = vrot.slane %v951, %v978
          %v980 = vcombine.low %v958, %v972
          %v981 = vcombine.high %v958, %v972
          %v982 = vcombine.low %v965, %v979
          %v983 = vcombine.low %v892, %v893
          %v984 = vcombine.low %v894, %v895
          %v985 = vcombine.low %v896, %v897
          %v986 = vcombine.low %v898, %v899
          %v988 = vunpack.c.l.s4 1966171168
          %v989 = vunpack.c.0.s8 %v988
          %v990 = vlaneseq
          %v991 = vshrl.u32 %v990, 7
          %v992 = vsub.s32 %v989, %v991
          %v993 = vrot.slane %v983, %v992
          %v995 = vunpack.c.l.s4 1966171168
          %v996 = vunpack.c.0.s8 %v995
          %v997 = vlaneseq
          %v998 = vshrl.u32 %v997, 7
          %v999 = vsub.s32 %v996, %v998
          %v1000 = vrot.slane %v984, %v999
          %v1002 = vunpack.c.l.s4 1966171168
          %v1003 = vunpack.c.0.s8 %v1002
          %v1004 = vlaneseq
          %v1005 = vshrl.u32 %v1004, 7
          %v1006 = vsub.s32 %v1003, %v1005
          %v1007 = vrot.slane %v985, %v1006
          %v1009 = vunpack.c.l.s4 1966171168
          %v1010 = vunpack.c.0.s8 %v1009
          %v1011 = vlaneseq
          %v1012 = vshrl.u32 %v1011, 7
          %v1013 = vsub.s32 %v1010, %v1012
          %v1014 = vrot.slane %v986, %v1013
          %v1015 = vcombine.low %v993, %v1000
          %v1016 = vcombine.high %v993, %v1000
          %v1017 = vcombine.low %v1007, %v1014
          %v1018 = vcombine.high %v1007, %v1014
          %v1020 = vunpack.c.l.s4 1966171168
          %v1021 = vunpack.c.0.s8 %v1020
          %v1022 = vlaneseq
          %v1023 = vshrl.u32 %v1022, 7
          %v1024 = vsub.s32 %v1021, %v1023
          %v1025 = vrot.slane %v1015, %v1024
          %v1027 = vunpack.c.l.s4 1966171168
          %v1028 = vunpack.c.0.s8 %v1027
          %v1029 = vlaneseq
          %v1030 = vshrl.u32 %v1029, 7
          %v1031 = vsub.s32 %v1028, %v1030
          %v1032 = vrot.slane %v1016, %v1031
          %v1034 = vunpack.c.l.s4 1966171168
          %v1035 = vunpack.c.0.s8 %v1034
          %v1036 = vlaneseq
          %v1037 = vshrl.u32 %v1036, 7
          %v1038 = vsub.s32 %v1035, %v1037
          %v1039 = vrot.slane %v1017, %v1038
          %v1041 = vunpack.c.l.s4 1966171168
          %v1042 = vunpack.c.0.s8 %v1041
          %v1043 = vlaneseq
          %v1044 = vshrl.u32 %v1043, 7
          %v1045 = vsub.s32 %v1042, %v1044
          %v1046 = vrot.slane %v1018, %v1045
          %v1047 = vcombine.low %v1025, %v1039
          %v1048 = vcombine.high %v1025, %v1039
          %v1049 = vcombine.low %v1032, %v1046
          %1050 = vrot.lane.b32.xlu0 %v980, 16
          %v1051 = vpop.permute.xlu0 %1050
          %1052 = vrot.lane.b32.xlu0 %v982, 16
          %v1053 = vpop.permute.xlu0 %1052
          %1054 = vrot.lane.b32.xlu0 %v981, 16
          %v1055 = vpop.permute.xlu0 %1054
          %1056 = vrot.lane.b32.xlu0 %v1047, 16
          %v1057 = vpop.permute.xlu0 %1056
          %1058 = vrot.lane.b32.xlu0 %v1049, 16
          %v1059 = vpop.permute.xlu0 %1058
          %1060 = vrot.lane.b32.xlu0 %v1048, 16
          %v1061 = vpop.permute.xlu0 %1060
          %vm1062 = vcmask 130048
          %v1063 = vsel %vm1062, %v1051, %v1053
          %v1064 = vsel %vm1062, %v1053, %v1055
          %v1065 = vsel %vm1062, %v1057, %v1059
          %v1066 = vsel %vm1062, %v1059, %v1061
          %1071 = vst [vmem:[#allocation3 + $0x20] sm:$0xff] %v1063
          %1072 = vst [vmem:[#allocation3 + $0x28] sm:$0xff] %v1064
          %1073 = vst [vmem:[#allocation3 + $0x30] sm:$0xff] %v1065
          %1074 = vst [vmem:[#allocation3 + $0x38] sm:$0xff] %v1066
          %v1075 = vld [vmem:[#allocation2] sm:$0x7]
          %v1076 = vld [vmem:[#allocation2 + $0x4] sm:$0x7]
          %v1077 = vld [vmem:[#allocation2 + $0x8] sm:$0x7]
          %v1078 = vld [vmem:[#allocation2 + $0xc] sm:$0x7]
          %v1079 = vld [vmem:[#allocation2 + $0x10] sm:$0x7]
          %v1080 = vld [vmem:[#allocation2 + $0x14] sm:$0x7]
          %v1081 = vld [vmem:[#allocation2 + $0x18] sm:$0x7]
          %v1082 = vld [vmem:[#allocation2 + $0x1c] sm:$0x7]
          %v1083 = vld [vmem:[#allocation2 + $0x20] sm:$0x7]
          %v1084 = vld [vmem:[#allocation2 + $0x24] sm:$0x7]
          %v1085 = vld [vmem:[#allocation2 + $0x28] sm:$0x7]
          %v1086 = vld [vmem:[#allocation2 + $0x2c] sm:$0x7]
          %v1087 = vld [vmem:[#allocation2 + $0x30] sm:$0x7]
          %v1088 = vld [vmem:[#allocation2 + $0x34] sm:$0x7]
          %v1089 = vld [vmem:[#allocation2 + $0x38] sm:$0x7]
          %v1090 = vld [vmem:[#allocation2 + $0x3c] sm:$0x7]
          %v1091 = vsel %vm400, 1, 0
          %v1092 = vlaneseq
          %v1093 = vshrl.u32 %v1092, 7
          %v1094 = vsub.s32 0, %v1093
          %v1095 = vrot.slane %v1091, %v1094
          %v1096 = vlaneseq
          %v1097 = vshrl.u32 %v1096, 7
          %v1098 = vsub.s32 1, %v1097
          %v1099 = vrot.slane %v1091, %v1098
          %vm1100 = vcmp.eq.s32.totalorder %v1095, 1
          %vm1101 = vcmp.eq.s32.totalorder %v1099, 1
          %v1118 = vcombine.low %v1075, %v1076
          %v1119 = vcombine.low %v1077, %v1078
          %v1120 = vcombine.low %v1079, %v1080
          %v1121 = vcombine.low %v1081, %v1082
          %v1123 = vunpack.c.l.s4 1966171168
          %v1124 = vunpack.c.0.s8 %v1123
          %v1125 = vlaneseq
          %v1126 = vshrl.u32 %v1125, 7
          %v1127 = vsub.s32 %v1124, %v1126
          %v1128 = vrot.slane %v1118, %v1127
          %v1130 = vunpack.c.l.s4 1966171168
          %v1131 = vunpack.c.0.s8 %v1130
          %v1132 = vlaneseq
          %v1133 = vshrl.u32 %v1132, 7
          %v1134 = vsub.s32 %v1131, %v1133
          %v1135 = vrot.slane %v1119, %v1134
          %v1137 = vunpack.c.l.s4 1966171168
          %v1138 = vunpack.c.0.s8 %v1137
          %v1139 = vlaneseq
          %v1140 = vshrl.u32 %v1139, 7
          %v1141 = vsub.s32 %v1138, %v1140
          %v1142 = vrot.slane %v1120, %v1141
          %v1144 = vunpack.c.l.s4 1966171168
          %v1145 = vunpack.c.0.s8 %v1144
          %v1146 = vlaneseq
          %v1147 = vshrl.u32 %v1146, 7
          %v1148 = vsub.s32 %v1145, %v1147
          %v1149 = vrot.slane %v1121, %v1148
          %v1150 = vcombine.low %v1128, %v1135
          %v1151 = vcombine.high %v1128, %v1135
          %v1152 = vcombine.low %v1142, %v1149
          %v1153 = vcombine.high %v1142, %v1149
          %v1155 = vunpack.c.l.s4 1966171168
          %v1156 = vunpack.c.0.s8 %v1155
          %v1157 = vlaneseq
          %v1158 = vshrl.u32 %v1157, 7
          %v1159 = vsub.s32 %v1156, %v1158
          %v1160 = vrot.slane %v1150, %v1159
          %v1162 = vunpack.c.l.s4 1966171168
          %v1163 = vunpack.c.0.s8 %v1162
          %v1164 = vlaneseq
          %v1165 = vshrl.u32 %v1164, 7
          %v1166 = vsub.s32 %v1163, %v1165
          %v1167 = vrot.slane %v1151, %v1166
          %v1169 = vunpack.c.l.s4 1966171168
          %v1170 = vunpack.c.0.s8 %v1169
          %v1171 = vlaneseq
          %v1172 = vshrl.u32 %v1171, 7
          %v1173 = vsub.s32 %v1170, %v1172
          %v1174 = vrot.slane %v1152, %v1173
          %v1176 = vunpack.c.l.s4 1966171168
          %v1177 = vunpack.c.0.s8 %v1176
          %v1178 = vlaneseq
          %v1179 = vshrl.u32 %v1178, 7
          %v1180 = vsub.s32 %v1177, %v1179
          %v1181 = vrot.slane %v1153, %v1180
          %v1182 = vcombine.low %v1160, %v1174
          %v1183 = vcombine.high %v1160, %v1174
          %v1184 = vcombine.low %v1167, %v1181
          %v1185 = vcombine.low %v1083, %v1084
          %v1186 = vcombine.low %v1085, %v1086
          %v1187 = vcombine.low %v1087, %v1088
          %v1188 = vcombine.low %v1089, %v1090
          %v1190 = vunpack.c.l.s4 1966171168
          %v1191 = vunpack.c.0.s8 %v1190
          %v1192 = vlaneseq
          %v1193 = vshrl.u32 %v1192, 7
          %v1194 = vsub.s32 %v1191, %v1193
          %v1195 = vrot.slane %v1185, %v1194
          %v1197 = vunpack.c.l.s4 1966171168
          %v1198 = vunpack.c.0.s8 %v1197
          %v1199 = vlaneseq
          %v1200 = vshrl.u32 %v1199, 7
          %v1201 = vsub.s32 %v1198, %v1200
          %v1202 = vrot.slane %v1186, %v1201
          %v1204 = vunpack.c.l.s4 1966171168
          %v1205 = vunpack.c.0.s8 %v1204
          %v1206 = vlaneseq
          %v1207 = vshrl.u32 %v1206, 7
          %v1208 = vsub.s32 %v1205, %v1207
          %v1209 = vrot.slane %v1187, %v1208
          %v1211 = vunpack.c.l.s4 1966171168
          %v1212 = vunpack.c.0.s8 %v1211
          %v1213 = vlaneseq
          %v1214 = vshrl.u32 %v1213, 7
          %v1215 = vsub.s32 %v1212, %v1214
          %v1216 = vrot.slane %v1188, %v1215
          %v1217 = vcombine.low %v1195, %v1202
          %v1218 = vcombine.high %v1195, %v1202
          %v1219 = vcombine.low %v1209, %v1216
          %v1220 = vcombine.high %v1209, %v1216
          %v1222 = vunpack.c.l.s4 1966171168
          %v1223 = vunpack.c.0.s8 %v1222
          %v1224 = vlaneseq
          %v1225 = vshrl.u32 %v1224, 7
          %v1226 = vsub.s32 %v1223, %v1225
          %v1227 = vrot.slane %v1217, %v1226
          %v1229 = vunpack.c.l.s4 1966171168
          %v1230 = vunpack.c.0.s8 %v1229
          %v1231 = vlaneseq
          %v1232 = vshrl.u32 %v1231, 7
          %v1233 = vsub.s32 %v1230, %v1232
          %v1234 = vrot.slane %v1218, %v1233
          %v1236 = vunpack.c.l.s4 1966171168
          %v1237 = vunpack.c.0.s8 %v1236
          %v1238 = vlaneseq
          %v1239 = vshrl.u32 %v1238, 7
          %v1240 = vsub.s32 %v1237, %v1239
          %v1241 = vrot.slane %v1219, %v1240
          %v1243 = vunpack.c.l.s4 1966171168
          %v1244 = vunpack.c.0.s8 %v1243
          %v1245 = vlaneseq
          %v1246 = vshrl.u32 %v1245, 7
          %v1247 = vsub.s32 %v1244, %v1246
          %v1248 = vrot.slane %v1220, %v1247
          %v1249 = vcombine.low %v1227, %v1241
          %v1250 = vcombine.high %v1227, %v1241
          %v1251 = vcombine.low %v1234, %v1248
          %1252 = vrot.lane.b32.xlu0 %v1182, 15
          %v1253 = vpop.permute.xlu0 %1252
          %1254 = vrot.lane.b32.xlu0 %v1184, 15
          %v1255 = vpop.permute.xlu0 %1254
          %1256 = vrot.lane.b32.xlu0 %v1183, 15
          %v1257 = vpop.permute.xlu0 %1256
          %1258 = vrot.lane.b32.xlu0 %v1249, 15
          %v1259 = vpop.permute.xlu0 %1258
          %1260 = vrot.lane.b32.xlu0 %v1251, 15
          %v1261 = vpop.permute.xlu0 %1260
          %1262 = vrot.lane.b32.xlu0 %v1250, 15
          %v1263 = vpop.permute.xlu0 %1262
          %vm1264 = vcmask 121856
          %v1265 = vsel %vm1264, %v1253, %v1255
          %v1266 = vsel %vm1264, %v1255, %v1257
          %v1267 = vsel %vm1264, %v1259, %v1261
          %v1268 = vsel %vm1264, %v1261, %v1263
          %v1273 = vsel %vm1100, %v1265, 0.0
          %v1274 = vsel %vm1101, %v1266, 0.0
          %v1275 = vsel %vm1100, %v1267, 0.0
          %v1276 = vsel %vm1101, %v1268, 0.0
          %1277 = vst [vmem:[#allocation3 + $0x40] sm:$0xff] %v1273
          %1278 = vst [vmem:[#allocation3 + $0x48] sm:$0xff] %v1274
          %1279 = vst [vmem:[#allocation3 + $0x50] sm:$0xff] %v1275
          %1280 = vst [vmem:[#allocation3 + $0x58] sm:$0xff] %v1276
          %v1281 = vld [vmem:[#allocation2] sm:$0x7]
          %v1282 = vld [vmem:[#allocation2 + $0x4] sm:$0x7]
          %v1283 = vld [vmem:[#allocation2 + $0x8] sm:$0x7]
          %v1284 = vld [vmem:[#allocation2 + $0xc] sm:$0x7]
          %v1285 = vld [vmem:[#allocation2 + $0x10] sm:$0x7]
          %v1286 = vld [vmem:[#allocation2 + $0x14] sm:$0x7]
          %v1287 = vld [vmem:[#allocation2 + $0x18] sm:$0x7]
          %v1288 = vld [vmem:[#allocation2 + $0x1c] sm:$0x7]
          %v1289 = vld [vmem:[#allocation2 + $0x20] sm:$0x7]
          %v1290 = vld [vmem:[#allocation2 + $0x24] sm:$0x7]
          %v1291 = vld [vmem:[#allocation2 + $0x28] sm:$0x7]
          %v1292 = vld [vmem:[#allocation2 + $0x2c] sm:$0x7]
          %v1293 = vld [vmem:[#allocation2 + $0x30] sm:$0x7]
          %v1294 = vld [vmem:[#allocation2 + $0x34] sm:$0x7]
          %v1295 = vld [vmem:[#allocation2 + $0x38] sm:$0x7]
          %v1296 = vld [vmem:[#allocation2 + $0x3c] sm:$0x7]
          %v1313 = vcombine.low %v1281, %v1282
          %v1314 = vcombine.low %v1283, %v1284
          %v1315 = vcombine.low %v1285, %v1286
          %v1316 = vcombine.low %v1287, %v1288
          %v1318 = vunpack.c.l.s4 1966171168
          %v1319 = vunpack.c.0.s8 %v1318
          %v1320 = vlaneseq
          %v1321 = vshrl.u32 %v1320, 7
          %v1322 = vsub.s32 %v1319, %v1321
          %v1323 = vrot.slane %v1313, %v1322
          %v1325 = vunpack.c.l.s4 1966171168
          %v1326 = vunpack.c.0.s8 %v1325
          %v1327 = vlaneseq
          %v1328 = vshrl.u32 %v1327, 7
          %v1329 = vsub.s32 %v1326, %v1328
          %v1330 = vrot.slane %v1314, %v1329
          %v1332 = vunpack.c.l.s4 1966171168
          %v1333 = vunpack.c.0.s8 %v1332
          %v1334 = vlaneseq
          %v1335 = vshrl.u32 %v1334, 7
          %v1336 = vsub.s32 %v1333, %v1335
          %v1337 = vrot.slane %v1315, %v1336
          %v1339 = vunpack.c.l.s4 1966171168
          %v1340 = vunpack.c.0.s8 %v1339
          %v1341 = vlaneseq
          %v1342 = vshrl.u32 %v1341, 7
          %v1343 = vsub.s32 %v1340, %v1342
          %v1344 = vrot.slane %v1316, %v1343
          %v1345 = vcombine.low %v1323, %v1330
          %v1346 = vcombine.high %v1323, %v1330
          %v1347 = vcombine.low %v1337, %v1344
          %v1348 = vcombine.high %v1337, %v1344
          %v1350 = vunpack.c.l.s4 1966171168
          %v1351 = vunpack.c.0.s8 %v1350
          %v1352 = vlaneseq
          %v1353 = vshrl.u32 %v1352, 7
          %v1354 = vsub.s32 %v1351, %v1353
          %v1355 = vrot.slane %v1345, %v1354
          %v1357 = vunpack.c.l.s4 1966171168
          %v1358 = vunpack.c.0.s8 %v1357
          %v1359 = vlaneseq
          %v1360 = vshrl.u32 %v1359, 7
          %v1361 = vsub.s32 %v1358, %v1360
          %v1362 = vrot.slane %v1346, %v1361
          %v1364 = vunpack.c.l.s4 1966171168
          %v1365 = vunpack.c.0.s8 %v1364
          %v1366 = vlaneseq
          %v1367 = vshrl.u32 %v1366, 7
          %v1368 = vsub.s32 %v1365, %v1367
          %v1369 = vrot.slane %v1347, %v1368
          %v1371 = vunpack.c.l.s4 1966171168
          %v1372 = vunpack.c.0.s8 %v1371
          %v1373 = vlaneseq
          %v1374 = vshrl.u32 %v1373, 7
          %v1375 = vsub.s32 %v1372, %v1374
          %v1376 = vrot.slane %v1348, %v1375
          %v1377 = vcombine.low %v1355, %v1369
          %v1378 = vcombine.high %v1355, %v1369
          %v1379 = vcombine.low %v1362, %v1376
          %v1380 = vcombine.low %v1289, %v1290
          %v1381 = vcombine.low %v1291, %v1292
          %v1382 = vcombine.low %v1293, %v1294
          %v1383 = vcombine.low %v1295, %v1296
          %v1385 = vunpack.c.l.s4 1966171168
          %v1386 = vunpack.c.0.s8 %v1385
          %v1387 = vlaneseq
          %v1388 = vshrl.u32 %v1387, 7
          %v1389 = vsub.s32 %v1386, %v1388
          %v1390 = vrot.slane %v1380, %v1389
          %v1392 = vunpack.c.l.s4 1966171168
          %v1393 = vunpack.c.0.s8 %v1392
          %v1394 = vlaneseq
          %v1395 = vshrl.u32 %v1394, 7
          %v1396 = vsub.s32 %v1393, %v1395
          %v1397 = vrot.slane %v1381, %v1396
          %v1399 = vunpack.c.l.s4 1966171168
          %v1400 = vunpack.c.0.s8 %v1399
          %v1401 = vlaneseq
          %v1402 = vshrl.u32 %v1401, 7
          %v1403 = vsub.s32 %v1400, %v1402
          %v1404 = vrot.slane %v1382, %v1403
          %v1406 = vunpack.c.l.s4 1966171168
          %v1407 = vunpack.c.0.s8 %v1406
          %v1408 = vlaneseq
          %v1409 = vshrl.u32 %v1408, 7
          %v1410 = vsub.s32 %v1407, %v1409
          %v1411 = vrot.slane %v1383, %v1410
          %v1412 = vcombine.low %v1390, %v1397
          %v1413 = vcombine.high %v1390, %v1397
          %v1414 = vcombine.low %v1404, %v1411
          %v1415 = vcombine.high %v1404, %v1411
          %v1417 = vunpack.c.l.s4 1966171168
          %v1418 = vunpack.c.0.s8 %v1417
          %v1419 = vlaneseq
          %v1420 = vshrl.u32 %v1419, 7
          %v1421 = vsub.s32 %v1418, %v1420
          %v1422 = vrot.slane %v1412, %v1421
          %v1424 = vunpack.c.l.s4 1966171168
          %v1425 = vunpack.c.0.s8 %v1424
          %v1426 = vlaneseq
          %v1427 = vshrl.u32 %v1426, 7
          %v1428 = vsub.s32 %v1425, %v1427
          %v1429 = vrot.slane %v1413, %v1428
          %v1431 = vunpack.c.l.s4 1966171168
          %v1432 = vunpack.c.0.s8 %v1431
          %v1433 = vlaneseq
          %v1434 = vshrl.u32 %v1433, 7
          %v1435 = vsub.s32 %v1432, %v1434
          %v1436 = vrot.slane %v1414, %v1435
          %v1438 = vunpack.c.l.s4 1966171168
          %v1439 = vunpack.c.0.s8 %v1438
          %v1440 = vlaneseq
          %v1441 = vshrl.u32 %v1440, 7
          %v1442 = vsub.s32 %v1439, %v1441
          %v1443 = vrot.slane %v1415, %v1442
          %v1444 = vcombine.low %v1422, %v1436
          %v1445 = vcombine.high %v1422, %v1436
          %v1446 = vcombine.low %v1429, %v1443
          %1447 = vrot.lane.b32.xlu0 %v1377, 1
          %v1448 = vpop.permute.xlu0 %1447
          %1449 = vrot.lane.b32.xlu0 %v1379, 1
          %v1450 = vpop.permute.xlu0 %1449
          %1451 = vrot.lane.b32.xlu0 %v1378, 1
          %v1452 = vpop.permute.xlu0 %1451
          %1453 = vrot.lane.b32.xlu0 %v1444, 1
          %v1454 = vpop.permute.xlu0 %1453
          %1455 = vrot.lane.b32.xlu0 %v1446, 1
          %v1456 = vpop.permute.xlu0 %1455
          %1457 = vrot.lane.b32.xlu0 %v1445, 1
          %v1458 = vpop.permute.xlu0 %1457
          %vm1459 = vcmask 7168
          %v1460 = vsel %vm1459, %v1448, %v1450
          %v1461 = vsel %vm1459, %v1450, %v1452
          %v1462 = vsel %vm1459, %v1454, %v1456
          %v1463 = vsel %vm1459, %v1456, %v1458
          %v1468 = vsel %vm703, %v1460, 0.0
          %v1469 = vsel %vm704, %v1461, 0.0
          %v1470 = vsel %vm703, %v1462, 0.0
          %v1471 = vsel %vm704, %v1463, 0.0
          %1472 = vst [vmem:[#allocation3 + $0x60] sm:$0xff] %v1468
          %1473 = vst [vmem:[#allocation3 + $0x68] sm:$0xff] %v1469
          %1474 = vst [vmem:[#allocation3 + $0x70] sm:$0xff] %v1470
          %1475 = vst [vmem:[#allocation3 + $0x78] sm:$0xff] %v1471
          %v1476 = vld [vmem:[#allocation2 + $0x1] sm:$0x3]
          %v1477 = vld [vmem:[#allocation2 + $0x5] sm:$0x3]
          %v1478 = vld [vmem:[#allocation2 + $0x9] sm:$0x3]
          %v1479 = vld [vmem:[#allocation2 + $0xd] sm:$0x3]
          %v1480 = vld [vmem:[#allocation2 + $0x11] sm:$0x3]
          %v1481 = vld [vmem:[#allocation2 + $0x15] sm:$0x3]
          %v1482 = vld [vmem:[#allocation2 + $0x19] sm:$0x3]
          %v1483 = vld [vmem:[#allocation2 + $0x1d] sm:$0x3]
          %v1484 = vld [vmem:[#allocation2 + $0x21] sm:$0x3]
          %v1485 = vld [vmem:[#allocation2 + $0x25] sm:$0x3]
          %v1486 = vld [vmem:[#allocation2 + $0x29] sm:$0x3]
          %v1487 = vld [vmem:[#allocation2 + $0x2d] sm:$0x3]
          %v1488 = vld [vmem:[#allocation2 + $0x31] sm:$0x3]
          %v1489 = vld [vmem:[#allocation2 + $0x35] sm:$0x3]
          %v1490 = vld [vmem:[#allocation2 + $0x39] sm:$0x3]
          %v1491 = vld [vmem:[#allocation2 + $0x3d] sm:$0x3]
          %v1508 = vcombine.low %v1476, %v1477
          %v1509 = vcombine.low %v1478, %v1479
          %v1510 = vcombine.low %v1480, %v1481
          %v1511 = vcombine.low %v1482, %v1483
          %v1513 = vunpack.c.l.s4 1966171168
          %v1514 = vunpack.c.0.s8 %v1513
          %v1515 = vlaneseq
          %v1516 = vshrl.u32 %v1515, 7
          %v1517 = vsub.s32 %v1514, %v1516
          %v1518 = vrot.slane %v1508, %v1517
          %v1520 = vunpack.c.l.s4 1966171168
          %v1521 = vunpack.c.0.s8 %v1520
          %v1522 = vlaneseq
          %v1523 = vshrl.u32 %v1522, 7
          %v1524 = vsub.s32 %v1521, %v1523
          %v1525 = vrot.slane %v1509, %v1524
          %v1527 = vunpack.c.l.s4 1966171168
          %v1528 = vunpack.c.0.s8 %v1527
          %v1529 = vlaneseq
          %v1530 = vshrl.u32 %v1529, 7
          %v1531 = vsub.s32 %v1528, %v1530
          %v1532 = vrot.slane %v1510, %v1531
          %v1534 = vunpack.c.l.s4 1966171168
          %v1535 = vunpack.c.0.s8 %v1534
          %v1536 = vlaneseq
          %v1537 = vshrl.u32 %v1536, 7
          %v1538 = vsub.s32 %v1535, %v1537
          %v1539 = vrot.slane %v1511, %v1538
          %v1540 = vcombine.low %v1518, %v1525
          %v1541 = vcombine.high %v1518, %v1525
          %v1542 = vcombine.low %v1532, %v1539
          %v1543 = vcombine.high %v1532, %v1539
          %v1545 = vunpack.c.l.s4 1966171168
          %v1546 = vunpack.c.0.s8 %v1545
          %v1547 = vlaneseq
          %v1548 = vshrl.u32 %v1547, 7
          %v1549 = vsub.s32 %v1546, %v1548
          %v1550 = vrot.slane %v1540, %v1549
          %v1552 = vunpack.c.l.s4 1966171168
          %v1553 = vunpack.c.0.s8 %v1552
          %v1554 = vlaneseq
          %v1555 = vshrl.u32 %v1554, 7
          %v1556 = vsub.s32 %v1553, %v1555
          %v1557 = vrot.slane %v1541, %v1556
          %v1559 = vunpack.c.l.s4 1966171168
          %v1560 = vunpack.c.0.s8 %v1559
          %v1561 = vlaneseq
          %v1562 = vshrl.u32 %v1561, 7
          %v1563 = vsub.s32 %v1560, %v1562
          %v1564 = vrot.slane %v1542, %v1563
          %v1566 = vunpack.c.l.s4 1966171168
          %v1567 = vunpack.c.0.s8 %v1566
          %v1568 = vlaneseq
          %v1569 = vshrl.u32 %v1568, 7
          %v1570 = vsub.s32 %v1567, %v1569
          %v1571 = vrot.slane %v1543, %v1570
          %v1572 = vcombine.low %v1550, %v1564
          %v1573 = vcombine.low %v1557, %v1571
          %v1574 = vcombine.low %v1484, %v1485
          %v1575 = vcombine.low %v1486, %v1487
          %v1576 = vcombine.low %v1488, %v1489
          %v1577 = vcombine.low %v1490, %v1491
          %v1579 = vunpack.c.l.s4 1966171168
          %v1580 = vunpack.c.0.s8 %v1579
          %v1581 = vlaneseq
          %v1582 = vshrl.u32 %v1581, 7
          %v1583 = vsub.s32 %v1580, %v1582
          %v1584 = vrot.slane %v1574, %v1583
          %v1586 = vunpack.c.l.s4 1966171168
          %v1587 = vunpack.c.0.s8 %v1586
          %v1588 = vlaneseq
          %v1589 = vshrl.u32 %v1588, 7
          %v1590 = vsub.s32 %v1587, %v1589
          %v1591 = vrot.slane %v1575, %v1590
          %v1593 = vunpack.c.l.s4 1966171168
          %v1594 = vunpack.c.0.s8 %v1593
          %v1595 = vlaneseq
          %v1596 = vshrl.u32 %v1595, 7
          %v1597 = vsub.s32 %v1594, %v1596
          %v1598 = vrot.slane %v1576, %v1597
          %v1600 = vunpack.c.l.s4 1966171168
          %v1601 = vunpack.c.0.s8 %v1600
          %v1602 = vlaneseq
          %v1603 = vshrl.u32 %v1602, 7
          %v1604 = vsub.s32 %v1601, %v1603
          %v1605 = vrot.slane %v1577, %v1604
          %v1606 = vcombine.low %v1584, %v1591
          %v1607 = vcombine.high %v1584, %v1591
          %v1608 = vcombine.low %v1598, %v1605
          %v1609 = vcombine.high %v1598, %v1605
          %v1611 = vunpack.c.l.s4 1966171168
          %v1612 = vunpack.c.0.s8 %v1611
          %v1613 = vlaneseq
          %v1614 = vshrl.u32 %v1613, 7
          %v1615 = vsub.s32 %v1612, %v1614
          %v1616 = vrot.slane %v1606, %v1615
          %v1618 = vunpack.c.l.s4 1966171168
          %v1619 = vunpack.c.0.s8 %v1618
          %v1620 = vlaneseq
          %v1621 = vshrl.u32 %v1620, 7
          %v1622 = vsub.s32 %v1619, %v1621
          %v1623 = vrot.slane %v1607, %v1622
          %v1625 = vunpack.c.l.s4 1966171168
          %v1626 = vunpack.c.0.s8 %v1625
          %v1627 = vlaneseq
          %v1628 = vshrl.u32 %v1627, 7
          %v1629 = vsub.s32 %v1626, %v1628
          %v1630 = vrot.slane %v1608, %v1629
          %v1632 = vunpack.c.l.s4 1966171168
          %v1633 = vunpack.c.0.s8 %v1632
          %v1634 = vlaneseq
          %v1635 = vshrl.u32 %v1634, 7
          %v1636 = vsub.s32 %v1633, %v1635
          %v1637 = vrot.slane %v1609, %v1636
          %v1638 = vcombine.low %v1616, %v1630
          %v1639 = vcombine.low %v1623, %v1637
          %1644 = vst [vmem:[#allocation3 + $0x80] sm:$0xff] %v1572
          %1645 = vst [vmem:[#allocation3 + $0x88] sm:$0xff] %v1573
          %1646 = vst [vmem:[#allocation3 + $0x90] sm:$0xff] %v1638
          %1647 = vst [vmem:[#allocation3 + $0x98] sm:$0xff] %v1639
          %v1648 = vld [vmem:[#allocation2 + $0x1] sm:$0x7]
          %v1649 = vld [vmem:[#allocation2 + $0x5] sm:$0x7]
          %v1650 = vld [vmem:[#allocation2 + $0x9] sm:$0x7]
          %v1651 = vld [vmem:[#allocation2 + $0xd] sm:$0x7]
          %v1652 = vld [vmem:[#allocation2 + $0x11] sm:$0x7]
          %v1653 = vld [vmem:[#allocation2 + $0x15] sm:$0x7]
          %v1654 = vld [vmem:[#allocation2 + $0x19] sm:$0x7]
          %v1655 = vld [vmem:[#allocation2 + $0x1d] sm:$0x7]
          %v1656 = vld [vmem:[#allocation2 + $0x21] sm:$0x7]
          %v1657 = vld [vmem:[#allocation2 + $0x25] sm:$0x7]
          %v1658 = vld [vmem:[#allocation2 + $0x29] sm:$0x7]
          %v1659 = vld [vmem:[#allocation2 + $0x2d] sm:$0x7]
          %v1660 = vld [vmem:[#allocation2 + $0x31] sm:$0x7]
          %v1661 = vld [vmem:[#allocation2 + $0x35] sm:$0x7]
          %v1662 = vld [vmem:[#allocation2 + $0x39] sm:$0x7]
          %v1663 = vld [vmem:[#allocation2 + $0x3d] sm:$0x7]
          %v1680 = vcombine.low %v1648, %v1649
          %v1681 = vcombine.low %v1650, %v1651
          %v1682 = vcombine.low %v1652, %v1653
          %v1683 = vcombine.low %v1654, %v1655
          %v1685 = vunpack.c.l.s4 1966171168
          %v1686 = vunpack.c.0.s8 %v1685
          %v1687 = vlaneseq
          %v1688 = vshrl.u32 %v1687, 7
          %v1689 = vsub.s32 %v1686, %v1688
          %v1690 = vrot.slane %v1680, %v1689
          %v1692 = vunpack.c.l.s4 1966171168
          %v1693 = vunpack.c.0.s8 %v1692
          %v1694 = vlaneseq
          %v1695 = vshrl.u32 %v1694, 7
          %v1696 = vsub.s32 %v1693, %v1695
          %v1697 = vrot.slane %v1681, %v1696
          %v1699 = vunpack.c.l.s4 1966171168
          %v1700 = vunpack.c.0.s8 %v1699
          %v1701 = vlaneseq
          %v1702 = vshrl.u32 %v1701, 7
          %v1703 = vsub.s32 %v1700, %v1702
          %v1704 = vrot.slane %v1682, %v1703
          %v1706 = vunpack.c.l.s4 1966171168
          %v1707 = vunpack.c.0.s8 %v1706
          %v1708 = vlaneseq
          %v1709 = vshrl.u32 %v1708, 7
          %v1710 = vsub.s32 %v1707, %v1709
          %v1711 = vrot.slane %v1683, %v1710
          %v1712 = vcombine.low %v1690, %v1697
          %v1713 = vcombine.high %v1690, %v1697
          %v1714 = vcombine.low %v1704, %v1711
          %v1715 = vcombine.high %v1704, %v1711
          %v1717 = vunpack.c.l.s4 1966171168
          %v1718 = vunpack.c.0.s8 %v1717
          %v1719 = vlaneseq
          %v1720 = vshrl.u32 %v1719, 7
          %v1721 = vsub.s32 %v1718, %v1720
          %v1722 = vrot.slane %v1712, %v1721
          %v1724 = vunpack.c.l.s4 1966171168
          %v1725 = vunpack.c.0.s8 %v1724
          %v1726 = vlaneseq
          %v1727 = vshrl.u32 %v1726, 7
          %v1728 = vsub.s32 %v1725, %v1727
          %v1729 = vrot.slane %v1713, %v1728
          %v1731 = vunpack.c.l.s4 1966171168
          %v1732 = vunpack.c.0.s8 %v1731
          %v1733 = vlaneseq
          %v1734 = vshrl.u32 %v1733, 7
          %v1735 = vsub.s32 %v1732, %v1734
          %v1736 = vrot.slane %v1714, %v1735
          %v1738 = vunpack.c.l.s4 1966171168
          %v1739 = vunpack.c.0.s8 %v1738
          %v1740 = vlaneseq
          %v1741 = vshrl.u32 %v1740, 7
          %v1742 = vsub.s32 %v1739, %v1741
          %v1743 = vrot.slane %v1715, %v1742
          %v1744 = vcombine.low %v1722, %v1736
          %v1745 = vcombine.high %v1722, %v1736
          %v1746 = vcombine.low %v1729, %v1743
          %v1747 = vcombine.low %v1656, %v1657
          %v1748 = vcombine.low %v1658, %v1659
          %v1749 = vcombine.low %v1660, %v1661
          %v1750 = vcombine.low %v1662, %v1663
          %v1752 = vunpack.c.l.s4 1966171168
          %v1753 = vunpack.c.0.s8 %v1752
          %v1754 = vlaneseq
          %v1755 = vshrl.u32 %v1754, 7
          %v1756 = vsub.s32 %v1753, %v1755
          %v1757 = vrot.slane %v1747, %v1756
          %v1759 = vunpack.c.l.s4 1966171168
          %v1760 = vunpack.c.0.s8 %v1759
          %v1761 = vlaneseq
          %v1762 = vshrl.u32 %v1761, 7
          %v1763 = vsub.s32 %v1760, %v1762
          %v1764 = vrot.slane %v1748, %v1763
          %v1766 = vunpack.c.l.s4 1966171168
          %v1767 = vunpack.c.0.s8 %v1766
          %v1768 = vlaneseq
          %v1769 = vshrl.u32 %v1768, 7
          %v1770 = vsub.s32 %v1767, %v1769
          %v1771 = vrot.slane %v1749, %v1770
          %v1773 = vunpack.c.l.s4 1966171168
          %v1774 = vunpack.c.0.s8 %v1773
          %v1775 = vlaneseq
          %v1776 = vshrl.u32 %v1775, 7
          %v1777 = vsub.s32 %v1774, %v1776
          %v1778 = vrot.slane %v1750, %v1777
          %v1779 = vcombine.low %v1757, %v1764
          %v1780 = vcombine.high %v1757, %v1764
          %v1781 = vcombine.low %v1771, %v1778
          %v1782 = vcombine.high %v1771, %v1778
          %v1784 = vunpack.c.l.s4 1966171168
          %v1785 = vunpack.c.0.s8 %v1784
          %v1786 = vlaneseq
          %v1787 = vshrl.u32 %v1786, 7
          %v1788 = vsub.s32 %v1785, %v1787
          %v1789 = vrot.slane %v1779, %v1788
          %v1791 = vunpack.c.l.s4 1966171168
          %v1792 = vunpack.c.0.s8 %v1791
          %v1793 = vlaneseq
          %v1794 = vshrl.u32 %v1793, 7
          %v1795 = vsub.s32 %v1792, %v1794
          %v1796 = vrot.slane %v1780, %v1795
          %v1798 = vunpack.c.l.s4 1966171168
          %v1799 = vunpack.c.0.s8 %v1798
          %v1800 = vlaneseq
          %v1801 = vshrl.u32 %v1800, 7
          %v1802 = vsub.s32 %v1799, %v1801
          %v1803 = vrot.slane %v1781, %v1802
          %v1805 = vunpack.c.l.s4 1966171168
          %v1806 = vunpack.c.0.s8 %v1805
          %v1807 = vlaneseq
          %v1808 = vshrl.u32 %v1807, 7
          %v1809 = vsub.s32 %v1806, %v1808
          %v1810 = vrot.slane %v1782, %v1809
          %v1811 = vcombine.low %v1789, %v1803
          %v1812 = vcombine.high %v1789, %v1803
          %v1813 = vcombine.low %v1796, %v1810
          %1814 = vrot.lane.b32.xlu0 %v1744, 127
          %v1815 = vpop.permute.xlu0 %1814
          %1816 = vrot.lane.b32.xlu0 %v1746, 127
          %v1817 = vpop.permute.xlu0 %1816
          %1818 = vrot.lane.b32.xlu0 %v1745, 127
          %v1819 = vpop.permute.xlu0 %1818
          %1820 = vrot.lane.b32.xlu0 %v1811, 127
          %v1821 = vpop.permute.xlu0 %1820
          %1822 = vrot.lane.b32.xlu0 %v1813, 127
          %v1823 = vpop.permute.xlu0 %1822
          %1824 = vrot.lane.b32.xlu0 %v1812, 127
          %v1825 = vpop.permute.xlu0 %1824
          %vm1826 = vcmask 1039360
          %v1827 = vsel %vm1826, %v1815, %v1817
          %v1828 = vsel %vm1826, %v1817, %v1819
          %v1829 = vsel %vm1826, %v1821, %v1823
          %v1830 = vsel %vm1826, %v1823, %v1825
          %v1835 = vsel %vm1100, %v1827, 0.0
          %v1836 = vsel %vm1101, %v1828, 0.0
          %v1837 = vsel %vm1100, %v1829, 0.0
          %v1838 = vsel %vm1101, %v1830, 0.0
          %1839 = vst [vmem:[#allocation3 + $0xa0] sm:$0xff] %v1835
          %1840 = vst [vmem:[#allocation3 + $0xa8] sm:$0xff] %v1836
          %1841 = vst [vmem:[#allocation3 + $0xb0] sm:$0xff] %v1837
          %1842 = vst [vmem:[#allocation3 + $0xb8] sm:$0xff] %v1838
          %v1843 = vld [vmem:[#allocation2 + $0x1] sm:$0x7]
          %v1844 = vld [vmem:[#allocation2 + $0x5] sm:$0x7]
          %v1845 = vld [vmem:[#allocation2 + $0x9] sm:$0x7]
          %v1846 = vld [vmem:[#allocation2 + $0xd] sm:$0x7]
          %v1847 = vld [vmem:[#allocation2 + $0x11] sm:$0x7]
          %v1848 = vld [vmem:[#allocation2 + $0x15] sm:$0x7]
          %v1849 = vld [vmem:[#allocation2 + $0x19] sm:$0x7]
          %v1850 = vld [vmem:[#allocation2 + $0x1d] sm:$0x7]
          %v1851 = vld [vmem:[#allocation2 + $0x21] sm:$0x7]
          %v1852 = vld [vmem:[#allocation2 + $0x25] sm:$0x7]
          %v1853 = vld [vmem:[#allocation2 + $0x29] sm:$0x7]
          %v1854 = vld [vmem:[#allocation2 + $0x2d] sm:$0x7]
          %v1855 = vld [vmem:[#allocation2 + $0x31] sm:$0x7]
          %v1856 = vld [vmem:[#allocation2 + $0x35] sm:$0x7]
          %v1857 = vld [vmem:[#allocation2 + $0x39] sm:$0x7]
          %v1858 = vld [vmem:[#allocation2 + $0x3d] sm:$0x7]
          %v1875 = vcombine.low %v1843, %v1844
          %v1876 = vcombine.low %v1845, %v1846
          %v1877 = vcombine.low %v1847, %v1848
          %v1878 = vcombine.low %v1849, %v1850
          %v1880 = vunpack.c.l.s4 1966171168
          %v1881 = vunpack.c.0.s8 %v1880
          %v1882 = vlaneseq
          %v1883 = vshrl.u32 %v1882, 7
          %v1884 = vsub.s32 %v1881, %v1883
          %v1885 = vrot.slane %v1875, %v1884
          %v1887 = vunpack.c.l.s4 1966171168
          %v1888 = vunpack.c.0.s8 %v1887
          %v1889 = vlaneseq
          %v1890 = vshrl.u32 %v1889, 7
          %v1891 = vsub.s32 %v1888, %v1890
          %v1892 = vrot.slane %v1876, %v1891
          %v1894 = vunpack.c.l.s4 1966171168
          %v1895 = vunpack.c.0.s8 %v1894
          %v1896 = vlaneseq
          %v1897 = vshrl.u32 %v1896, 7
          %v1898 = vsub.s32 %v1895, %v1897
          %v1899 = vrot.slane %v1877, %v1898
          %v1901 = vunpack.c.l.s4 1966171168
          %v1902 = vunpack.c.0.s8 %v1901
          %v1903 = vlaneseq
          %v1904 = vshrl.u32 %v1903, 7
          %v1905 = vsub.s32 %v1902, %v1904
          %v1906 = vrot.slane %v1878, %v1905
          %v1907 = vcombine.low %v1885, %v1892
          %v1908 = vcombine.high %v1885, %v1892
          %v1909 = vcombine.low %v1899, %v1906
          %v1910 = vcombine.high %v1899, %v1906
          %v1912 = vunpack.c.l.s4 1966171168
          %v1913 = vunpack.c.0.s8 %v1912
          %v1914 = vlaneseq
          %v1915 = vshrl.u32 %v1914, 7
          %v1916 = vsub.s32 %v1913, %v1915
          %v1917 = vrot.slane %v1907, %v1916
          %v1919 = vunpack.c.l.s4 1966171168
          %v1920 = vunpack.c.0.s8 %v1919
          %v1921 = vlaneseq
          %v1922 = vshrl.u32 %v1921, 7
          %v1923 = vsub.s32 %v1920, %v1922
          %v1924 = vrot.slane %v1908, %v1923
          %v1926 = vunpack.c.l.s4 1966171168
          %v1927 = vunpack.c.0.s8 %v1926
          %v1928 = vlaneseq
          %v1929 = vshrl.u32 %v1928, 7
          %v1930 = vsub.s32 %v1927, %v1929
          %v1931 = vrot.slane %v1909, %v1930
          %v1933 = vunpack.c.l.s4 1966171168
          %v1934 = vunpack.c.0.s8 %v1933
          %v1935 = vlaneseq
          %v1936 = vshrl.u32 %v1935, 7
          %v1937 = vsub.s32 %v1934, %v1936
          %v1938 = vrot.slane %v1910, %v1937
          %v1939 = vcombine.low %v1917, %v1931
          %v1940 = vcombine.high %v1917, %v1931
          %v1941 = vcombine.low %v1924, %v1938
          %v1942 = vcombine.low %v1851, %v1852
          %v1943 = vcombine.low %v1853, %v1854
          %v1944 = vcombine.low %v1855, %v1856
          %v1945 = vcombine.low %v1857, %v1858
          %v1947 = vunpack.c.l.s4 1966171168
          %v1948 = vunpack.c.0.s8 %v1947
          %v1949 = vlaneseq
          %v1950 = vshrl.u32 %v1949, 7
          %v1951 = vsub.s32 %v1948, %v1950
          %v1952 = vrot.slane %v1942, %v1951
          %v1954 = vunpack.c.l.s4 1966171168
          %v1955 = vunpack.c.0.s8 %v1954
          %v1956 = vlaneseq
          %v1957 = vshrl.u32 %v1956, 7
          %v1958 = vsub.s32 %v1955, %v1957
          %v1959 = vrot.slane %v1943, %v1958
          %v1961 = vunpack.c.l.s4 1966171168
          %v1962 = vunpack.c.0.s8 %v1961
          %v1963 = vlaneseq
          %v1964 = vshrl.u32 %v1963, 7
          %v1965 = vsub.s32 %v1962, %v1964
          %v1966 = vrot.slane %v1944, %v1965
          %v1968 = vunpack.c.l.s4 1966171168
          %v1969 = vunpack.c.0.s8 %v1968
          %v1970 = vlaneseq
          %v1971 = vshrl.u32 %v1970, 7
          %v1972 = vsub.s32 %v1969, %v1971
          %v1973 = vrot.slane %v1945, %v1972
          %v1974 = vcombine.low %v1952, %v1959
          %v1975 = vcombine.high %v1952, %v1959
          %v1976 = vcombine.low %v1966, %v1973
          %v1977 = vcombine.high %v1966, %v1973
          %v1979 = vunpack.c.l.s4 1966171168
          %v1980 = vunpack.c.0.s8 %v1979
          %v1981 = vlaneseq
          %v1982 = vshrl.u32 %v1981, 7
          %v1983 = vsub.s32 %v1980, %v1982
          %v1984 = vrot.slane %v1974, %v1983
          %v1986 = vunpack.c.l.s4 1966171168
          %v1987 = vunpack.c.0.s8 %v1986
          %v1988 = vlaneseq
          %v1989 = vshrl.u32 %v1988, 7
          %v1990 = vsub.s32 %v1987, %v1989
          %v1991 = vrot.slane %v1975, %v1990
          %v1993 = vunpack.c.l.s4 1966171168
          %v1994 = vunpack.c.0.s8 %v1993
          %v1995 = vlaneseq
          %v1996 = vshrl.u32 %v1995, 7
          %v1997 = vsub.s32 %v1994, %v1996
          %v1998 = vrot.slane %v1976, %v1997
          %v2000 = vunpack.c.l.s4 1966171168
          %v2001 = vunpack.c.0.s8 %v2000
          %v2002 = vlaneseq
          %v2003 = vshrl.u32 %v2002, 7
          %v2004 = vsub.s32 %v2001, %v2003
          %v2005 = vrot.slane %v1977, %v2004
          %v2006 = vcombine.low %v1984, %v1998
          %v2007 = vcombine.high %v1984, %v1998
          %v2008 = vcombine.low %v1991, %v2005
          %2009 = vrot.lane.b32.xlu0 %v1939, 113
          %v2010 = vpop.permute.xlu0 %2009
          %2011 = vrot.lane.b32.xlu0 %v1941, 113
          %v2012 = vpop.permute.xlu0 %2011
          %2013 = vrot.lane.b32.xlu0 %v1940, 113
          %v2014 = vpop.permute.xlu0 %2013
          %2015 = vrot.lane.b32.xlu0 %v2006, 113
          %v2016 = vpop.permute.xlu0 %2015
          %2017 = vrot.lane.b32.xlu0 %v2008, 113
          %v2018 = vpop.permute.xlu0 %2017
          %2019 = vrot.lane.b32.xlu0 %v2007, 113
          %v2020 = vpop.permute.xlu0 %2019
          %vm2021 = vcmask 924672
          %v2022 = vsel %vm2021, %v2010, %v2012
          %v2023 = vsel %vm2021, %v2012, %v2014
          %v2024 = vsel %vm2021, %v2016, %v2018
          %v2025 = vsel %vm2021, %v2018, %v2020
          %v2030 = vsel %vm703, %v2022, 0.0
          %v2031 = vsel %vm704, %v2023, 0.0
          %v2032 = vsel %vm703, %v2024, 0.0
          %v2033 = vsel %vm704, %v2025, 0.0
          %2034 = vst [vmem:[#allocation3 + $0xc0] sm:$0xff] %v2030
          %2035 = vst [vmem:[#allocation3 + $0xc8] sm:$0xff] %v2031
          %2036 = vst [vmem:[#allocation3 + $0xd0] sm:$0xff] %v2032
          %2037 = vst [vmem:[#allocation3 + $0xd8] sm:$0xff] %v2033
          %v2038 = vld [vmem:[#allocation2 + $0x1] sm:$0x7]
          %v2039 = vld [vmem:[#allocation2 + $0x5] sm:$0x7]
          %v2040 = vld [vmem:[#allocation2 + $0x9] sm:$0x7]
          %v2041 = vld [vmem:[#allocation2 + $0xd] sm:$0x7]
          %v2042 = vld [vmem:[#allocation2 + $0x11] sm:$0x7]
          %v2043 = vld [vmem:[#allocation2 + $0x15] sm:$0x7]
          %v2044 = vld [vmem:[#allocation2 + $0x19] sm:$0x7]
          %v2045 = vld [vmem:[#allocation2 + $0x1d] sm:$0x7]
          %v2046 = vld [vmem:[#allocation2 + $0x21] sm:$0x7]
          %v2047 = vld [vmem:[#allocation2 + $0x25] sm:$0x7]
          %v2048 = vld [vmem:[#allocation2 + $0x29] sm:$0x7]
          %v2049 = vld [vmem:[#allocation2 + $0x2d] sm:$0x7]
          %v2050 = vld [vmem:[#allocation2 + $0x31] sm:$0x7]
          %v2051 = vld [vmem:[#allocation2 + $0x35] sm:$0x7]
          %v2052 = vld [vmem:[#allocation2 + $0x39] sm:$0x7]
          %v2053 = vld [vmem:[#allocation2 + $0x3d] sm:$0x7]
          %v2070 = vcombine.low %v2038, %v2039
          %v2071 = vcombine.low %v2040, %v2041
          %v2072 = vcombine.low %v2042, %v2043
          %v2073 = vcombine.low %v2044, %v2045
          %v2075 = vunpack.c.l.s4 1966171168
          %v2076 = vunpack.c.0.s8 %v2075
          %v2077 = vlaneseq
          %v2078 = vshrl.u32 %v2077, 7
          %v2079 = vsub.s32 %v2076, %v2078
          %v2080 = vrot.slane %v2070, %v2079
          %v2082 = vunpack.c.l.s4 1966171168
          %v2083 = vunpack.c.0.s8 %v2082
          %v2084 = vlaneseq
          %v2085 = vshrl.u32 %v2084, 7
          %v2086 = vsub.s32 %v2083, %v2085
          %v2087 = vrot.slane %v2071, %v2086
          %v2089 = vunpack.c.l.s4 1966171168
          %v2090 = vunpack.c.0.s8 %v2089
          %v2091 = vlaneseq
          %v2092 = vshrl.u32 %v2091, 7
          %v2093 = vsub.s32 %v2090, %v2092
          %v2094 = vrot.slane %v2072, %v2093
          %v2096 = vunpack.c.l.s4 1966171168
          %v2097 = vunpack.c.0.s8 %v2096
          %v2098 = vlaneseq
          %v2099 = vshrl.u32 %v2098, 7
          %v2100 = vsub.s32 %v2097, %v2099
          %v2101 = vrot.slane %v2073, %v2100
          %v2102 = vcombine.low %v2080, %v2087
          %v2103 = vcombine.high %v2080, %v2087
          %v2104 = vcombine.low %v2094, %v2101
          %v2105 = vcombine.high %v2094, %v2101
          %v2107 = vunpack.c.l.s4 1966171168
          %v2108 = vunpack.c.0.s8 %v2107
          %v2109 = vlaneseq
          %v2110 = vshrl.u32 %v2109, 7
          %v2111 = vsub.s32 %v2108, %v2110
          %v2112 = vrot.slane %v2102, %v2111
          %v2114 = vunpack.c.l.s4 1966171168
          %v2115 = vunpack.c.0.s8 %v2114
          %v2116 = vlaneseq
          %v2117 = vshrl.u32 %v2116, 7
          %v2118 = vsub.s32 %v2115, %v2117
          %v2119 = vrot.slane %v2103, %v2118
          %v2121 = vunpack.c.l.s4 1966171168
          %v2122 = vunpack.c.0.s8 %v2121
          %v2123 = vlaneseq
          %v2124 = vshrl.u32 %v2123, 7
          %v2125 = vsub.s32 %v2122, %v2124
          %v2126 = vrot.slane %v2104, %v2125
          %v2128 = vunpack.c.l.s4 1966171168
          %v2129 = vunpack.c.0.s8 %v2128
          %v2130 = vlaneseq
          %v2131 = vshrl.u32 %v2130, 7
          %v2132 = vsub.s32 %v2129, %v2131
          %v2133 = vrot.slane %v2105, %v2132
          %v2134 = vcombine.low %v2112, %v2126
          %v2135 = vcombine.high %v2112, %v2126
          %v2136 = vcombine.low %v2119, %v2133
          %v2137 = vcombine.low %v2046, %v2047
          %v2138 = vcombine.low %v2048, %v2049
          %v2139 = vcombine.low %v2050, %v2051
          %v2140 = vcombine.low %v2052, %v2053
          %v2142 = vunpack.c.l.s4 1966171168
          %v2143 = vunpack.c.0.s8 %v2142
          %v2144 = vlaneseq
          %v2145 = vshrl.u32 %v2144, 7
          %v2146 = vsub.s32 %v2143, %v2145
          %v2147 = vrot.slane %v2137, %v2146
          %v2149 = vunpack.c.l.s4 1966171168
          %v2150 = vunpack.c.0.s8 %v2149
          %v2151 = vlaneseq
          %v2152 = vshrl.u32 %v2151, 7
          %v2153 = vsub.s32 %v2150, %v2152
          %v2154 = vrot.slane %v2138, %v2153
          %v2156 = vunpack.c.l.s4 1966171168
          %v2157 = vunpack.c.0.s8 %v2156
          %v2158 = vlaneseq
          %v2159 = vshrl.u32 %v2158, 7
          %v2160 = vsub.s32 %v2157, %v2159
          %v2161 = vrot.slane %v2139, %v2160
          %v2163 = vunpack.c.l.s4 1966171168
          %v2164 = vunpack.c.0.s8 %v2163
          %v2165 = vlaneseq
          %v2166 = vshrl.u32 %v2165, 7
          %v2167 = vsub.s32 %v2164, %v2166
          %v2168 = vrot.slane %v2140, %v2167
          %v2169 = vcombine.low %v2147, %v2154
          %v2170 = vcombine.high %v2147, %v2154
          %v2171 = vcombine.low %v2161, %v2168
          %v2172 = vcombine.high %v2161, %v2168
          %v2174 = vunpack.c.l.s4 1966171168
          %v2175 = vunpack.c.0.s8 %v2174
          %v2176 = vlaneseq
          %v2177 = vshrl.u32 %v2176, 7
          %v2178 = vsub.s32 %v2175, %v2177
          %v2179 = vrot.slane %v2169, %v2178
          %v2181 = vunpack.c.l.s4 1966171168
          %v2182 = vunpack.c.0.s8 %v2181
          %v2183 = vlaneseq
          %v2184 = vshrl.u32 %v2183, 7
          %v2185 = vsub.s32 %v2182, %v2184
          %v2186 = vrot.slane %v2170, %v2185
          %v2188 = vunpack.c.l.s4 1966171168
          %v2189 = vunpack.c.0.s8 %v2188
          %v2190 = vlaneseq
          %v2191 = vshrl.u32 %v2190, 7
          %v2192 = vsub.s32 %v2189, %v2191
          %v2193 = vrot.slane %v2171, %v2192
          %v2195 = vunpack.c.l.s4 1966171168
          %v2196 = vunpack.c.0.s8 %v2195
          %v2197 = vlaneseq
          %v2198 = vshrl.u32 %v2197, 7
          %v2199 = vsub.s32 %v2196, %v2198
          %v2200 = vrot.slane %v2172, %v2199
          %v2201 = vcombine.low %v2179, %v2193
          %v2202 = vcombine.high %v2179, %v2193
          %v2203 = vcombine.low %v2186, %v2200
          %2204 = vrot.lane.b32.xlu0 %v2134, 112
          %v2205 = vpop.permute.xlu0 %2204
          %2206 = vrot.lane.b32.xlu0 %v2136, 112
          %v2207 = vpop.permute.xlu0 %2206
          %2208 = vrot.lane.b32.xlu0 %v2135, 112
          %v2209 = vpop.permute.xlu0 %2208
          %2210 = vrot.lane.b32.xlu0 %v2201, 112
          %v2211 = vpop.permute.xlu0 %2210
          %2212 = vrot.lane.b32.xlu0 %v2203, 112
          %v2213 = vpop.permute.xlu0 %2212
          %2214 = vrot.lane.b32.xlu0 %v2202, 112
          %v2215 = vpop.permute.xlu0 %2214
          %vm2216 = vcmask 916480
          %v2217 = vsel %vm2216, %v2205, %v2207
          %v2218 = vsel %vm2216, %v2207, %v2209
          %v2219 = vsel %vm2216, %v2211, %v2213
          %v2220 = vsel %vm2216, %v2213, %v2215
          %2225 = vst [vmem:[#allocation3 + $0xe0] sm:$0xff] %v2217
          %2226 = vst [vmem:[#allocation3 + $0xe8] sm:$0xff] %v2218
          %2227 = vst [vmem:[#allocation3 + $0xf0] sm:$0xff] %v2219
          %2228 = vst [vmem:[#allocation3 + $0xf8] sm:$0xff] %v2220
          %v2229 = vld [vmem:[#allocation2 + $0x1] sm:$0x7]
          %v2230 = vld [vmem:[#allocation2 + $0x5] sm:$0x7]
          %v2231 = vld [vmem:[#allocation2 + $0x9] sm:$0x7]
          %v2232 = vld [vmem:[#allocation2 + $0xd] sm:$0x7]
          %v2233 = vld [vmem:[#allocation2 + $0x11] sm:$0x7]
          %v2234 = vld [vmem:[#allocation2 + $0x15] sm:$0x7]
          %v2235 = vld [vmem:[#allocation2 + $0x19] sm:$0x7]
          %v2236 = vld [vmem:[#allocation2 + $0x1d] sm:$0x7]
          %v2237 = vld [vmem:[#allocation2 + $0x21] sm:$0x7]
          %v2238 = vld [vmem:[#allocation2 + $0x25] sm:$0x7]
          %v2239 = vld [vmem:[#allocation2 + $0x29] sm:$0x7]
          %v2240 = vld [vmem:[#allocation2 + $0x2d] sm:$0x7]
          %v2241 = vld [vmem:[#allocation2 + $0x31] sm:$0x7]
          %v2242 = vld [vmem:[#allocation2 + $0x35] sm:$0x7]
          %v2243 = vld [vmem:[#allocation2 + $0x39] sm:$0x7]
          %v2244 = vld [vmem:[#allocation2 + $0x3d] sm:$0x7]
          %v2261 = vcombine.low %v2229, %v2230
          %v2262 = vcombine.low %v2231, %v2232
          %v2263 = vcombine.low %v2233, %v2234
          %v2264 = vcombine.low %v2235, %v2236
          %v2266 = vunpack.c.l.s4 1966171168
          %v2267 = vunpack.c.0.s8 %v2266
          %v2268 = vlaneseq
          %v2269 = vshrl.u32 %v2268, 7
          %v2270 = vsub.s32 %v2267, %v2269
          %v2271 = vrot.slane %v2261, %v2270
          %v2273 = vunpack.c.l.s4 1966171168
          %v2274 = vunpack.c.0.s8 %v2273
          %v2275 = vlaneseq
          %v2276 = vshrl.u32 %v2275, 7
          %v2277 = vsub.s32 %v2274, %v2276
          %v2278 = vrot.slane %v2262, %v2277
          %v2280 = vunpack.c.l.s4 1966171168
          %v2281 = vunpack.c.0.s8 %v2280
          %v2282 = vlaneseq
          %v2283 = vshrl.u32 %v2282, 7
          %v2284 = vsub.s32 %v2281, %v2283
          %v2285 = vrot.slane %v2263, %v2284
          %v2287 = vunpack.c.l.s4 1966171168
          %v2288 = vunpack.c.0.s8 %v2287
          %v2289 = vlaneseq
          %v2290 = vshrl.u32 %v2289, 7
          %v2291 = vsub.s32 %v2288, %v2290
          %v2292 = vrot.slane %v2264, %v2291
          %v2293 = vcombine.low %v2271, %v2278
          %v2294 = vcombine.high %v2271, %v2278
          %v2295 = vcombine.low %v2285, %v2292
          %v2296 = vcombine.high %v2285, %v2292
          %v2298 = vunpack.c.l.s4 1966171168
          %v2299 = vunpack.c.0.s8 %v2298
          %v2300 = vlaneseq
          %v2301 = vshrl.u32 %v2300, 7
          %v2302 = vsub.s32 %v2299, %v2301
          %v2303 = vrot.slane %v2293, %v2302
          %v2305 = vunpack.c.l.s4 1966171168
          %v2306 = vunpack.c.0.s8 %v2305
          %v2307 = vlaneseq
          %v2308 = vshrl.u32 %v2307, 7
          %v2309 = vsub.s32 %v2306, %v2308
          %v2310 = vrot.slane %v2294, %v2309
          %v2312 = vunpack.c.l.s4 1966171168
          %v2313 = vunpack.c.0.s8 %v2312
          %v2314 = vlaneseq
          %v2315 = vshrl.u32 %v2314, 7
          %v2316 = vsub.s32 %v2313, %v2315
          %v2317 = vrot.slane %v2295, %v2316
          %v2319 = vunpack.c.l.s4 1966171168
          %v2320 = vunpack.c.0.s8 %v2319
          %v2321 = vlaneseq
          %v2322 = vshrl.u32 %v2321, 7
          %v2323 = vsub.s32 %v2320, %v2322
          %v2324 = vrot.slane %v2296, %v2323
          %v2325 = vcombine.low %v2303, %v2317
          %v2326 = vcombine.high %v2303, %v2317
          %v2327 = vcombine.low %v2310, %v2324
          %v2328 = vcombine.low %v2237, %v2238
          %v2329 = vcombine.low %v2239, %v2240
          %v2330 = vcombine.low %v2241, %v2242
          %v2331 = vcombine.low %v2243, %v2244
          %v2333 = vunpack.c.l.s4 1966171168
          %v2334 = vunpack.c.0.s8 %v2333
          %v2335 = vlaneseq
          %v2336 = vshrl.u32 %v2335, 7
          %v2337 = vsub.s32 %v2334, %v2336
          %v2338 = vrot.slane %v2328, %v2337
          %v2340 = vunpack.c.l.s4 1966171168
          %v2341 = vunpack.c.0.s8 %v2340
          %v2342 = vlaneseq
          %v2343 = vshrl.u32 %v2342, 7
          %v2344 = vsub.s32 %v2341, %v2343
          %v2345 = vrot.slane %v2329, %v2344
          %v2347 = vunpack.c.l.s4 1966171168
          %v2348 = vunpack.c.0.s8 %v2347
          %v2349 = vlaneseq
          %v2350 = vshrl.u32 %v2349, 7
          %v2351 = vsub.s32 %v2348, %v2350
          %v2352 = vrot.slane %v2330, %v2351
          %v2354 = vunpack.c.l.s4 1966171168
          %v2355 = vunpack.c.0.s8 %v2354
          %v2356 = vlaneseq
          %v2357 = vshrl.u32 %v2356, 7
          %v2358 = vsub.s32 %v2355, %v2357
          %v2359 = vrot.slane %v2331, %v2358
          %v2360 = vcombine.low %v2338, %v2345
          %v2361 = vcombine.high %v2338, %v2345
          %v2362 = vcombine.low %v2352, %v2359
          %v2363 = vcombine.high %v2352, %v2359
          %v2365 = vunpack.c.l.s4 1966171168
          %v2366 = vunpack.c.0.s8 %v2365
          %v2367 = vlaneseq
          %v2368 = vshrl.u32 %v2367, 7
          %v2369 = vsub.s32 %v2366, %v2368
          %v2370 = vrot.slane %v2360, %v2369
          %v2372 = vunpack.c.l.s4 1966171168
          %v2373 = vunpack.c.0.s8 %v2372
          %v2374 = vlaneseq
          %v2375 = vshrl.u32 %v2374, 7
          %v2376 = vsub.s32 %v2373, %v2375
          %v2377 = vrot.slane %v2361, %v2376
          %v2379 = vunpack.c.l.s4 1966171168
          %v2380 = vunpack.c.0.s8 %v2379
          %v2381 = vlaneseq
          %v2382 = vshrl.u32 %v2381, 7
          %v2383 = vsub.s32 %v2380, %v2382
          %v2384 = vrot.slane %v2362, %v2383
          %v2386 = vunpack.c.l.s4 1966171168
          %v2387 = vunpack.c.0.s8 %v2386
          %v2388 = vlaneseq
          %v2389 = vshrl.u32 %v2388, 7
          %v2390 = vsub.s32 %v2387, %v2389
          %v2391 = vrot.slane %v2363, %v2390
          %v2392 = vcombine.low %v2370, %v2384
          %v2393 = vcombine.high %v2370, %v2384
          %v2394 = vcombine.low %v2377, %v2391
          %2395 = vrot.lane.b32.xlu0 %v2325, 111
          %v2396 = vpop.permute.xlu0 %2395
          %2397 = vrot.lane.b32.xlu0 %v2327, 111
          %v2398 = vpop.permute.xlu0 %2397
          %2399 = vrot.lane.b32.xlu0 %v2326, 111
          %v2400 = vpop.permute.xlu0 %2399
          %2401 = vrot.lane.b32.xlu0 %v2392, 111
          %v2402 = vpop.permute.xlu0 %2401
          %2403 = vrot.lane.b32.xlu0 %v2394, 111
          %v2404 = vpop.permute.xlu0 %2403
          %2405 = vrot.lane.b32.xlu0 %v2393, 111
          %v2406 = vpop.permute.xlu0 %2405
          %vm2407 = vcmask 908288
          %v2408 = vsel %vm2407, %v2396, %v2398
          %v2409 = vsel %vm2407, %v2398, %v2400
          %v2410 = vsel %vm2407, %v2402, %v2404
          %v2411 = vsel %vm2407, %v2404, %v2406
          %v2416 = vsel %vm1100, %v2408, 0.0
          %v2417 = vsel %vm1101, %v2409, 0.0
          %v2418 = vsel %vm1100, %v2410, 0.0
          %v2419 = vsel %vm1101, %v2411, 0.0
          %2420 = vst [vmem:[#allocation3 + $0x100] sm:$0xff] %v2416
          %2421 = vst [vmem:[#allocation3 + $0x108] sm:$0xff] %v2417
          %2422 = vst [vmem:[#allocation3 + $0x110] sm:$0xff] %v2418
          %2423 = vst [vmem:[#allocation3 + $0x118] sm:$0xff] %v2419
          %v2424 = vld [vmem:[#allocation3] sm:$0xff]
          %v2425 = vld [vmem:[#allocation3 + $0x8] sm:$0xff]
          %v2426 = vld [vmem:[#allocation3 + $0x10] sm:$0xff]
          %v2427 = vld [vmem:[#allocation3 + $0x18] sm:$0xff]
          %v2428 = vld [vmem:[#allocation3 + $0x20] sm:$0xff]
          %v2429 = vld [vmem:[#allocation3 + $0x28] sm:$0xff]
          %v2430 = vld [vmem:[#allocation3 + $0x30] sm:$0xff]
          %v2431 = vld [vmem:[#allocation3 + $0x38] sm:$0xff]
          %v2432 = vld [vmem:[#allocation3 + $0x40] sm:$0xff]
          %v2433 = vld [vmem:[#allocation3 + $0x48] sm:$0xff]
          %v2434 = vld [vmem:[#allocation3 + $0x50] sm:$0xff]
          %v2435 = vld [vmem:[#allocation3 + $0x58] sm:$0xff]
          %v2436 = vld [vmem:[#allocation3 + $0x60] sm:$0xff]
          %v2437 = vld [vmem:[#allocation3 + $0x68] sm:$0xff]
          %v2438 = vld [vmem:[#allocation3 + $0x70] sm:$0xff]
          %v2439 = vld [vmem:[#allocation3 + $0x78] sm:$0xff]
          %v2440 = vld [vmem:[#allocation3 + $0x80] sm:$0xff]
          %v2441 = vld [vmem:[#allocation3 + $0x88] sm:$0xff]
          %v2442 = vld [vmem:[#allocation3 + $0x90] sm:$0xff]
          %v2443 = vld [vmem:[#allocation3 + $0x98] sm:$0xff]
          %v2444 = vld [vmem:[#allocation3 + $0xa0] sm:$0xff]
          %v2445 = vld [vmem:[#allocation3 + $0xa8] sm:$0xff]
          %v2446 = vld [vmem:[#allocation3 + $0xb0] sm:$0xff]
          %v2447 = vld [vmem:[#allocation3 + $0xb8] sm:$0xff]
          %v2448 = vld [vmem:[#allocation3 + $0xc0] sm:$0xff]
          %v2449 = vld [vmem:[#allocation3 + $0xc8] sm:$0xff]
          %v2450 = vld [vmem:[#allocation3 + $0xd0] sm:$0xff]
          %v2451 = vld [vmem:[#allocation3 + $0xd8] sm:$0xff]
          %v2452 = vld [vmem:[#allocation3 + $0xe0] sm:$0xff]
          %v2453 = vld [vmem:[#allocation3 + $0xe8] sm:$0xff]
          %v2454 = vld [vmem:[#allocation3 + $0xf0] sm:$0xff]
          %v2455 = vld [vmem:[#allocation3 + $0xf8] sm:$0xff]
          %v2456 = vld [vmem:[#allocation3 + $0x100] sm:$0xff]
          %v2457 = vld [vmem:[#allocation3 + $0x108] sm:$0xff]
          %v2458 = vld [vmem:[#allocation3 + $0x110] sm:$0xff]
          %v2459 = vld [vmem:[#allocation3 + $0x118] sm:$0xff]
          %2461 = vset.pattern.permute.xlu0 0
          %2462 = vperm.xlu0 %2461, %v538
          %v2463 = vpop.permute.xlu0 %2462
          %2466 = vset.pattern.permute.xlu0 0
          %2467 = vperm.xlu0 %2466, %v539
          %v2468 = vpop.permute.xlu0 %2467
          %v2471 = vsel %vm1062, %v533, 0
          %v2474 = vsel %vm1062, %v535, 0
          %2476 = vmatprep.subr.mxu0 %v2425
          %2477 = vmatpush1.msra.mxu0 %v2424
          %2478 = vmatprep.subr.mxu0 %v2427
          %2479 = vmatpush1.msra.mxu0 %v2426
          %2480 = vmatprep.subr.mxu0 %v2429
          %2481 = vmatpush1.msra.mxu0 %v2428
          %2482 = vmatprep.subr.mxu0 %v2431
          %2483 = vmatpush1.msra.mxu0 %v2430
          %2484 = vmatprep.subr.mxu0 %v2433
          %2485 = vmatpush1.msra.mxu0 %v2432
          %2486 = vmatprep.subr.mxu0 %v2435
          %2487 = vmatpush1.msra.mxu0 %v2434
          %2488 = vmatprep.subr.mxu0 %v2437
          %2489 = vmatpush1.msra.mxu0 %v2436
          %2490 = vmatprep.subr.mxu0 %v2439
          %2491 = vmatpush1.msra.mxu0 %v2438
          %2492 = vmatprep.subr.mxu0 %v2441
          %2493 = vmatpush1.msra.mxu0 %v2440
          %2494 = vmatprep.subr.mxu0 %v2443
          %2495 = vmatpush1.msra.mxu0 %v2442
          %2496 = vmatprep.subr.mxu0 %v2445
          %2497 = vmatpush1.msra.mxu0 %v2444
          %2498 = vmatprep.subr.mxu0 %v2447
          %2499 = vmatpush1.msra.mxu0 %v2446
          %2500 = vmatprep.subr.mxu0 %v2449
          %2501 = vmatpush1.msra.mxu0 %v2448
          %2502 = vmatprep.subr.mxu0 %v2451
          %2503 = vmatpush1.msra.mxu0 %v2450
          %2504 = vmatprep.subr.mxu0 %v2453
          %2505 = vmatpush1.msra.mxu0 %v2452
          %2506 = vmatprep.subr.mxu0 %v2455
          %2507 = vmatpush1.msra.mxu0 %v2454
          %2508 = vmatprep.subr.mxu0 %v2457
          %2509 = vmatpush1.msra.mxu0 %v2456
          %2510 = vmatprep.subr.mxu0 %v2459
          %2511 = vmatpush1.msra.mxu0 %v2458
          %2512 = vmatprep.subr.mxu0 0.0
          %2513 = vmatpush1.msra.mxu0 0.0
          %2514 = vmatprep.subr.mxu0 0.0
          %2515 = vmatpush1.msra.mxu0 0.0
          %2516 = vmatprep.subr.mxu0 0.0
          %2517 = vmatpush1.msra.mxu0 0.0
          %2518 = vmatprep.subr.mxu0 0.0
          %2519 = vmatpush1.msra.mxu0 0.0
          %2520 = vmatprep.subr.mxu0 0.0
          %2521 = vmatpush1.msra.mxu0 0.0
          %2522 = vmatprep.subr.mxu0 0.0
          %2523 = vmatpush1.msra.mxu0 0.0
          %2524 = vmatprep.subr.mxu0 0.0
          %2525 = vmatpush1.msra.mxu0 0.0
          %2526 = vmatprep.subr.mxu0 0.0
          %2527 = vmatpush1.msra.mxu0 0.0
          %2528 = vmatprep.subr.mxu0 0.0
          %2529 = vmatpush1.msra.mxu0 0.0
          %2530 = vmatprep.subr.mxu0 0.0
          %2531 = vmatpush1.msra.mxu0 0.0
          %2532 = vmatprep.subr.mxu0 0.0
          %2533 = vmatpush1.msra.mxu0 0.0
          %2534 = vmatprep.subr.mxu0 0.0
          %2535 = vmatpush1.msra.mxu0 0.0
          %2536 = vmatprep.subr.mxu0 0.0
          %2537 = vmatpush1.msra.mxu0 0.0
          %2538 = vmatprep.subr.mxu0 0.0
          %2539 = vmatpush1.msra.mxu0 0.0
          %2540 = vmatprep.mubr.f32.mxu0 %v2471
          %2541 = vmatmul.mubr.f32.gmra.mrb[0].mxu0 %v532
          %v2542 = vpop.f32.mrb[0].mxu0
          %v2543 = vadd.f32 %v2463, %v2542
          %v2544 = vpop.f32.mrb[0].mxu0
          %v2545 = vadd.f32 %v2463, %v2544
          %2546 = vmatprep.mubr.f32.mxu0 %v2474
          %2547 = vmatmul.mubr.f32.gmra.mrb[0].mxu0 %v534
          %v2548 = vpop.f32.mrb[0].mxu0
          %v2549 = vadd.f32 %v2468, %v2548
          %v2550 = vpop.f32.mrb[0].mxu0
          %v2551 = vadd.f32 %v2468, %v2550
          %2552 = vdwg.mxu0
          %vm2553 = vcmp.gt.f32.partialorder %v2543, 0.0
          %vm2554 = vcmp.gt.f32.partialorder %v2545, 0.0
          %vm2555 = vcmp.gt.f32.partialorder %v2549, 0.0
          %vm2556 = vcmp.gt.f32.partialorder %v2551, 0.0
          %v2557 = vmul.f32 %v2543, 0.01
          %v2558 = vmul.f32 %v2545, 0.01
          %v2559 = vmul.f32 %v2549, 0.01
          %v2560 = vmul.f32 %v2551, 0.01
          %v2561 = vsel %vm2553, %v2543, %v2557
          %v2562 = vsel %vm2554, %v2545, %v2558
          %v2563 = vsel %vm2555, %v2549, %v2559
          %v2564 = vsel %vm2556, %v2551, %v2560
          %s2565 = smul.addr %s529, 8
          %s2566 = scalar_lea.vmem [#allocation4], %s2565
          %v2567 = vld [vmem:[%s2566] sm:$0xff]
          %v2568 = vld [vmem:[%s2566 + $0x8] sm:$0xff]
          %v2569 = vld [vmem:[%s2566 + $0x10] sm:$0xff]
          %v2570 = vld [vmem:[%s2566 + $0x18] sm:$0xff]
          %s2571 = scalar_lea.vmem %s7, %s536
          %v2572 = vld [vmem:[%s2571] sm:$0xff]
          %v2573 = vld [vmem:[%s2571 + $0x8] sm:$0xff]
          %v2578 = vcombine.low %v2561, %v2562
          %v2579 = vcombine.high %v2561, %v2562
          %v2581 = vunpack.c.l.s4 1966171168
          %v2582 = vunpack.c.0.s8 %v2581
          %v2583 = vlaneseq
          %v2584 = vshrl.u32 %v2583, 7
          %v2585 = vsub.s32 %v2582, %v2584
          %v2586 = vrot.slane %v2578, %v2585
          %v2588 = vunpack.c.l.s4 1966171168
          %v2589 = vunpack.c.0.s8 %v2588
          %v2590 = vlaneseq
          %v2591 = vshrl.u32 %v2590, 7
          %v2592 = vsub.s32 %v2589, %v2591
          %v2593 = vrot.slane %v2579, %v2592
          %v2594 = vcombine.high %v2586, %v2586
          %v2595 = vcombine.high %v2593, %v2593
          %v2597 = vunpack.c.l.s4 1966171168
          %v2598 = vunpack.c.0.s8 %v2597
          %v2599 = vlaneseq
          %v2600 = vshrl.u32 %v2599, 7
          %v2601 = vsub.s32 %v2598, %v2600
          %v2602 = vrot.slane %v2586, %v2601
          %v2604 = vunpack.c.l.s4 1966171168
          %v2605 = vunpack.c.0.s8 %v2604
          %v2606 = vlaneseq
          %v2607 = vshrl.u32 %v2606, 7
          %v2608 = vsub.s32 %v2605, %v2607
          %v2609 = vrot.slane %v2593, %v2608
          %v2611 = vunpack.c.l.s4 1966171168
          %v2612 = vunpack.c.0.s8 %v2611
          %v2613 = vlaneseq
          %v2614 = vshrl.u32 %v2613, 7
          %v2615 = vsub.s32 %v2612, %v2614
          %v2616 = vrot.slane %v2594, %v2615
          %v2618 = vunpack.c.l.s4 1966171168
          %v2619 = vunpack.c.0.s8 %v2618
          %v2620 = vlaneseq
          %v2621 = vshrl.u32 %v2620, 7
          %v2622 = vsub.s32 %v2619, %v2621
          %v2623 = vrot.slane %v2595, %v2622
          %v2624 = vcombine.high %v2602, %v2602
          %v2625 = vcombine.high %v2609, %v2609
          %v2626 = vcombine.high %v2616, %v2616
          %v2627 = vcombine.high %v2623, %v2623
          %v2628 = vcombine.low %v2563, %v2564
          %v2629 = vcombine.high %v2563, %v2564
          %v2631 = vunpack.c.l.s4 1966171168
          %v2632 = vunpack.c.0.s8 %v2631
          %v2633 = vlaneseq
          %v2634 = vshrl.u32 %v2633, 7
          %v2635 = vsub.s32 %v2632, %v2634
          %v2636 = vrot.slane %v2628, %v2635
          %v2638 = vunpack.c.l.s4 1966171168
          %v2639 = vunpack.c.0.s8 %v2638
          %v2640 = vlaneseq
          %v2641 = vshrl.u32 %v2640, 7
          %v2642 = vsub.s32 %v2639, %v2641
          %v2643 = vrot.slane %v2629, %v2642
          %v2644 = vcombine.high %v2636, %v2636
          %v2645 = vcombine.high %v2643, %v2643
          %v2647 = vunpack.c.l.s4 1966171168
          %v2648 = vunpack.c.0.s8 %v2647
          %v2649 = vlaneseq
          %v2650 = vshrl.u32 %v2649, 7
          %v2651 = vsub.s32 %v2648, %v2650
          %v2652 = vrot.slane %v2636, %v2651
          %v2654 = vunpack.c.l.s4 1966171168
          %v2655 = vunpack.c.0.s8 %v2654
          %v2656 = vlaneseq
          %v2657 = vshrl.u32 %v2656, 7
          %v2658 = vsub.s32 %v2655, %v2657
          %v2659 = vrot.slane %v2643, %v2658
          %v2661 = vunpack.c.l.s4 1966171168
          %v2662 = vunpack.c.0.s8 %v2661
          %v2663 = vlaneseq
          %v2664 = vshrl.u32 %v2663, 7
          %v2665 = vsub.s32 %v2662, %v2664
          %v2666 = vrot.slane %v2644, %v2665
          %v2668 = vunpack.c.l.s4 1966171168
          %v2669 = vunpack.c.0.s8 %v2668
          %v2670 = vlaneseq
          %v2671 = vshrl.u32 %v2670, 7
          %v2672 = vsub.s32 %v2669, %v2671
          %v2673 = vrot.slane %v2645, %v2672
          %v2674 = vcombine.high %v2652, %v2652
          %v2675 = vcombine.high %v2659, %v2659
          %v2676 = vcombine.high %v2666, %v2666
          %v2677 = vcombine.high %v2673, %v2673
          %2694 = vst.msk [vmem:[#allocation2 + $0x1] sm:$0x3] %vm661, %v2602
          %2695 = vst.msk [vmem:[#allocation2 + $0x5] sm:$0x3] %vm661, %v2616
          %2696 = vst.msk [vmem:[#allocation2 + $0x9] sm:$0x3] %vm661, %v2624
          %2697 = vst.msk [vmem:[#allocation2 + $0xd] sm:$0x3] %vm661, %v2626
          %2698 = vst.msk [vmem:[#allocation2 + $0x11] sm:$0x3] %vm661, %v2609
          %2699 = vst.msk [vmem:[#allocation2 + $0x15] sm:$0x3] %vm661, %v2623
          %2700 = vst.msk [vmem:[#allocation2 + $0x19] sm:$0x3] %vm661, %v2625
          %2701 = vst.msk [vmem:[#allocation2 + $0x1d] sm:$0x3] %vm661, %v2627
          %2702 = vst.msk [vmem:[#allocation2 + $0x21] sm:$0x3] %vm661, %v2652
          %2703 = vst.msk [vmem:[#allocation2 + $0x25] sm:$0x3] %vm661, %v2666
          %2704 = vst.msk [vmem:[#allocation2 + $0x29] sm:$0x3] %vm661, %v2674
          %2705 = vst.msk [vmem:[#allocation2 + $0x2d] sm:$0x3] %vm661, %v2676
          %2706 = vst.msk [vmem:[#allocation2 + $0x31] sm:$0x3] %vm661, %v2659
          %2707 = vst.msk [vmem:[#allocation2 + $0x35] sm:$0x3] %vm661, %v2673
          %2708 = vst.msk [vmem:[#allocation2 + $0x39] sm:$0x3] %vm661, %v2675
          %2709 = vst.msk [vmem:[#allocation2 + $0x3d] sm:$0x3] %vm661, %v2677
          %v2710 = vld [vmem:[#allocation2] sm:$0x7]
          %v2711 = vld [vmem:[#allocation2 + $0x4] sm:$0x7]
          %v2712 = vld [vmem:[#allocation2 + $0x8] sm:$0x7]
          %v2713 = vld [vmem:[#allocation2 + $0xc] sm:$0x7]
          %v2714 = vld [vmem:[#allocation2 + $0x10] sm:$0x7]
          %v2715 = vld [vmem:[#allocation2 + $0x14] sm:$0x7]
          %v2716 = vld [vmem:[#allocation2 + $0x18] sm:$0x7]
          %v2717 = vld [vmem:[#allocation2 + $0x1c] sm:$0x7]
          %v2718 = vld [vmem:[#allocation2 + $0x20] sm:$0x7]
          %v2719 = vld [vmem:[#allocation2 + $0x24] sm:$0x7]
          %v2720 = vld [vmem:[#allocation2 + $0x28] sm:$0x7]
          %v2721 = vld [vmem:[#allocation2 + $0x2c] sm:$0x7]
          %v2722 = vld [vmem:[#allocation2 + $0x30] sm:$0x7]
          %v2723 = vld [vmem:[#allocation2 + $0x34] sm:$0x7]
          %v2724 = vld [vmem:[#allocation2 + $0x38] sm:$0x7]
          %v2725 = vld [vmem:[#allocation2 + $0x3c] sm:$0x7]
          %v2742 = vcombine.low %v2710, %v2711
          %v2743 = vcombine.low %v2712, %v2713
          %v2744 = vcombine.low %v2714, %v2715
          %v2745 = vcombine.low %v2716, %v2717
          %v2747 = vunpack.c.l.s4 1966171168
          %v2748 = vunpack.c.0.s8 %v2747
          %v2749 = vlaneseq
          %v2750 = vshrl.u32 %v2749, 7
          %v2751 = vsub.s32 %v2748, %v2750
          %v2752 = vrot.slane %v2742, %v2751
          %v2754 = vunpack.c.l.s4 1966171168
          %v2755 = vunpack.c.0.s8 %v2754
          %v2756 = vlaneseq
          %v2757 = vshrl.u32 %v2756, 7
          %v2758 = vsub.s32 %v2755, %v2757
          %v2759 = vrot.slane %v2743, %v2758
          %v2761 = vunpack.c.l.s4 1966171168
          %v2762 = vunpack.c.0.s8 %v2761
          %v2763 = vlaneseq
          %v2764 = vshrl.u32 %v2763, 7
          %v2765 = vsub.s32 %v2762, %v2764
          %v2766 = vrot.slane %v2744, %v2765
          %v2768 = vunpack.c.l.s4 1966171168
          %v2769 = vunpack.c.0.s8 %v2768
          %v2770 = vlaneseq
          %v2771 = vshrl.u32 %v2770, 7
          %v2772 = vsub.s32 %v2769, %v2771
          %v2773 = vrot.slane %v2745, %v2772
          %v2774 = vcombine.low %v2752, %v2759
          %v2775 = vcombine.high %v2752, %v2759
          %v2776 = vcombine.low %v2766, %v2773
          %v2777 = vcombine.high %v2766, %v2773
          %v2779 = vunpack.c.l.s4 1966171168
          %v2780 = vunpack.c.0.s8 %v2779
          %v2781 = vlaneseq
          %v2782 = vshrl.u32 %v2781, 7
          %v2783 = vsub.s32 %v2780, %v2782
          %v2784 = vrot.slane %v2774, %v2783
          %v2786 = vunpack.c.l.s4 1966171168
          %v2787 = vunpack.c.0.s8 %v2786
          %v2788 = vlaneseq
          %v2789 = vshrl.u32 %v2788, 7
          %v2790 = vsub.s32 %v2787, %v2789
          %v2791 = vrot.slane %v2775, %v2790
          %v2793 = vunpack.c.l.s4 1966171168
          %v2794 = vunpack.c.0.s8 %v2793
          %v2795 = vlaneseq
          %v2796 = vshrl.u32 %v2795, 7
          %v2797 = vsub.s32 %v2794, %v2796
          %v2798 = vrot.slane %v2776, %v2797
          %v2800 = vunpack.c.l.s4 1966171168
          %v2801 = vunpack.c.0.s8 %v2800
          %v2802 = vlaneseq
          %v2803 = vshrl.u32 %v2802, 7
          %v2804 = vsub.s32 %v2801, %v2803
          %v2805 = vrot.slane %v2777, %v2804
          %v2806 = vcombine.low %v2784, %v2798
          %v2807 = vcombine.high %v2784, %v2798
          %v2808 = vcombine.low %v2791, %v2805
          %v2809 = vcombine.low %v2718, %v2719
          %v2810 = vcombine.low %v2720, %v2721
          %v2811 = vcombine.low %v2722, %v2723
          %v2812 = vcombine.low %v2724, %v2725
          %v2814 = vunpack.c.l.s4 1966171168
          %v2815 = vunpack.c.0.s8 %v2814
          %v2816 = vlaneseq
          %v2817 = vshrl.u32 %v2816, 7
          %v2818 = vsub.s32 %v2815, %v2817
          %v2819 = vrot.slane %v2809, %v2818
          %v2821 = vunpack.c.l.s4 1966171168
          %v2822 = vunpack.c.0.s8 %v2821
          %v2823 = vlaneseq
          %v2824 = vshrl.u32 %v2823, 7
          %v2825 = vsub.s32 %v2822, %v2824
          %v2826 = vrot.slane %v2810, %v2825
          %v2828 = vunpack.c.l.s4 1966171168
          %v2829 = vunpack.c.0.s8 %v2828
          %v2830 = vlaneseq
          %v2831 = vshrl.u32 %v2830, 7
          %v2832 = vsub.s32 %v2829, %v2831
          %v2833 = vrot.slane %v2811, %v2832
          %v2835 = vunpack.c.l.s4 1966171168
          %v2836 = vunpack.c.0.s8 %v2835
          %v2837 = vlaneseq
          %v2838 = vshrl.u32 %v2837, 7
          %v2839 = vsub.s32 %v2836, %v2838
          %v2840 = vrot.slane %v2812, %v2839
          %v2841 = vcombine.low %v2819, %v2826
          %v2842 = vcombine.high %v2819, %v2826
          %v2843 = vcombine.low %v2833, %v2840
          %v2844 = vcombine.high %v2833, %v2840
          %v2846 = vunpack.c.l.s4 1966171168
          %v2847 = vunpack.c.0.s8 %v2846
          %v2848 = vlaneseq
          %v2849 = vshrl.u32 %v2848, 7
          %v2850 = vsub.s32 %v2847, %v2849
          %v2851 = vrot.slane %v2841, %v2850
          %v2853 = vunpack.c.l.s4 1966171168
          %v2854 = vunpack.c.0.s8 %v2853
          %v2855 = vlaneseq
          %v2856 = vshrl.u32 %v2855, 7
          %v2857 = vsub.s32 %v2854, %v2856
          %v2858 = vrot.slane %v2842, %v2857
          %v2860 = vunpack.c.l.s4 1966171168
          %v2861 = vunpack.c.0.s8 %v2860
          %v2862 = vlaneseq
          %v2863 = vshrl.u32 %v2862, 7
          %v2864 = vsub.s32 %v2861, %v2863
          %v2865 = vrot.slane %v2843, %v2864
          %v2867 = vunpack.c.l.s4 1966171168
          %v2868 = vunpack.c.0.s8 %v2867
          %v2869 = vlaneseq
          %v2870 = vshrl.u32 %v2869, 7
          %v2871 = vsub.s32 %v2868, %v2870
          %v2872 = vrot.slane %v2844, %v2871
          %v2873 = vcombine.low %v2851, %v2865
          %v2874 = vcombine.high %v2851, %v2865
          %v2875 = vcombine.low %v2858, %v2872
          %2876 = vrot.lane.b32.xlu0 %v2806, 17
          %v2877 = vpop.permute.xlu0 %2876
          %2878 = vrot.lane.b32.xlu0 %v2808, 17
          %v2879 = vpop.permute.xlu0 %2878
          %2880 = vrot.lane.b32.xlu0 %v2807, 17
          %v2881 = vpop.permute.xlu0 %2880
          %2882 = vrot.lane.b32.xlu0 %v2873, 17
          %v2883 = vpop.permute.xlu0 %2882
          %2884 = vrot.lane.b32.xlu0 %v2875, 17
          %v2885 = vpop.permute.xlu0 %2884
          %2886 = vrot.lane.b32.xlu0 %v2874, 17
          %v2887 = vpop.permute.xlu0 %2886
          %v2888 = vsel %vm867, %v2877, %v2879
          %v2889 = vsel %vm867, %v2879, %v2881
          %v2890 = vsel %vm867, %v2883, %v2885
          %v2891 = vsel %vm867, %v2885, %v2887
          %v2896 = vsel %vm703, %v2888, 0.0
          %v2897 = vsel %vm704, %v2889, 0.0
          %v2898 = vsel %vm703, %v2890, 0.0
          %v2899 = vsel %vm704, %v2891, 0.0
          %2900 = vst [vmem:[#allocation3] sm:$0xff] %v2896
          %2901 = vst [vmem:[#allocation3 + $0x8] sm:$0xff] %v2897
          %2902 = vst [vmem:[#allocation3 + $0x10] sm:$0xff] %v2898
          %2903 = vst [vmem:[#allocation3 + $0x18] sm:$0xff] %v2899
          %v2904 = vld [vmem:[#allocation2] sm:$0x7]
          %v2905 = vld [vmem:[#allocation2 + $0x4] sm:$0x7]
          %v2906 = vld [vmem:[#allocation2 + $0x8] sm:$0x7]
          %v2907 = vld [vmem:[#allocation2 + $0xc] sm:$0x7]
          %v2908 = vld [vmem:[#allocation2 + $0x10] sm:$0x7]
          %v2909 = vld [vmem:[#allocation2 + $0x14] sm:$0x7]
          %v2910 = vld [vmem:[#allocation2 + $0x18] sm:$0x7]
          %v2911 = vld [vmem:[#allocation2 + $0x1c] sm:$0x7]
          %v2912 = vld [vmem:[#allocation2 + $0x20] sm:$0x7]
          %v2913 = vld [vmem:[#allocation2 + $0x24] sm:$0x7]
          %v2914 = vld [vmem:[#allocation2 + $0x28] sm:$0x7]
          %v2915 = vld [vmem:[#allocation2 + $0x2c] sm:$0x7]
          %v2916 = vld [vmem:[#allocation2 + $0x30] sm:$0x7]
          %v2917 = vld [vmem:[#allocation2 + $0x34] sm:$0x7]
          %v2918 = vld [vmem:[#allocation2 + $0x38] sm:$0x7]
          %v2919 = vld [vmem:[#allocation2 + $0x3c] sm:$0x7]
          %v2936 = vcombine.low %v2904, %v2905
          %v2937 = vcombine.low %v2906, %v2907
          %v2938 = vcombine.low %v2908, %v2909
          %v2939 = vcombine.low %v2910, %v2911
          %v2941 = vunpack.c.l.s4 1966171168
          %v2942 = vunpack.c.0.s8 %v2941
          %v2943 = vlaneseq
          %v2944 = vshrl.u32 %v2943, 7
          %v2945 = vsub.s32 %v2942, %v2944
          %v2946 = vrot.slane %v2936, %v2945
          %v2948 = vunpack.c.l.s4 1966171168
          %v2949 = vunpack.c.0.s8 %v2948
          %v2950 = vlaneseq
          %v2951 = vshrl.u32 %v2950, 7
          %v2952 = vsub.s32 %v2949, %v2951
          %v2953 = vrot.slane %v2937, %v2952
          %v2955 = vunpack.c.l.s4 1966171168
          %v2956 = vunpack.c.0.s8 %v2955
          %v2957 = vlaneseq
          %v2958 = vshrl.u32 %v2957, 7
          %v2959 = vsub.s32 %v2956, %v2958
          %v2960 = vrot.slane %v2938, %v2959
          %v2962 = vunpack.c.l.s4 1966171168
          %v2963 = vunpack.c.0.s8 %v2962
          %v2964 = vlaneseq
          %v2965 = vshrl.u32 %v2964, 7
          %v2966 = vsub.s32 %v2963, %v2965
          %v2967 = vrot.slane %v2939, %v2966
          %v2968 = vcombine.low %v2946, %v2953
          %v2969 = vcombine.high %v2946, %v2953
          %v2970 = vcombine.low %v2960, %v2967
          %v2971 = vcombine.high %v2960, %v2967
          %v2973 = vunpack.c.l.s4 1966171168
          %v2974 = vunpack.c.0.s8 %v2973
          %v2975 = vlaneseq
          %v2976 = vshrl.u32 %v2975, 7
          %v2977 = vsub.s32 %v2974, %v2976
          %v2978 = vrot.slane %v2968, %v2977
          %v2980 = vunpack.c.l.s4 1966171168
          %v2981 = vunpack.c.0.s8 %v2980
          %v2982 = vlaneseq
          %v2983 = vshrl.u32 %v2982, 7
          %v2984 = vsub.s32 %v2981, %v2983
          %v2985 = vrot.slane %v2969, %v2984
          %v2987 = vunpack.c.l.s4 1966171168
          %v2988 = vunpack.c.0.s8 %v2987
          %v2989 = vlaneseq
          %v2990 = vshrl.u32 %v2989, 7
          %v2991 = vsub.s32 %v2988, %v2990
          %v2992 = vrot.slane %v2970, %v2991
          %v2994 = vunpack.c.l.s4 1966171168
          %v2995 = vunpack.c.0.s8 %v2994
          %v2996 = vlaneseq
          %v2997 = vshrl.u32 %v2996, 7
          %v2998 = vsub.s32 %v2995, %v2997
          %v2999 = vrot.slane %v2971, %v2998
          %v3000 = vcombine.low %v2978, %v2992
          %v3001 = vcombine.high %v2978, %v2992
          %v3002 = vcombine.low %v2985, %v2999
          %v3003 = vcombine.low %v2912, %v2913
          %v3004 = vcombine.low %v2914, %v2915
          %v3005 = vcombine.low %v2916, %v2917
          %v3006 = vcombine.low %v2918, %v2919
          %v3008 = vunpack.c.l.s4 1966171168
          %v3009 = vunpack.c.0.s8 %v3008
          %v3010 = vlaneseq
          %v3011 = vshrl.u32 %v3010, 7
          %v3012 = vsub.s32 %v3009, %v3011
          %v3013 = vrot.slane %v3003, %v3012
          %v3015 = vunpack.c.l.s4 1966171168
          %v3016 = vunpack.c.0.s8 %v3015
          %v3017 = vlaneseq
          %v3018 = vshrl.u32 %v3017, 7
          %v3019 = vsub.s32 %v3016, %v3018
          %v3020 = vrot.slane %v3004, %v3019
          %v3022 = vunpack.c.l.s4 1966171168
          %v3023 = vunpack.c.0.s8 %v3022
          %v3024 = vlaneseq
          %v3025 = vshrl.u32 %v3024, 7
          %v3026 = vsub.s32 %v3023, %v3025
          %v3027 = vrot.slane %v3005, %v3026
          %v3029 = vunpack.c.l.s4 1966171168
          %v3030 = vunpack.c.0.s8 %v3029
          %v3031 = vlaneseq
          %v3032 = vshrl.u32 %v3031, 7
          %v3033 = vsub.s32 %v3030, %v3032
          %v3034 = vrot.slane %v3006, %v3033
          %v3035 = vcombine.low %v3013, %v3020
          %v3036 = vcombine.high %v3013, %v3020
          %v3037 = vcombine.low %v3027, %v3034
          %v3038 = vcombine.high %v3027, %v3034
          %v3040 = vunpack.c.l.s4 1966171168
          %v3041 = vunpack.c.0.s8 %v3040
          %v3042 = vlaneseq
          %v3043 = vshrl.u32 %v3042, 7
          %v3044 = vsub.s32 %v3041, %v3043
          %v3045 = vrot.slane %v3035, %v3044
          %v3047 = vunpack.c.l.s4 1966171168
          %v3048 = vunpack.c.0.s8 %v3047
          %v3049 = vlaneseq
          %v3050 = vshrl.u32 %v3049, 7
          %v3051 = vsub.s32 %v3048, %v3050
          %v3052 = vrot.slane %v3036, %v3051
          %v3054 = vunpack.c.l.s4 1966171168
          %v3055 = vunpack.c.0.s8 %v3054
          %v3056 = vlaneseq
          %v3057 = vshrl.u32 %v3056, 7
          %v3058 = vsub.s32 %v3055, %v3057
          %v3059 = vrot.slane %v3037, %v3058
          %v3061 = vunpack.c.l.s4 1966171168
          %v3062 = vunpack.c.0.s8 %v3061
          %v3063 = vlaneseq
          %v3064 = vshrl.u32 %v3063, 7
          %v3065 = vsub.s32 %v3062, %v3064
          %v3066 = vrot.slane %v3038, %v3065
          %v3067 = vcombine.low %v3045, %v3059
          %v3068 = vcombine.high %v3045, %v3059
          %v3069 = vcombine.low %v3052, %v3066
          %3070 = vrot.lane.b32.xlu0 %v3000, 16
          %v3071 = vpop.permute.xlu0 %3070
          %3072 = vrot.lane.b32.xlu0 %v3002, 16
          %v3073 = vpop.permute.xlu0 %3072
          %3074 = vrot.lane.b32.xlu0 %v3001, 16
          %v3075 = vpop.permute.xlu0 %3074
          %3076 = vrot.lane.b32.xlu0 %v3067, 16
          %v3077 = vpop.permute.xlu0 %3076
          %3078 = vrot.lane.b32.xlu0 %v3069, 16
          %v3079 = vpop.permute.xlu0 %3078
          %3080 = vrot.lane.b32.xlu0 %v3068, 16
          %v3081 = vpop.permute.xlu0 %3080
          %v3082 = vsel %vm1062, %v3071, %v3073
          %v3083 = vsel %vm1062, %v3073, %v3075
          %v3084 = vsel %vm1062, %v3077, %v3079
          %v3085 = vsel %vm1062, %v3079, %v3081
          %3090 = vst [vmem:[#allocation3 + $0x20] sm:$0xff] %v3082
          %3091 = vst [vmem:[#allocation3 + $0x28] sm:$0xff] %v3083
          %3092 = vst [vmem:[#allocation3 + $0x30] sm:$0xff] %v3084
          %3093 = vst [vmem:[#allocation3 + $0x38] sm:$0xff] %v3085
          %v3094 = vld [vmem:[#allocation2] sm:$0x7]
          %v3095 = vld [vmem:[#allocation2 + $0x4] sm:$0x7]
          %v3096 = vld [vmem:[#allocation2 + $0x8] sm:$0x7]
          %v3097 = vld [vmem:[#allocation2 + $0xc] sm:$0x7]
          %v3098 = vld [vmem:[#allocation2 + $0x10] sm:$0x7]
          %v3099 = vld [vmem:[#allocation2 + $0x14] sm:$0x7]
          %v3100 = vld [vmem:[#allocation2 + $0x18] sm:$0x7]
          %v3101 = vld [vmem:[#allocation2 + $0x1c] sm:$0x7]
          %v3102 = vld [vmem:[#allocation2 + $0x20] sm:$0x7]
          %v3103 = vld [vmem:[#allocation2 + $0x24] sm:$0x7]
          %v3104 = vld [vmem:[#allocation2 + $0x28] sm:$0x7]
          %v3105 = vld [vmem:[#allocation2 + $0x2c] sm:$0x7]
          %v3106 = vld [vmem:[#allocation2 + $0x30] sm:$0x7]
          %v3107 = vld [vmem:[#allocation2 + $0x34] sm:$0x7]
          %v3108 = vld [vmem:[#allocation2 + $0x38] sm:$0x7]
          %v3109 = vld [vmem:[#allocation2 + $0x3c] sm:$0x7]
          %v3126 = vcombine.low %v3094, %v3095
          %v3127 = vcombine.low %v3096, %v3097
          %v3128 = vcombine.low %v3098, %v3099
          %v3129 = vcombine.low %v3100, %v3101
          %v3131 = vunpack.c.l.s4 1966171168
          %v3132 = vunpack.c.0.s8 %v3131
          %v3133 = vlaneseq
          %v3134 = vshrl.u32 %v3133, 7
          %v3135 = vsub.s32 %v3132, %v3134
          %v3136 = vrot.slane %v3126, %v3135
          %v3138 = vunpack.c.l.s4 1966171168
          %v3139 = vunpack.c.0.s8 %v3138
          %v3140 = vlaneseq
          %v3141 = vshrl.u32 %v3140, 7
          %v3142 = vsub.s32 %v3139, %v3141
          %v3143 = vrot.slane %v3127, %v3142
          %v3145 = vunpack.c.l.s4 1966171168
          %v3146 = vunpack.c.0.s8 %v3145
          %v3147 = vlaneseq
          %v3148 = vshrl.u32 %v3147, 7
          %v3149 = vsub.s32 %v3146, %v3148
          %v3150 = vrot.slane %v3128, %v3149
          %v3152 = vunpack.c.l.s4 1966171168
          %v3153 = vunpack.c.0.s8 %v3152
          %v3154 = vlaneseq
          %v3155 = vshrl.u32 %v3154, 7
          %v3156 = vsub.s32 %v3153, %v3155
          %v3157 = vrot.slane %v3129, %v3156
          %v3158 = vcombine.low %v3136, %v3143
          %v3159 = vcombine.high %v3136, %v3143
          %v3160 = vcombine.low %v3150, %v3157
          %v3161 = vcombine.high %v3150, %v3157
          %v3163 = vunpack.c.l.s4 1966171168
          %v3164 = vunpack.c.0.s8 %v3163
          %v3165 = vlaneseq
          %v3166 = vshrl.u32 %v3165, 7
          %v3167 = vsub.s32 %v3164, %v3166
          %v3168 = vrot.slane %v3158, %v3167
          %v3170 = vunpack.c.l.s4 1966171168
          %v3171 = vunpack.c.0.s8 %v3170
          %v3172 = vlaneseq
          %v3173 = vshrl.u32 %v3172, 7
          %v3174 = vsub.s32 %v3171, %v3173
          %v3175 = vrot.slane %v3159, %v3174
          %v3177 = vunpack.c.l.s4 1966171168
          %v3178 = vunpack.c.0.s8 %v3177
          %v3179 = vlaneseq
          %v3180 = vshrl.u32 %v3179, 7
          %v3181 = vsub.s32 %v3178, %v3180
          %v3182 = vrot.slane %v3160, %v3181
          %v3184 = vunpack.c.l.s4 1966171168
          %v3185 = vunpack.c.0.s8 %v3184
          %v3186 = vlaneseq
          %v3187 = vshrl.u32 %v3186, 7
          %v3188 = vsub.s32 %v3185, %v3187
          %v3189 = vrot.slane %v3161, %v3188
          %v3190 = vcombine.low %v3168, %v3182
          %v3191 = vcombine.high %v3168, %v3182
          %v3192 = vcombine.low %v3175, %v3189
          %v3193 = vcombine.low %v3102, %v3103
          %v3194 = vcombine.low %v3104, %v3105
          %v3195 = vcombine.low %v3106, %v3107
          %v3196 = vcombine.low %v3108, %v3109
          %v3198 = vunpack.c.l.s4 1966171168
          %v3199 = vunpack.c.0.s8 %v3198
          %v3200 = vlaneseq
          %v3201 = vshrl.u32 %v3200, 7
          %v3202 = vsub.s32 %v3199, %v3201
          %v3203 = vrot.slane %v3193, %v3202
          %v3205 = vunpack.c.l.s4 1966171168
          %v3206 = vunpack.c.0.s8 %v3205
          %v3207 = vlaneseq
          %v3208 = vshrl.u32 %v3207, 7
          %v3209 = vsub.s32 %v3206, %v3208
          %v3210 = vrot.slane %v3194, %v3209
          %v3212 = vunpack.c.l.s4 1966171168
          %v3213 = vunpack.c.0.s8 %v3212
          %v3214 = vlaneseq
          %v3215 = vshrl.u32 %v3214, 7
          %v3216 = vsub.s32 %v3213, %v3215
          %v3217 = vrot.slane %v3195, %v3216
          %v3219 = vunpack.c.l.s4 1966171168
          %v3220 = vunpack.c.0.s8 %v3219
          %v3221 = vlaneseq
          %v3222 = vshrl.u32 %v3221, 7
          %v3223 = vsub.s32 %v3220, %v3222
          %v3224 = vrot.slane %v3196, %v3223
          %v3225 = vcombine.low %v3203, %v3210
          %v3226 = vcombine.high %v3203, %v3210
          %v3227 = vcombine.low %v3217, %v3224
          %v3228 = vcombine.high %v3217, %v3224
          %v3230 = vunpack.c.l.s4 1966171168
          %v3231 = vunpack.c.0.s8 %v3230
          %v3232 = vlaneseq
          %v3233 = vshrl.u32 %v3232, 7
          %v3234 = vsub.s32 %v3231, %v3233
          %v3235 = vrot.slane %v3225, %v3234
          %v3237 = vunpack.c.l.s4 1966171168
          %v3238 = vunpack.c.0.s8 %v3237
          %v3239 = vlaneseq
          %v3240 = vshrl.u32 %v3239, 7
          %v3241 = vsub.s32 %v3238, %v3240
          %v3242 = vrot.slane %v3226, %v3241
          %v3244 = vunpack.c.l.s4 1966171168
          %v3245 = vunpack.c.0.s8 %v3244
          %v3246 = vlaneseq
          %v3247 = vshrl.u32 %v3246, 7
          %v3248 = vsub.s32 %v3245, %v3247
          %v3249 = vrot.slane %v3227, %v3248
          %v3251 = vunpack.c.l.s4 1966171168
          %v3252 = vunpack.c.0.s8 %v3251
          %v3253 = vlaneseq
          %v3254 = vshrl.u32 %v3253, 7
          %v3255 = vsub.s32 %v3252, %v3254
          %v3256 = vrot.slane %v3228, %v3255
          %v3257 = vcombine.low %v3235, %v3249
          %v3258 = vcombine.high %v3235, %v3249
          %v3259 = vcombine.low %v3242, %v3256
          %3260 = vrot.lane.b32.xlu0 %v3190, 15
          %v3261 = vpop.permute.xlu0 %3260
          %3262 = vrot.lane.b32.xlu0 %v3192, 15
          %v3263 = vpop.permute.xlu0 %3262
          %3264 = vrot.lane.b32.xlu0 %v3191, 15
          %v3265 = vpop.permute.xlu0 %3264
          %3266 = vrot.lane.b32.xlu0 %v3257, 15
          %v3267 = vpop.permute.xlu0 %3266
          %3268 = vrot.lane.b32.xlu0 %v3259, 15
          %v3269 = vpop.permute.xlu0 %3268
          %3270 = vrot.lane.b32.xlu0 %v3258, 15
          %v3271 = vpop.permute.xlu0 %3270
          %v3272 = vsel %vm1264, %v3261, %v3263
          %v3273 = vsel %vm1264, %v3263, %v3265
          %v3274 = vsel %vm1264, %v3267, %v3269
          %v3275 = vsel %vm1264, %v3269, %v3271
          %v3280 = vsel %vm1100, %v3272, 0.0
          %v3281 = vsel %vm1101, %v3273, 0.0
          %v3282 = vsel %vm1100, %v3274, 0.0
          %v3283 = vsel %vm1101, %v3275, 0.0
          %3284 = vst [vmem:[#allocation3 + $0x40] sm:$0xff] %v3280
          %3285 = vst [vmem:[#allocation3 + $0x48] sm:$0xff] %v3281
          %3286 = vst [vmem:[#allocation3 + $0x50] sm:$0xff] %v3282
          %3287 = vst [vmem:[#allocation3 + $0x58] sm:$0xff] %v3283
          %v3288 = vld [vmem:[#allocation2] sm:$0x7]
          %v3289 = vld [vmem:[#allocation2 + $0x4] sm:$0x7]
          %v3290 = vld [vmem:[#allocation2 + $0x8] sm:$0x7]
          %v3291 = vld [vmem:[#allocation2 + $0xc] sm:$0x7]
          %v3292 = vld [vmem:[#allocation2 + $0x10] sm:$0x7]
          %v3293 = vld [vmem:[#allocation2 + $0x14] sm:$0x7]
          %v3294 = vld [vmem:[#allocation2 + $0x18] sm:$0x7]
          %v3295 = vld [vmem:[#allocation2 + $0x1c] sm:$0x7]
          %v3296 = vld [vmem:[#allocation2 + $0x20] sm:$0x7]
          %v3297 = vld [vmem:[#allocation2 + $0x24] sm:$0x7]
          %v3298 = vld [vmem:[#allocation2 + $0x28] sm:$0x7]
          %v3299 = vld [vmem:[#allocation2 + $0x2c] sm:$0x7]
          %v3300 = vld [vmem:[#allocation2 + $0x30] sm:$0x7]
          %v3301 = vld [vmem:[#allocation2 + $0x34] sm:$0x7]
          %v3302 = vld [vmem:[#allocation2 + $0x38] sm:$0x7]
          %v3303 = vld [vmem:[#allocation2 + $0x3c] sm:$0x7]
          %v3320 = vcombine.low %v3288, %v3289
          %v3321 = vcombine.low %v3290, %v3291
          %v3322 = vcombine.low %v3292, %v3293
          %v3323 = vcombine.low %v3294, %v3295
          %v3325 = vunpack.c.l.s4 1966171168
          %v3326 = vunpack.c.0.s8 %v3325
          %v3327 = vlaneseq
          %v3328 = vshrl.u32 %v3327, 7
          %v3329 = vsub.s32 %v3326, %v3328
          %v3330 = vrot.slane %v3320, %v3329
          %v3332 = vunpack.c.l.s4 1966171168
          %v3333 = vunpack.c.0.s8 %v3332
          %v3334 = vlaneseq
          %v3335 = vshrl.u32 %v3334, 7
          %v3336 = vsub.s32 %v3333, %v3335
          %v3337 = vrot.slane %v3321, %v3336
          %v3339 = vunpack.c.l.s4 1966171168
          %v3340 = vunpack.c.0.s8 %v3339
          %v3341 = vlaneseq
          %v3342 = vshrl.u32 %v3341, 7
          %v3343 = vsub.s32 %v3340, %v3342
          %v3344 = vrot.slane %v3322, %v3343
          %v3346 = vunpack.c.l.s4 1966171168
          %v3347 = vunpack.c.0.s8 %v3346
          %v3348 = vlaneseq
          %v3349 = vshrl.u32 %v3348, 7
          %v3350 = vsub.s32 %v3347, %v3349
          %v3351 = vrot.slane %v3323, %v3350
          %v3352 = vcombine.low %v3330, %v3337
          %v3353 = vcombine.high %v3330, %v3337
          %v3354 = vcombine.low %v3344, %v3351
          %v3355 = vcombine.high %v3344, %v3351
          %v3357 = vunpack.c.l.s4 1966171168
          %v3358 = vunpack.c.0.s8 %v3357
          %v3359 = vlaneseq
          %v3360 = vshrl.u32 %v3359, 7
          %v3361 = vsub.s32 %v3358, %v3360
          %v3362 = vrot.slane %v3352, %v3361
          %v3364 = vunpack.c.l.s4 1966171168
          %v3365 = vunpack.c.0.s8 %v3364
          %v3366 = vlaneseq
          %v3367 = vshrl.u32 %v3366, 7
          %v3368 = vsub.s32 %v3365, %v3367
          %v3369 = vrot.slane %v3353, %v3368
          %v3371 = vunpack.c.l.s4 1966171168
          %v3372 = vunpack.c.0.s8 %v3371
          %v3373 = vlaneseq
          %v3374 = vshrl.u32 %v3373, 7
          %v3375 = vsub.s32 %v3372, %v3374
          %v3376 = vrot.slane %v3354, %v3375
          %v3378 = vunpack.c.l.s4 1966171168
          %v3379 = vunpack.c.0.s8 %v3378
          %v3380 = vlaneseq
          %v3381 = vshrl.u32 %v3380, 7
          %v3382 = vsub.s32 %v3379, %v3381
          %v3383 = vrot.slane %v3355, %v3382
          %v3384 = vcombine.low %v3362, %v3376
          %v3385 = vcombine.high %v3362, %v3376
          %v3386 = vcombine.low %v3369, %v3383
          %v3387 = vcombine.low %v3296, %v3297
          %v3388 = vcombine.low %v3298, %v3299
          %v3389 = vcombine.low %v3300, %v3301
          %v3390 = vcombine.low %v3302, %v3303
          %v3392 = vunpack.c.l.s4 1966171168
          %v3393 = vunpack.c.0.s8 %v3392
          %v3394 = vlaneseq
          %v3395 = vshrl.u32 %v3394, 7
          %v3396 = vsub.s32 %v3393, %v3395
          %v3397 = vrot.slane %v3387, %v3396
          %v3399 = vunpack.c.l.s4 1966171168
          %v3400 = vunpack.c.0.s8 %v3399
          %v3401 = vlaneseq
          %v3402 = vshrl.u32 %v3401, 7
          %v3403 = vsub.s32 %v3400, %v3402
          %v3404 = vrot.slane %v3388, %v3403
          %v3406 = vunpack.c.l.s4 1966171168
          %v3407 = vunpack.c.0.s8 %v3406
          %v3408 = vlaneseq
          %v3409 = vshrl.u32 %v3408, 7
          %v3410 = vsub.s32 %v3407, %v3409
          %v3411 = vrot.slane %v3389, %v3410
          %v3413 = vunpack.c.l.s4 1966171168
          %v3414 = vunpack.c.0.s8 %v3413
          %v3415 = vlaneseq
          %v3416 = vshrl.u32 %v3415, 7
          %v3417 = vsub.s32 %v3414, %v3416
          %v3418 = vrot.slane %v3390, %v3417
          %v3419 = vcombine.low %v3397, %v3404
          %v3420 = vcombine.high %v3397, %v3404
          %v3421 = vcombine.low %v3411, %v3418
          %v3422 = vcombine.high %v3411, %v3418
          %v3424 = vunpack.c.l.s4 1966171168
          %v3425 = vunpack.c.0.s8 %v3424
          %v3426 = vlaneseq
          %v3427 = vshrl.u32 %v3426, 7
          %v3428 = vsub.s32 %v3425, %v3427
          %v3429 = vrot.slane %v3419, %v3428
          %v3431 = vunpack.c.l.s4 1966171168
          %v3432 = vunpack.c.0.s8 %v3431
          %v3433 = vlaneseq
          %v3434 = vshrl.u32 %v3433, 7
          %v3435 = vsub.s32 %v3432, %v3434
          %v3436 = vrot.slane %v3420, %v3435
          %v3438 = vunpack.c.l.s4 1966171168
          %v3439 = vunpack.c.0.s8 %v3438
          %v3440 = vlaneseq
          %v3441 = vshrl.u32 %v3440, 7
          %v3442 = vsub.s32 %v3439, %v3441
          %v3443 = vrot.slane %v3421, %v3442
          %v3445 = vunpack.c.l.s4 1966171168
          %v3446 = vunpack.c.0.s8 %v3445
          %v3447 = vlaneseq
          %v3448 = vshrl.u32 %v3447, 7
          %v3449 = vsub.s32 %v3446, %v3448
          %v3450 = vrot.slane %v3422, %v3449
          %v3451 = vcombine.low %v3429, %v3443
          %v3452 = vcombine.high %v3429, %v3443
          %v3453 = vcombine.low %v3436, %v3450
          %3454 = vrot.lane.b32.xlu0 %v3384, 1
          %v3455 = vpop.permute.xlu0 %3454
          %3456 = vrot.lane.b32.xlu0 %v3386, 1
          %v3457 = vpop.permute.xlu0 %3456
          %3458 = vrot.lane.b32.xlu0 %v3385, 1
          %v3459 = vpop.permute.xlu0 %3458
          %3460 = vrot.lane.b32.xlu0 %v3451, 1
          %v3461 = vpop.permute.xlu0 %3460
          %3462 = vrot.lane.b32.xlu0 %v3453, 1
          %v3463 = vpop.permute.xlu0 %3462
          %3464 = vrot.lane.b32.xlu0 %v3452, 1
          %v3465 = vpop.permute.xlu0 %3464
          %v3466 = vsel %vm1459, %v3455, %v3457
          %v3467 = vsel %vm1459, %v3457, %v3459
          %v3468 = vsel %vm1459, %v3461, %v3463
          %v3469 = vsel %vm1459, %v3463, %v3465
          %v3474 = vsel %vm703, %v3466, 0.0
          %v3475 = vsel %vm704, %v3467, 0.0
          %v3476 = vsel %vm703, %v3468, 0.0
          %v3477 = vsel %vm704, %v3469, 0.0
          %3478 = vst [vmem:[#allocation3 + $0x60] sm:$0xff] %v3474
          %3479 = vst [vmem:[#allocation3 + $0x68] sm:$0xff] %v3475
          %3480 = vst [vmem:[#allocation3 + $0x70] sm:$0xff] %v3476
          %3481 = vst [vmem:[#allocation3 + $0x78] sm:$0xff] %v3477
          %v3482 = vld [vmem:[#allocation2 + $0x1] sm:$0x3]
          %v3483 = vld [vmem:[#allocation2 + $0x5] sm:$0x3]
          %v3484 = vld [vmem:[#allocation2 + $0x9] sm:$0x3]
          %v3485 = vld [vmem:[#allocation2 + $0xd] sm:$0x3]
          %v3486 = vld [vmem:[#allocation2 + $0x11] sm:$0x3]
          %v3487 = vld [vmem:[#allocation2 + $0x15] sm:$0x3]
          %v3488 = vld [vmem:[#allocation2 + $0x19] sm:$0x3]
          %v3489 = vld [vmem:[#allocation2 + $0x1d] sm:$0x3]
          %v3490 = vld [vmem:[#allocation2 + $0x21] sm:$0x3]
          %v3491 = vld [vmem:[#allocation2 + $0x25] sm:$0x3]
          %v3492 = vld [vmem:[#allocation2 + $0x29] sm:$0x3]
          %v3493 = vld [vmem:[#allocation2 + $0x2d] sm:$0x3]
          %v3494 = vld [vmem:[#allocation2 + $0x31] sm:$0x3]
          %v3495 = vld [vmem:[#allocation2 + $0x35] sm:$0x3]
          %v3496 = vld [vmem:[#allocation2 + $0x39] sm:$0x3]
          %v3497 = vld [vmem:[#allocation2 + $0x3d] sm:$0x3]
          %v3514 = vcombine.low %v3482, %v3483
          %v3515 = vcombine.low %v3484, %v3485
          %v3516 = vcombine.low %v3486, %v3487
          %v3517 = vcombine.low %v3488, %v3489
          %v3519 = vunpack.c.l.s4 1966171168
          %v3520 = vunpack.c.0.s8 %v3519
          %v3521 = vlaneseq
          %v3522 = vshrl.u32 %v3521, 7
          %v3523 = vsub.s32 %v3520, %v3522
          %v3524 = vrot.slane %v3514, %v3523
          %v3526 = vunpack.c.l.s4 1966171168
          %v3527 = vunpack.c.0.s8 %v3526
          %v3528 = vlaneseq
          %v3529 = vshrl.u32 %v3528, 7
          %v3530 = vsub.s32 %v3527, %v3529
          %v3531 = vrot.slane %v3515, %v3530
          %v3533 = vunpack.c.l.s4 1966171168
          %v3534 = vunpack.c.0.s8 %v3533
          %v3535 = vlaneseq
          %v3536 = vshrl.u32 %v3535, 7
          %v3537 = vsub.s32 %v3534, %v3536
          %v3538 = vrot.slane %v3516, %v3537
          %v3540 = vunpack.c.l.s4 1966171168
          %v3541 = vunpack.c.0.s8 %v3540
          %v3542 = vlaneseq
          %v3543 = vshrl.u32 %v3542, 7
          %v3544 = vsub.s32 %v3541, %v3543
          %v3545 = vrot.slane %v3517, %v3544
          %v3546 = vcombine.low %v3524, %v3531
          %v3547 = vcombine.high %v3524, %v3531
          %v3548 = vcombine.low %v3538, %v3545
          %v3549 = vcombine.high %v3538, %v3545
          %v3551 = vunpack.c.l.s4 1966171168
          %v3552 = vunpack.c.0.s8 %v3551
          %v3553 = vlaneseq
          %v3554 = vshrl.u32 %v3553, 7
          %v3555 = vsub.s32 %v3552, %v3554
          %v3556 = vrot.slane %v3546, %v3555
          %v3558 = vunpack.c.l.s4 1966171168
          %v3559 = vunpack.c.0.s8 %v3558
          %v3560 = vlaneseq
          %v3561 = vshrl.u32 %v3560, 7
          %v3562 = vsub.s32 %v3559, %v3561
          %v3563 = vrot.slane %v3547, %v3562
          %v3565 = vunpack.c.l.s4 1966171168
          %v3566 = vunpack.c.0.s8 %v3565
          %v3567 = vlaneseq
          %v3568 = vshrl.u32 %v3567, 7
          %v3569 = vsub.s32 %v3566, %v3568
          %v3570 = vrot.slane %v3548, %v3569
          %v3572 = vunpack.c.l.s4 1966171168
          %v3573 = vunpack.c.0.s8 %v3572
          %v3574 = vlaneseq
          %v3575 = vshrl.u32 %v3574, 7
          %v3576 = vsub.s32 %v3573, %v3575
          %v3577 = vrot.slane %v3549, %v3576
          %v3578 = vcombine.low %v3556, %v3570
          %v3579 = vcombine.low %v3563, %v3577
          %v3580 = vcombine.low %v3490, %v3491
          %v3581 = vcombine.low %v3492, %v3493
          %v3582 = vcombine.low %v3494, %v3495
          %v3583 = vcombine.low %v3496, %v3497
          %v3585 = vunpack.c.l.s4 1966171168
          %v3586 = vunpack.c.0.s8 %v3585
          %v3587 = vlaneseq
          %v3588 = vshrl.u32 %v3587, 7
          %v3589 = vsub.s32 %v3586, %v3588
          %v3590 = vrot.slane %v3580, %v3589
          %v3592 = vunpack.c.l.s4 1966171168
          %v3593 = vunpack.c.0.s8 %v3592
          %v3594 = vlaneseq
          %v3595 = vshrl.u32 %v3594, 7
          %v3596 = vsub.s32 %v3593, %v3595
          %v3597 = vrot.slane %v3581, %v3596
          %v3599 = vunpack.c.l.s4 1966171168
          %v3600 = vunpack.c.0.s8 %v3599
          %v3601 = vlaneseq
          %v3602 = vshrl.u32 %v3601, 7
          %v3603 = vsub.s32 %v3600, %v3602
          %v3604 = vrot.slane %v3582, %v3603
          %v3606 = vunpack.c.l.s4 1966171168
          %v3607 = vunpack.c.0.s8 %v3606
          %v3608 = vlaneseq
          %v3609 = vshrl.u32 %v3608, 7
          %v3610 = vsub.s32 %v3607, %v3609
          %v3611 = vrot.slane %v3583, %v3610
          %v3612 = vcombine.low %v3590, %v3597
          %v3613 = vcombine.high %v3590, %v3597
          %v3614 = vcombine.low %v3604, %v3611
          %v3615 = vcombine.high %v3604, %v3611
          %v3617 = vunpack.c.l.s4 1966171168
          %v3618 = vunpack.c.0.s8 %v3617
          %v3619 = vlaneseq
          %v3620 = vshrl.u32 %v3619, 7
          %v3621 = vsub.s32 %v3618, %v3620
          %v3622 = vrot.slane %v3612, %v3621
          %v3624 = vunpack.c.l.s4 1966171168
          %v3625 = vunpack.c.0.s8 %v3624
          %v3626 = vlaneseq
          %v3627 = vshrl.u32 %v3626, 7
          %v3628 = vsub.s32 %v3625, %v3627
          %v3629 = vrot.slane %v3613, %v3628
          %v3631 = vunpack.c.l.s4 1966171168
          %v3632 = vunpack.c.0.s8 %v3631
          %v3633 = vlaneseq
          %v3634 = vshrl.u32 %v3633, 7
          %v3635 = vsub.s32 %v3632, %v3634
          %v3636 = vrot.slane %v3614, %v3635
          %v3638 = vunpack.c.l.s4 1966171168
          %v3639 = vunpack.c.0.s8 %v3638
          %v3640 = vlaneseq
          %v3641 = vshrl.u32 %v3640, 7
          %v3642 = vsub.s32 %v3639, %v3641
          %v3643 = vrot.slane %v3615, %v3642
          %v3644 = vcombine.low %v3622, %v3636
          %v3645 = vcombine.low %v3629, %v3643
          %3650 = vst [vmem:[#allocation3 + $0x80] sm:$0xff] %v3578
          %3651 = vst [vmem:[#allocation3 + $0x88] sm:$0xff] %v3579
          %3652 = vst [vmem:[#allocation3 + $0x90] sm:$0xff] %v3644
          %3653 = vst [vmem:[#allocation3 + $0x98] sm:$0xff] %v3645
          %v3654 = vld [vmem:[#allocation2 + $0x1] sm:$0x7]
          %v3655 = vld [vmem:[#allocation2 + $0x5] sm:$0x7]
          %v3656 = vld [vmem:[#allocation2 + $0x9] sm:$0x7]
          %v3657 = vld [vmem:[#allocation2 + $0xd] sm:$0x7]
          %v3658 = vld [vmem:[#allocation2 + $0x11] sm:$0x7]
          %v3659 = vld [vmem:[#allocation2 + $0x15] sm:$0x7]
          %v3660 = vld [vmem:[#allocation2 + $0x19] sm:$0x7]
          %v3661 = vld [vmem:[#allocation2 + $0x1d] sm:$0x7]
          %v3662 = vld [vmem:[#allocation2 + $0x21] sm:$0x7]
          %v3663 = vld [vmem:[#allocation2 + $0x25] sm:$0x7]
          %v3664 = vld [vmem:[#allocation2 + $0x29] sm:$0x7]
          %v3665 = vld [vmem:[#allocation2 + $0x2d] sm:$0x7]
          %v3666 = vld [vmem:[#allocation2 + $0x31] sm:$0x7]
          %v3667 = vld [vmem:[#allocation2 + $0x35] sm:$0x7]
          %v3668 = vld [vmem:[#allocation2 + $0x39] sm:$0x7]
          %v3669 = vld [vmem:[#allocation2 + $0x3d] sm:$0x7]
          %v3686 = vcombine.low %v3654, %v3655
          %v3687 = vcombine.low %v3656, %v3657
          %v3688 = vcombine.low %v3658, %v3659
          %v3689 = vcombine.low %v3660, %v3661
          %v3691 = vunpack.c.l.s4 1966171168
          %v3692 = vunpack.c.0.s8 %v3691
          %v3693 = vlaneseq
          %v3694 = vshrl.u32 %v3693, 7
          %v3695 = vsub.s32 %v3692, %v3694
          %v3696 = vrot.slane %v3686, %v3695
          %v3698 = vunpack.c.l.s4 1966171168
          %v3699 = vunpack.c.0.s8 %v3698
          %v3700 = vlaneseq
          %v3701 = vshrl.u32 %v3700, 7
          %v3702 = vsub.s32 %v3699, %v3701
          %v3703 = vrot.slane %v3687, %v3702
          %v3705 = vunpack.c.l.s4 1966171168
          %v3706 = vunpack.c.0.s8 %v3705
          %v3707 = vlaneseq
          %v3708 = vshrl.u32 %v3707, 7
          %v3709 = vsub.s32 %v3706, %v3708
          %v3710 = vrot.slane %v3688, %v3709
          %v3712 = vunpack.c.l.s4 1966171168
          %v3713 = vunpack.c.0.s8 %v3712
          %v3714 = vlaneseq
          %v3715 = vshrl.u32 %v3714, 7
          %v3716 = vsub.s32 %v3713, %v3715
          %v3717 = vrot.slane %v3689, %v3716
          %v3718 = vcombine.low %v3696, %v3703
          %v3719 = vcombine.high %v3696, %v3703
          %v3720 = vcombine.low %v3710, %v3717
          %v3721 = vcombine.high %v3710, %v3717
          %v3723 = vunpack.c.l.s4 1966171168
          %v3724 = vunpack.c.0.s8 %v3723
          %v3725 = vlaneseq
          %v3726 = vshrl.u32 %v3725, 7
          %v3727 = vsub.s32 %v3724, %v3726
          %v3728 = vrot.slane %v3718, %v3727
          %v3730 = vunpack.c.l.s4 1966171168
          %v3731 = vunpack.c.0.s8 %v3730
          %v3732 = vlaneseq
          %v3733 = vshrl.u32 %v3732, 7
          %v3734 = vsub.s32 %v3731, %v3733
          %v3735 = vrot.slane %v3719, %v3734
          %v3737 = vunpack.c.l.s4 1966171168
          %v3738 = vunpack.c.0.s8 %v3737
          %v3739 = vlaneseq
          %v3740 = vshrl.u32 %v3739, 7
          %v3741 = vsub.s32 %v3738, %v3740
          %v3742 = vrot.slane %v3720, %v3741
          %v3744 = vunpack.c.l.s4 1966171168
          %v3745 = vunpack.c.0.s8 %v3744
          %v3746 = vlaneseq
          %v3747 = vshrl.u32 %v3746, 7
          %v3748 = vsub.s32 %v3745, %v3747
          %v3749 = vrot.slane %v3721, %v3748
          %v3750 = vcombine.low %v3728, %v3742
          %v3751 = vcombine.high %v3728, %v3742
          %v3752 = vcombine.low %v3735, %v3749
          %v3753 = vcombine.low %v3662, %v3663
          %v3754 = vcombine.low %v3664, %v3665
          %v3755 = vcombine.low %v3666, %v3667
          %v3756 = vcombine.low %v3668, %v3669
          %v3758 = vunpack.c.l.s4 1966171168
          %v3759 = vunpack.c.0.s8 %v3758
          %v3760 = vlaneseq
          %v3761 = vshrl.u32 %v3760, 7
          %v3762 = vsub.s32 %v3759, %v3761
          %v3763 = vrot.slane %v3753, %v3762
          %v3765 = vunpack.c.l.s4 1966171168
          %v3766 = vunpack.c.0.s8 %v3765
          %v3767 = vlaneseq
          %v3768 = vshrl.u32 %v3767, 7
          %v3769 = vsub.s32 %v3766, %v3768
          %v3770 = vrot.slane %v3754, %v3769
          %v3772 = vunpack.c.l.s4 1966171168
          %v3773 = vunpack.c.0.s8 %v3772
          %v3774 = vlaneseq
          %v3775 = vshrl.u32 %v3774, 7
          %v3776 = vsub.s32 %v3773, %v3775
          %v3777 = vrot.slane %v3755, %v3776
          %v3779 = vunpack.c.l.s4 1966171168
          %v3780 = vunpack.c.0.s8 %v3779
          %v3781 = vlaneseq
          %v3782 = vshrl.u32 %v3781, 7
          %v3783 = vsub.s32 %v3780, %v3782
          %v3784 = vrot.slane %v3756, %v3783
          %v3785 = vcombine.low %v3763, %v3770
          %v3786 = vcombine.high %v3763, %v3770
          %v3787 = vcombine.low %v3777, %v3784
          %v3788 = vcombine.high %v3777, %v3784
          %v3790 = vunpack.c.l.s4 1966171168
          %v3791 = vunpack.c.0.s8 %v3790
          %v3792 = vlaneseq
          %v3793 = vshrl.u32 %v3792, 7
          %v3794 = vsub.s32 %v3791, %v3793
          %v3795 = vrot.slane %v3785, %v3794
          %v3797 = vunpack.c.l.s4 1966171168
          %v3798 = vunpack.c.0.s8 %v3797
          %v3799 = vlaneseq
          %v3800 = vshrl.u32 %v3799, 7
          %v3801 = vsub.s32 %v3798, %v3800
          %v3802 = vrot.slane %v3786, %v3801
          %v3804 = vunpack.c.l.s4 1966171168
          %v3805 = vunpack.c.0.s8 %v3804
          %v3806 = vlaneseq
          %v3807 = vshrl.u32 %v3806, 7
          %v3808 = vsub.s32 %v3805, %v3807
          %v3809 = vrot.slane %v3787, %v3808
          %v3811 = vunpack.c.l.s4 1966171168
          %v3812 = vunpack.c.0.s8 %v3811
          %v3813 = vlaneseq
          %v3814 = vshrl.u32 %v3813, 7
          %v3815 = vsub.s32 %v3812, %v3814
          %v3816 = vrot.slane %v3788, %v3815
          %v3817 = vcombine.low %v3795, %v3809
          %v3818 = vcombine.high %v3795, %v3809
          %v3819 = vcombine.low %v3802, %v3816
          %3820 = vrot.lane.b32.xlu0 %v3750, 127
          %v3821 = vpop.permute.xlu0 %3820
          %3822 = vrot.lane.b32.xlu0 %v3752, 127
          %v3823 = vpop.permute.xlu0 %3822
          %3824 = vrot.lane.b32.xlu0 %v3751, 127
          %v3825 = vpop.permute.xlu0 %3824
          %3826 = vrot.lane.b32.xlu0 %v3817, 127
          %v3827 = vpop.permute.xlu0 %3826
          %3828 = vrot.lane.b32.xlu0 %v3819, 127
          %v3829 = vpop.permute.xlu0 %3828
          %3830 = vrot.lane.b32.xlu0 %v3818, 127
          %v3831 = vpop.permute.xlu0 %3830
          %v3832 = vsel %vm1826, %v3821, %v3823
          %v3833 = vsel %vm1826, %v3823, %v3825
          %v3834 = vsel %vm1826, %v3827, %v3829
          %v3835 = vsel %vm1826, %v3829, %v3831
          %v3840 = vsel %vm1100, %v3832, 0.0
          %v3841 = vsel %vm1101, %v3833, 0.0
          %v3842 = vsel %vm1100, %v3834, 0.0
          %v3843 = vsel %vm1101, %v3835, 0.0
          %3844 = vst [vmem:[#allocation3 + $0xa0] sm:$0xff] %v3840
          %3845 = vst [vmem:[#allocation3 + $0xa8] sm:$0xff] %v3841
          %3846 = vst [vmem:[#allocation3 + $0xb0] sm:$0xff] %v3842
          %3847 = vst [vmem:[#allocation3 + $0xb8] sm:$0xff] %v3843
          %v3848 = vld [vmem:[#allocation2 + $0x1] sm:$0x7]
          %v3849 = vld [vmem:[#allocation2 + $0x5] sm:$0x7]
          %v3850 = vld [vmem:[#allocation2 + $0x9] sm:$0x7]
          %v3851 = vld [vmem:[#allocation2 + $0xd] sm:$0x7]
          %v3852 = vld [vmem:[#allocation2 + $0x11] sm:$0x7]
          %v3853 = vld [vmem:[#allocation2 + $0x15] sm:$0x7]
          %v3854 = vld [vmem:[#allocation2 + $0x19] sm:$0x7]
          %v3855 = vld [vmem:[#allocation2 + $0x1d] sm:$0x7]
          %v3856 = vld [vmem:[#allocation2 + $0x21] sm:$0x7]
          %v3857 = vld [vmem:[#allocation2 + $0x25] sm:$0x7]
          %v3858 = vld [vmem:[#allocation2 + $0x29] sm:$0x7]
          %v3859 = vld [vmem:[#allocation2 + $0x2d] sm:$0x7]
          %v3860 = vld [vmem:[#allocation2 + $0x31] sm:$0x7]
          %v3861 = vld [vmem:[#allocation2 + $0x35] sm:$0x7]
          %v3862 = vld [vmem:[#allocation2 + $0x39] sm:$0x7]
          %v3863 = vld [vmem:[#allocation2 + $0x3d] sm:$0x7]
          %v3880 = vcombine.low %v3848, %v3849
          %v3881 = vcombine.low %v3850, %v3851
          %v3882 = vcombine.low %v3852, %v3853
          %v3883 = vcombine.low %v3854, %v3855
          %v3885 = vunpack.c.l.s4 1966171168
          %v3886 = vunpack.c.0.s8 %v3885
          %v3887 = vlaneseq
          %v3888 = vshrl.u32 %v3887, 7
          %v3889 = vsub.s32 %v3886, %v3888
          %v3890 = vrot.slane %v3880, %v3889
          %v3892 = vunpack.c.l.s4 1966171168
          %v3893 = vunpack.c.0.s8 %v3892
          %v3894 = vlaneseq
          %v3895 = vshrl.u32 %v3894, 7
          %v3896 = vsub.s32 %v3893, %v3895
          %v3897 = vrot.slane %v3881, %v3896
          %v3899 = vunpack.c.l.s4 1966171168
          %v3900 = vunpack.c.0.s8 %v3899
          %v3901 = vlaneseq
          %v3902 = vshrl.u32 %v3901, 7
          %v3903 = vsub.s32 %v3900, %v3902
          %v3904 = vrot.slane %v3882, %v3903
          %v3906 = vunpack.c.l.s4 1966171168
          %v3907 = vunpack.c.0.s8 %v3906
          %v3908 = vlaneseq
          %v3909 = vshrl.u32 %v3908, 7
          %v3910 = vsub.s32 %v3907, %v3909
          %v3911 = vrot.slane %v3883, %v3910
          %v3912 = vcombine.low %v3890, %v3897
          %v3913 = vcombine.high %v3890, %v3897
          %v3914 = vcombine.low %v3904, %v3911
          %v3915 = vcombine.high %v3904, %v3911
          %v3917 = vunpack.c.l.s4 1966171168
          %v3918 = vunpack.c.0.s8 %v3917
          %v3919 = vlaneseq
          %v3920 = vshrl.u32 %v3919, 7
          %v3921 = vsub.s32 %v3918, %v3920
          %v3922 = vrot.slane %v3912, %v3921
          %v3924 = vunpack.c.l.s4 1966171168
          %v3925 = vunpack.c.0.s8 %v3924
          %v3926 = vlaneseq
          %v3927 = vshrl.u32 %v3926, 7
          %v3928 = vsub.s32 %v3925, %v3927
          %v3929 = vrot.slane %v3913, %v3928
          %v3931 = vunpack.c.l.s4 1966171168
          %v3932 = vunpack.c.0.s8 %v3931
          %v3933 = vlaneseq
          %v3934 = vshrl.u32 %v3933, 7
          %v3935 = vsub.s32 %v3932, %v3934
          %v3936 = vrot.slane %v3914, %v3935
          %v3938 = vunpack.c.l.s4 1966171168
          %v3939 = vunpack.c.0.s8 %v3938
          %v3940 = vlaneseq
          %v3941 = vshrl.u32 %v3940, 7
          %v3942 = vsub.s32 %v3939, %v3941
          %v3943 = vrot.slane %v3915, %v3942
          %v3944 = vcombine.low %v3922, %v3936
          %v3945 = vcombine.high %v3922, %v3936
          %v3946 = vcombine.low %v3929, %v3943
          %v3947 = vcombine.low %v3856, %v3857
          %v3948 = vcombine.low %v3858, %v3859
          %v3949 = vcombine.low %v3860, %v3861
          %v3950 = vcombine.low %v3862, %v3863
          %v3952 = vunpack.c.l.s4 1966171168
          %v3953 = vunpack.c.0.s8 %v3952
          %v3954 = vlaneseq
          %v3955 = vshrl.u32 %v3954, 7
          %v3956 = vsub.s32 %v3953, %v3955
          %v3957 = vrot.slane %v3947, %v3956
          %v3959 = vunpack.c.l.s4 1966171168
          %v3960 = vunpack.c.0.s8 %v3959
          %v3961 = vlaneseq
          %v3962 = vshrl.u32 %v3961, 7
          %v3963 = vsub.s32 %v3960, %v3962
          %v3964 = vrot.slane %v3948, %v3963
          %v3966 = vunpack.c.l.s4 1966171168
          %v3967 = vunpack.c.0.s8 %v3966
          %v3968 = vlaneseq
          %v3969 = vshrl.u32 %v3968, 7
          %v3970 = vsub.s32 %v3967, %v3969
          %v3971 = vrot.slane %v3949, %v3970
          %v3973 = vunpack.c.l.s4 1966171168
          %v3974 = vunpack.c.0.s8 %v3973
          %v3975 = vlaneseq
          %v3976 = vshrl.u32 %v3975, 7
          %v3977 = vsub.s32 %v3974, %v3976
          %v3978 = vrot.slane %v3950, %v3977
          %v3979 = vcombine.low %v3957, %v3964
          %v3980 = vcombine.high %v3957, %v3964
          %v3981 = vcombine.low %v3971, %v3978
          %v3982 = vcombine.high %v3971, %v3978
          %v3984 = vunpack.c.l.s4 1966171168
          %v3985 = vunpack.c.0.s8 %v3984
          %v3986 = vlaneseq
          %v3987 = vshrl.u32 %v3986, 7
          %v3988 = vsub.s32 %v3985, %v3987
          %v3989 = vrot.slane %v3979, %v3988
          %v3991 = vunpack.c.l.s4 1966171168
          %v3992 = vunpack.c.0.s8 %v3991
          %v3993 = vlaneseq
          %v3994 = vshrl.u32 %v3993, 7
          %v3995 = vsub.s32 %v3992, %v3994
          %v3996 = vrot.slane %v3980, %v3995
          %v3998 = vunpack.c.l.s4 1966171168
          %v3999 = vunpack.c.0.s8 %v3998
          %v4000 = vlaneseq
          %v4001 = vshrl.u32 %v4000, 7
          %v4002 = vsub.s32 %v3999, %v4001
          %v4003 = vrot.slane %v3981, %v4002
          %v4005 = vunpack.c.l.s4 1966171168
          %v4006 = vunpack.c.0.s8 %v4005
          %v4007 = vlaneseq
          %v4008 = vshrl.u32 %v4007, 7
          %v4009 = vsub.s32 %v4006, %v4008
          %v4010 = vrot.slane %v3982, %v4009
          %v4011 = vcombine.low %v3989, %v4003
          %v4012 = vcombine.high %v3989, %v4003
          %v4013 = vcombine.low %v3996, %v4010
          %4014 = vrot.lane.b32.xlu0 %v3944, 113
          %v4015 = vpop.permute.xlu0 %4014
          %4016 = vrot.lane.b32.xlu0 %v3946, 113
          %v4017 = vpop.permute.xlu0 %4016
          %4018 = vrot.lane.b32.xlu0 %v3945, 113
          %v4019 = vpop.permute.xlu0 %4018
          %4020 = vrot.lane.b32.xlu0 %v4011, 113
          %v4021 = vpop.permute.xlu0 %4020
          %4022 = vrot.lane.b32.xlu0 %v4013, 113
          %v4023 = vpop.permute.xlu0 %4022
          %4024 = vrot.lane.b32.xlu0 %v4012, 113
          %v4025 = vpop.permute.xlu0 %4024
          %v4026 = vsel %vm2021, %v4015, %v4017
          %v4027 = vsel %vm2021, %v4017, %v4019
          %v4028 = vsel %vm2021, %v4021, %v4023
          %v4029 = vsel %vm2021, %v4023, %v4025
          %v4034 = vsel %vm703, %v4026, 0.0
          %v4035 = vsel %vm704, %v4027, 0.0
          %v4036 = vsel %vm703, %v4028, 0.0
          %v4037 = vsel %vm704, %v4029, 0.0
          %4038 = vst [vmem:[#allocation3 + $0xc0] sm:$0xff] %v4034
          %4039 = vst [vmem:[#allocation3 + $0xc8] sm:$0xff] %v4035
          %4040 = vst [vmem:[#allocation3 + $0xd0] sm:$0xff] %v4036
          %4041 = vst [vmem:[#allocation3 + $0xd8] sm:$0xff] %v4037
          %v4042 = vld [vmem:[#allocation2 + $0x1] sm:$0x7]
          %v4043 = vld [vmem:[#allocation2 + $0x5] sm:$0x7]
          %v4044 = vld [vmem:[#allocation2 + $0x9] sm:$0x7]
          %v4045 = vld [vmem:[#allocation2 + $0xd] sm:$0x7]
          %v4046 = vld [vmem:[#allocation2 + $0x11] sm:$0x7]
          %v4047 = vld [vmem:[#allocation2 + $0x15] sm:$0x7]
          %v4048 = vld [vmem:[#allocation2 + $0x19] sm:$0x7]
          %v4049 = vld [vmem:[#allocation2 + $0x1d] sm:$0x7]
          %v4050 = vld [vmem:[#allocation2 + $0x21] sm:$0x7]
          %v4051 = vld [vmem:[#allocation2 + $0x25] sm:$0x7]
          %v4052 = vld [vmem:[#allocation2 + $0x29] sm:$0x7]
          %v4053 = vld [vmem:[#allocation2 + $0x2d] sm:$0x7]
          %v4054 = vld [vmem:[#allocation2 + $0x31] sm:$0x7]
          %v4055 = vld [vmem:[#allocation2 + $0x35] sm:$0x7]
          %v4056 = vld [vmem:[#allocation2 + $0x39] sm:$0x7]
          %v4057 = vld [vmem:[#allocation2 + $0x3d] sm:$0x7]
          %v4074 = vcombine.low %v4042, %v4043
          %v4075 = vcombine.low %v4044, %v4045
          %v4076 = vcombine.low %v4046, %v4047
          %v4077 = vcombine.low %v4048, %v4049
          %v4079 = vunpack.c.l.s4 1966171168
          %v4080 = vunpack.c.0.s8 %v4079
          %v4081 = vlaneseq
          %v4082 = vshrl.u32 %v4081, 7
          %v4083 = vsub.s32 %v4080, %v4082
          %v4084 = vrot.slane %v4074, %v4083
          %v4086 = vunpack.c.l.s4 1966171168
          %v4087 = vunpack.c.0.s8 %v4086
          %v4088 = vlaneseq
          %v4089 = vshrl.u32 %v4088, 7
          %v4090 = vsub.s32 %v4087, %v4089
          %v4091 = vrot.slane %v4075, %v4090
          %v4093 = vunpack.c.l.s4 1966171168
          %v4094 = vunpack.c.0.s8 %v4093
          %v4095 = vlaneseq
          %v4096 = vshrl.u32 %v4095, 7
          %v4097 = vsub.s32 %v4094, %v4096
          %v4098 = vrot.slane %v4076, %v4097
          %v4100 = vunpack.c.l.s4 1966171168
          %v4101 = vunpack.c.0.s8 %v4100
          %v4102 = vlaneseq
          %v4103 = vshrl.u32 %v4102, 7
          %v4104 = vsub.s32 %v4101, %v4103
          %v4105 = vrot.slane %v4077, %v4104
          %v4106 = vcombine.low %v4084, %v4091
          %v4107 = vcombine.high %v4084, %v4091
          %v4108 = vcombine.low %v4098, %v4105
          %v4109 = vcombine.high %v4098, %v4105
          %v4111 = vunpack.c.l.s4 1966171168
          %v4112 = vunpack.c.0.s8 %v4111
          %v4113 = vlaneseq
          %v4114 = vshrl.u32 %v4113, 7
          %v4115 = vsub.s32 %v4112, %v4114
          %v4116 = vrot.slane %v4106, %v4115
          %v4118 = vunpack.c.l.s4 1966171168
          %v4119 = vunpack.c.0.s8 %v4118
          %v4120 = vlaneseq
          %v4121 = vshrl.u32 %v4120, 7
          %v4122 = vsub.s32 %v4119, %v4121
          %v4123 = vrot.slane %v4107, %v4122
          %v4125 = vunpack.c.l.s4 1966171168
          %v4126 = vunpack.c.0.s8 %v4125
          %v4127 = vlaneseq
          %v4128 = vshrl.u32 %v4127, 7
          %v4129 = vsub.s32 %v4126, %v4128
          %v4130 = vrot.slane %v4108, %v4129
          %v4132 = vunpack.c.l.s4 1966171168
          %v4133 = vunpack.c.0.s8 %v4132
          %v4134 = vlaneseq
          %v4135 = vshrl.u32 %v4134, 7
          %v4136 = vsub.s32 %v4133, %v4135
          %v4137 = vrot.slane %v4109, %v4136
          %v4138 = vcombine.low %v4116, %v4130
          %v4139 = vcombine.high %v4116, %v4130
          %v4140 = vcombine.low %v4123, %v4137
          %v4141 = vcombine.low %v4050, %v4051
          %v4142 = vcombine.low %v4052, %v4053
          %v4143 = vcombine.low %v4054, %v4055
          %v4144 = vcombine.low %v4056, %v4057
          %v4146 = vunpack.c.l.s4 1966171168
          %v4147 = vunpack.c.0.s8 %v4146
          %v4148 = vlaneseq
          %v4149 = vshrl.u32 %v4148, 7
          %v4150 = vsub.s32 %v4147, %v4149
          %v4151 = vrot.slane %v4141, %v4150
          %v4153 = vunpack.c.l.s4 1966171168
          %v4154 = vunpack.c.0.s8 %v4153
          %v4155 = vlaneseq
          %v4156 = vshrl.u32 %v4155, 7
          %v4157 = vsub.s32 %v4154, %v4156
          %v4158 = vrot.slane %v4142, %v4157
          %v4160 = vunpack.c.l.s4 1966171168
          %v4161 = vunpack.c.0.s8 %v4160
          %v4162 = vlaneseq
          %v4163 = vshrl.u32 %v4162, 7
          %v4164 = vsub.s32 %v4161, %v4163
          %v4165 = vrot.slane %v4143, %v4164
          %v4167 = vunpack.c.l.s4 1966171168
          %v4168 = vunpack.c.0.s8 %v4167
          %v4169 = vlaneseq
          %v4170 = vshrl.u32 %v4169, 7
          %v4171 = vsub.s32 %v4168, %v4170
          %v4172 = vrot.slane %v4144, %v4171
          %v4173 = vcombine.low %v4151, %v4158
          %v4174 = vcombine.high %v4151, %v4158
          %v4175 = vcombine.low %v4165, %v4172
          %v4176 = vcombine.high %v4165, %v4172
          %v4178 = vunpack.c.l.s4 1966171168
          %v4179 = vunpack.c.0.s8 %v4178
          %v4180 = vlaneseq
          %v4181 = vshrl.u32 %v4180, 7
          %v4182 = vsub.s32 %v4179, %v4181
          %v4183 = vrot.slane %v4173, %v4182
          %v4185 = vunpack.c.l.s4 1966171168
          %v4186 = vunpack.c.0.s8 %v4185
          %v4187 = vlaneseq
          %v4188 = vshrl.u32 %v4187, 7
          %v4189 = vsub.s32 %v4186, %v4188
          %v4190 = vrot.slane %v4174, %v4189
          %v4192 = vunpack.c.l.s4 1966171168
          %v4193 = vunpack.c.0.s8 %v4192
          %v4194 = vlaneseq
          %v4195 = vshrl.u32 %v4194, 7
          %v4196 = vsub.s32 %v4193, %v4195
          %v4197 = vrot.slane %v4175, %v4196
          %v4199 = vunpack.c.l.s4 1966171168
          %v4200 = vunpack.c.0.s8 %v4199
          %v4201 = vlaneseq
          %v4202 = vshrl.u32 %v4201, 7
          %v4203 = vsub.s32 %v4200, %v4202
          %v4204 = vrot.slane %v4176, %v4203
          %v4205 = vcombine.low %v4183, %v4197
          %v4206 = vcombine.high %v4183, %v4197
          %v4207 = vcombine.low %v4190, %v4204
          %4208 = vrot.lane.b32.xlu0 %v4138, 112
          %v4209 = vpop.permute.xlu0 %4208
          %4210 = vrot.lane.b32.xlu0 %v4140, 112
          %v4211 = vpop.permute.xlu0 %4210
          %4212 = vrot.lane.b32.xlu0 %v4139, 112
          %v4213 = vpop.permute.xlu0 %4212
          %4214 = vrot.lane.b32.xlu0 %v4205, 112
          %v4215 = vpop.permute.xlu0 %4214
          %4216 = vrot.lane.b32.xlu0 %v4207, 112
          %v4217 = vpop.permute.xlu0 %4216
          %4218 = vrot.lane.b32.xlu0 %v4206, 112
          %v4219 = vpop.permute.xlu0 %4218
          %v4220 = vsel %vm2216, %v4209, %v4211
          %v4221 = vsel %vm2216, %v4211, %v4213
          %v4222 = vsel %vm2216, %v4215, %v4217
          %v4223 = vsel %vm2216, %v4217, %v4219
          %4228 = vst [vmem:[#allocation3 + $0xe0] sm:$0xff] %v4220
          %4229 = vst [vmem:[#allocation3 + $0xe8] sm:$0xff] %v4221
          %4230 = vst [vmem:[#allocation3 + $0xf0] sm:$0xff] %v4222
          %4231 = vst [vmem:[#allocation3 + $0xf8] sm:$0xff] %v4223
          %v4232 = vld [vmem:[#allocation2 + $0x1] sm:$0x7]
          %v4233 = vld [vmem:[#allocation2 + $0x5] sm:$0x7]
          %v4234 = vld [vmem:[#allocation2 + $0x9] sm:$0x7]
          %v4235 = vld [vmem:[#allocation2 + $0xd] sm:$0x7]
          %v4236 = vld [vmem:[#allocation2 + $0x11] sm:$0x7]
          %v4237 = vld [vmem:[#allocation2 + $0x15] sm:$0x7]
          %v4238 = vld [vmem:[#allocation2 + $0x19] sm:$0x7]
          %v4239 = vld [vmem:[#allocation2 + $0x1d] sm:$0x7]
          %v4240 = vld [vmem:[#allocation2 + $0x21] sm:$0x7]
          %v4241 = vld [vmem:[#allocation2 + $0x25] sm:$0x7]
          %v4242 = vld [vmem:[#allocation2 + $0x29] sm:$0x7]
          %v4243 = vld [vmem:[#allocation2 + $0x2d] sm:$0x7]
          %v4244 = vld [vmem:[#allocation2 + $0x31] sm:$0x7]
          %v4245 = vld [vmem:[#allocation2 + $0x35] sm:$0x7]
          %v4246 = vld [vmem:[#allocation2 + $0x39] sm:$0x7]
          %v4247 = vld [vmem:[#allocation2 + $0x3d] sm:$0x7]
          %v4264 = vcombine.low %v4232, %v4233
          %v4265 = vcombine.low %v4234, %v4235
          %v4266 = vcombine.low %v4236, %v4237
          %v4267 = vcombine.low %v4238, %v4239
          %v4269 = vunpack.c.l.s4 1966171168
          %v4270 = vunpack.c.0.s8 %v4269
          %v4271 = vlaneseq
          %v4272 = vshrl.u32 %v4271, 7
          %v4273 = vsub.s32 %v4270, %v4272
          %v4274 = vrot.slane %v4264, %v4273
          %v4276 = vunpack.c.l.s4 1966171168
          %v4277 = vunpack.c.0.s8 %v4276
          %v4278 = vlaneseq
          %v4279 = vshrl.u32 %v4278, 7
          %v4280 = vsub.s32 %v4277, %v4279
          %v4281 = vrot.slane %v4265, %v4280
          %v4283 = vunpack.c.l.s4 1966171168
          %v4284 = vunpack.c.0.s8 %v4283
          %v4285 = vlaneseq
          %v4286 = vshrl.u32 %v4285, 7
          %v4287 = vsub.s32 %v4284, %v4286
          %v4288 = vrot.slane %v4266, %v4287
          %v4290 = vunpack.c.l.s4 1966171168
          %v4291 = vunpack.c.0.s8 %v4290
          %v4292 = vlaneseq
          %v4293 = vshrl.u32 %v4292, 7
          %v4294 = vsub.s32 %v4291, %v4293
          %v4295 = vrot.slane %v4267, %v4294
          %v4296 = vcombine.low %v4274, %v4281
          %v4297 = vcombine.high %v4274, %v4281
          %v4298 = vcombine.low %v4288, %v4295
          %v4299 = vcombine.high %v4288, %v4295
          %v4301 = vunpack.c.l.s4 1966171168
          %v4302 = vunpack.c.0.s8 %v4301
          %v4303 = vlaneseq
          %v4304 = vshrl.u32 %v4303, 7
          %v4305 = vsub.s32 %v4302, %v4304
          %v4306 = vrot.slane %v4296, %v4305
          %v4308 = vunpack.c.l.s4 1966171168
          %v4309 = vunpack.c.0.s8 %v4308
          %v4310 = vlaneseq
          %v4311 = vshrl.u32 %v4310, 7
          %v4312 = vsub.s32 %v4309, %v4311
          %v4313 = vrot.slane %v4297, %v4312
          %v4315 = vunpack.c.l.s4 1966171168
          %v4316 = vunpack.c.0.s8 %v4315
          %v4317 = vlaneseq
          %v4318 = vshrl.u32 %v4317, 7
          %v4319 = vsub.s32 %v4316, %v4318
          %v4320 = vrot.slane %v4298, %v4319
          %v4322 = vunpack.c.l.s4 1966171168
          %v4323 = vunpack.c.0.s8 %v4322
          %v4324 = vlaneseq
          %v4325 = vshrl.u32 %v4324, 7
          %v4326 = vsub.s32 %v4323, %v4325
          %v4327 = vrot.slane %v4299, %v4326
          %v4328 = vcombine.low %v4306, %v4320
          %v4329 = vcombine.high %v4306, %v4320
          %v4330 = vcombine.low %v4313, %v4327
          %v4331 = vcombine.low %v4240, %v4241
          %v4332 = vcombine.low %v4242, %v4243
          %v4333 = vcombine.low %v4244, %v4245
          %v4334 = vcombine.low %v4246, %v4247
          %v4336 = vunpack.c.l.s4 1966171168
          %v4337 = vunpack.c.0.s8 %v4336
          %v4338 = vlaneseq
          %v4339 = vshrl.u32 %v4338, 7
          %v4340 = vsub.s32 %v4337, %v4339
          %v4341 = vrot.slane %v4331, %v4340
          %v4343 = vunpack.c.l.s4 1966171168
          %v4344 = vunpack.c.0.s8 %v4343
          %v4345 = vlaneseq
          %v4346 = vshrl.u32 %v4345, 7
          %v4347 = vsub.s32 %v4344, %v4346
          %v4348 = vrot.slane %v4332, %v4347
          %v4350 = vunpack.c.l.s4 1966171168
          %v4351 = vunpack.c.0.s8 %v4350
          %v4352 = vlaneseq
          %v4353 = vshrl.u32 %v4352, 7
          %v4354 = vsub.s32 %v4351, %v4353
          %v4355 = vrot.slane %v4333, %v4354
          %v4357 = vunpack.c.l.s4 1966171168
          %v4358 = vunpack.c.0.s8 %v4357
          %v4359 = vlaneseq
          %v4360 = vshrl.u32 %v4359, 7
          %v4361 = vsub.s32 %v4358, %v4360
          %v4362 = vrot.slane %v4334, %v4361
          %v4363 = vcombine.low %v4341, %v4348
          %v4364 = vcombine.high %v4341, %v4348
          %v4365 = vcombine.low %v4355, %v4362
          %v4366 = vcombine.high %v4355, %v4362
          %v4368 = vunpack.c.l.s4 1966171168
          %v4369 = vunpack.c.0.s8 %v4368
          %v4370 = vlaneseq
          %v4371 = vshrl.u32 %v4370, 7
          %v4372 = vsub.s32 %v4369, %v4371
          %v4373 = vrot.slane %v4363, %v4372
          %v4375 = vunpack.c.l.s4 1966171168
          %v4376 = vunpack.c.0.s8 %v4375
          %v4377 = vlaneseq
          %v4378 = vshrl.u32 %v4377, 7
          %v4379 = vsub.s32 %v4376, %v4378
          %v4380 = vrot.slane %v4364, %v4379
          %v4382 = vunpack.c.l.s4 1966171168
          %v4383 = vunpack.c.0.s8 %v4382
          %v4384 = vlaneseq
          %v4385 = vshrl.u32 %v4384, 7
          %v4386 = vsub.s32 %v4383, %v4385
          %v4387 = vrot.slane %v4365, %v4386
          %v4389 = vunpack.c.l.s4 1966171168
          %v4390 = vunpack.c.0.s8 %v4389
          %v4391 = vlaneseq
          %v4392 = vshrl.u32 %v4391, 7
          %v4393 = vsub.s32 %v4390, %v4392
          %v4394 = vrot.slane %v4366, %v4393
          %v4395 = vcombine.low %v4373, %v4387
          %v4396 = vcombine.high %v4373, %v4387
          %v4397 = vcombine.low %v4380, %v4394
          %4398 = vrot.lane.b32.xlu0 %v4328, 111
          %v4399 = vpop.permute.xlu0 %4398
          %4400 = vrot.lane.b32.xlu0 %v4330, 111
          %v4401 = vpop.permute.xlu0 %4400
          %4402 = vrot.lane.b32.xlu0 %v4329, 111
          %v4403 = vpop.permute.xlu0 %4402
          %4404 = vrot.lane.b32.xlu0 %v4395, 111
          %v4405 = vpop.permute.xlu0 %4404
          %4406 = vrot.lane.b32.xlu0 %v4397, 111
          %v4407 = vpop.permute.xlu0 %4406
          %4408 = vrot.lane.b32.xlu0 %v4396, 111
          %v4409 = vpop.permute.xlu0 %4408
          %v4410 = vsel %vm2407, %v4399, %v4401
          %v4411 = vsel %vm2407, %v4401, %v4403
          %v4412 = vsel %vm2407, %v4405, %v4407
          %v4413 = vsel %vm2407, %v4407, %v4409
          %v4418 = vsel %vm1100, %v4410, 0.0
          %v4419 = vsel %vm1101, %v4411, 0.0
          %v4420 = vsel %vm1100, %v4412, 0.0
          %v4421 = vsel %vm1101, %v4413, 0.0
          %4422 = vst [vmem:[#allocation3 + $0x100] sm:$0xff] %v4418
          %4423 = vst [vmem:[#allocation3 + $0x108] sm:$0xff] %v4419
          %4424 = vst [vmem:[#allocation3 + $0x110] sm:$0xff] %v4420
          %4425 = vst [vmem:[#allocation3 + $0x118] sm:$0xff] %v4421
          %v4426 = vld [vmem:[#allocation3] sm:$0xff]
          %v4427 = vld [vmem:[#allocation3 + $0x8] sm:$0xff]
          %v4428 = vld [vmem:[#allocation3 + $0x10] sm:$0xff]
          %v4429 = vld [vmem:[#allocation3 + $0x18] sm:$0xff]
          %v4430 = vld [vmem:[#allocation3 + $0x20] sm:$0xff]
          %v4431 = vld [vmem:[#allocation3 + $0x28] sm:$0xff]
          %v4432 = vld [vmem:[#allocation3 + $0x30] sm:$0xff]
          %v4433 = vld [vmem:[#allocation3 + $0x38] sm:$0xff]
          %v4434 = vld [vmem:[#allocation3 + $0x40] sm:$0xff]
          %v4435 = vld [vmem:[#allocation3 + $0x48] sm:$0xff]
          %v4436 = vld [vmem:[#allocation3 + $0x50] sm:$0xff]
          %v4437 = vld [vmem:[#allocation3 + $0x58] sm:$0xff]
          %v4438 = vld [vmem:[#allocation3 + $0x60] sm:$0xff]
          %v4439 = vld [vmem:[#allocation3 + $0x68] sm:$0xff]
          %v4440 = vld [vmem:[#allocation3 + $0x70] sm:$0xff]
          %v4441 = vld [vmem:[#allocation3 + $0x78] sm:$0xff]
          %v4442 = vld [vmem:[#allocation3 + $0x80] sm:$0xff]
          %v4443 = vld [vmem:[#allocation3 + $0x88] sm:$0xff]
          %v4444 = vld [vmem:[#allocation3 + $0x90] sm:$0xff]
          %v4445 = vld [vmem:[#allocation3 + $0x98] sm:$0xff]
          %v4446 = vld [vmem:[#allocation3 + $0xa0] sm:$0xff]
          %v4447 = vld [vmem:[#allocation3 + $0xa8] sm:$0xff]
          %v4448 = vld [vmem:[#allocation3 + $0xb0] sm:$0xff]
          %v4449 = vld [vmem:[#allocation3 + $0xb8] sm:$0xff]
          %v4450 = vld [vmem:[#allocation3 + $0xc0] sm:$0xff]
          %v4451 = vld [vmem:[#allocation3 + $0xc8] sm:$0xff]
          %v4452 = vld [vmem:[#allocation3 + $0xd0] sm:$0xff]
          %v4453 = vld [vmem:[#allocation3 + $0xd8] sm:$0xff]
          %v4454 = vld [vmem:[#allocation3 + $0xe0] sm:$0xff]
          %v4455 = vld [vmem:[#allocation3 + $0xe8] sm:$0xff]
          %v4456 = vld [vmem:[#allocation3 + $0xf0] sm:$0xff]
          %v4457 = vld [vmem:[#allocation3 + $0xf8] sm:$0xff]
          %v4458 = vld [vmem:[#allocation3 + $0x100] sm:$0xff]
          %v4459 = vld [vmem:[#allocation3 + $0x108] sm:$0xff]
          %v4460 = vld [vmem:[#allocation3 + $0x110] sm:$0xff]
          %v4461 = vld [vmem:[#allocation3 + $0x118] sm:$0xff]
          %4463 = vset.pattern.permute.xlu0 0
          %4464 = vperm.xlu0 %4463, %v2572
          %v4465 = vpop.permute.xlu0 %4464
          %4468 = vset.pattern.permute.xlu0 0
          %4469 = vperm.xlu0 %4468, %v2573
          %v4470 = vpop.permute.xlu0 %4469
          %v4473 = vsel %vm1062, %v2568, 0
          %v4476 = vsel %vm1062, %v2570, 0
          %4478 = vmatprep.subr.mxu0 %v4427
          %4479 = vmatpush1.msra.mxu0 %v4426
          %4480 = vmatprep.subr.mxu0 %v4429
          %4481 = vmatpush1.msra.mxu0 %v4428
          %4482 = vmatprep.subr.mxu0 %v4431
          %4483 = vmatpush1.msra.mxu0 %v4430
          %4484 = vmatprep.subr.mxu0 %v4433
          %4485 = vmatpush1.msra.mxu0 %v4432
          %4486 = vmatprep.subr.mxu0 %v4435
          %4487 = vmatpush1.msra.mxu0 %v4434
          %4488 = vmatprep.subr.mxu0 %v4437
          %4489 = vmatpush1.msra.mxu0 %v4436
          %4490 = vmatprep.subr.mxu0 %v4439
          %4491 = vmatpush1.msra.mxu0 %v4438
          %4492 = vmatprep.subr.mxu0 %v4441
          %4493 = vmatpush1.msra.mxu0 %v4440
          %4494 = vmatprep.subr.mxu0 %v4443
          %4495 = vmatpush1.msra.mxu0 %v4442
          %4496 = vmatprep.subr.mxu0 %v4445
          %4497 = vmatpush1.msra.mxu0 %v4444
          %4498 = vmatprep.subr.mxu0 %v4447
          %4499 = vmatpush1.msra.mxu0 %v4446
          %4500 = vmatprep.subr.mxu0 %v4449
          %4501 = vmatpush1.msra.mxu0 %v4448
          %4502 = vmatprep.subr.mxu0 %v4451
          %4503 = vmatpush1.msra.mxu0 %v4450
          %4504 = vmatprep.subr.mxu0 %v4453
          %4505 = vmatpush1.msra.mxu0 %v4452
          %4506 = vmatprep.subr.mxu0 %v4455
          %4507 = vmatpush1.msra.mxu0 %v4454
          %4508 = vmatprep.subr.mxu0 %v4457
          %4509 = vmatpush1.msra.mxu0 %v4456
          %4510 = vmatprep.subr.mxu0 %v4459
          %4511 = vmatpush1.msra.mxu0 %v4458
          %4512 = vmatprep.subr.mxu0 %v4461
          %4513 = vmatpush1.msra.mxu0 %v4460
          %4514 = vmatprep.subr.mxu0 0.0
          %4515 = vmatpush1.msra.mxu0 0.0
          %4516 = vmatprep.subr.mxu0 0.0
          %4517 = vmatpush1.msra.mxu0 0.0
          %4518 = vmatprep.subr.mxu0 0.0
          %4519 = vmatpush1.msra.mxu0 0.0
          %4520 = vmatprep.subr.mxu0 0.0
          %4521 = vmatpush1.msra.mxu0 0.0
          %4522 = vmatprep.subr.mxu0 0.0
          %4523 = vmatpush1.msra.mxu0 0.0
          %4524 = vmatprep.subr.mxu0 0.0
          %4525 = vmatpush1.msra.mxu0 0.0
          %4526 = vmatprep.subr.mxu0 0.0
          %4527 = vmatpush1.msra.mxu0 0.0
          %4528 = vmatprep.subr.mxu0 0.0
          %4529 = vmatpush1.msra.mxu0 0.0
          %4530 = vmatprep.subr.mxu0 0.0
          %4531 = vmatpush1.msra.mxu0 0.0
          %4532 = vmatprep.subr.mxu0 0.0
          %4533 = vmatpush1.msra.mxu0 0.0
          %4534 = vmatprep.subr.mxu0 0.0
          %4535 = vmatpush1.msra.mxu0 0.0
          %4536 = vmatprep.subr.mxu0 0.0
          %4537 = vmatpush1.msra.mxu0 0.0
          %4538 = vmatprep.subr.mxu0 0.0
          %4539 = vmatpush1.msra.mxu0 0.0
          %4540 = vmatprep.subr.mxu0 0.0
          %4541 = vmatpush1.msra.mxu0 0.0
          %4542 = vmatprep.mubr.f32.mxu0 %v4473
          %4543 = vmatmul.mubr.f32.gmra.mrb[0].mxu0 %v2567
          %v4544 = vpop.f32.mrb[0].mxu0
          %v4545 = vadd.f32 %v4465, %v4544
          %v4546 = vpop.f32.mrb[0].mxu0
          %v4547 = vadd.f32 %v4465, %v4546
          %4548 = vmatprep.mubr.f32.mxu0 %v4476
          %4549 = vmatmul.mubr.f32.gmra.mrb[0].mxu0 %v2569
          %v4550 = vpop.f32.mrb[0].mxu0
          %v4551 = vadd.f32 %v4470, %v4550
          %v4552 = vpop.f32.mrb[0].mxu0
          %v4553 = vadd.f32 %v4470, %v4552
          %4554 = vdwg.mxu0
          %v4555 = vadd.f32 %v525, %v4545
          %v4556 = vadd.f32 %v526, %v4547
          %v4557 = vadd.f32 %v527, %v4551
          %v4558 = vadd.f32 %v528, %v4553
        $region69: #{tpu_custom_call.1} parent=59 // loop_footer
          %s524 = sadd.s32 1, %s520
        $region70: #{tpu_custom_call.1} parent=59 // loop_footer_branch
          %519 = sbr.rel target = $region66
        $region71: #{tpu_custom_call.1} parent=59 // loop_exit
          _
        %vm4559 = vcmp.gt.f32.partialorder %v525, 0.0
        %vm4560 = vcmp.gt.f32.partialorder %v526, 0.0
        %vm4561 = vcmp.gt.f32.partialorder %v527, 0.0
        %vm4562 = vcmp.gt.f32.partialorder %v528, 0.0
        %v4563 = vmul.f32 %v525, 0.01
        %v4564 = vmul.f32 %v526, 0.01
        %v4565 = vmul.f32 %v527, 0.01
        %v4566 = vmul.f32 %v528, 0.01
        %v4567 = vsel %vm4559, %v525, %v4563
        %v4568 = vsel %vm4560, %v526, %v4564
        %v4569 = vsel %vm4561, %v527, %v4565
        %v4570 = vsel %vm4562, %v528, %v4566
        %v4571 = vld [vmem:[%s8] sm:$0xff]
        %v4572 = vld [vmem:[%s8 + $0x8] sm:$0x1]
        %v4573 = vld [vmem:[%s9] sm:$0xff]
        %v4574 = vld [vmem:[%s9 + $0x8] sm:$0x1]
        %4576 = vset.pattern.permute.xlu0 0
        %4577 = vperm.xlu0 %4576, %v4573
        %v4578 = vpop.permute.xlu0 %4577
        %4581 = vset.pattern.permute.xlu0 0
        %4582 = vperm.xlu0 %4581, %v4574
        %v4583 = vpop.permute.xlu0 %4582
        %vm4585 = vcmask 130048
        %v4587 = vsel %vm4585, %v4571, 0
        %v4590 = vsel %vm4585, %v4572, 0
        %4592 = vmatprep.subr.mxu0 %v4568
        %4593 = vmatpush1.msra.mxu0 %v4567
        %4594 = vmatprep.subr.mxu0 %v4570
        %4595 = vmatpush1.msra.mxu0 %v4569
        %4596 = vmatprep.subr.mxu0 0.0
        %4597 = vmatpush1.msra.mxu0 0.0
        %4598 = vmatprep.subr.mxu0 0.0
        %4599 = vmatpush1.msra.mxu0 0.0
        %4600 = vmatprep.subr.mxu0 0.0
        %4601 = vmatpush1.msra.mxu0 0.0
        %4602 = vmatprep.subr.mxu0 0.0
        %4603 = vmatpush1.msra.mxu0 0.0
        %4604 = vmatprep.subr.mxu0 0.0
        %4605 = vmatpush1.msra.mxu0 0.0
        %4606 = vmatprep.subr.mxu0 0.0
        %4607 = vmatpush1.msra.mxu0 0.0
        %4608 = vmatprep.subr.mxu0 0.0
        %4609 = vmatpush1.msra.mxu0 0.0
        %4610 = vmatprep.subr.mxu0 0.0
        %4611 = vmatpush1.msra.mxu0 0.0
        %4612 = vmatprep.subr.mxu0 0.0
        %4613 = vmatpush1.msra.mxu0 0.0
        %4614 = vmatprep.subr.mxu0 0.0
        %4615 = vmatpush1.msra.mxu0 0.0
        %4616 = vmatprep.subr.mxu0 0.0
        %4617 = vmatpush1.msra.mxu0 0.0
        %4618 = vmatprep.subr.mxu0 0.0
        %4619 = vmatpush1.msra.mxu0 0.0
        %4620 = vmatprep.subr.mxu0 0.0
        %4621 = vmatpush1.msra.mxu0 0.0
        %4622 = vmatprep.subr.mxu0 0.0
        %4623 = vmatpush1.msra.mxu0 0.0
        %4624 = vmatprep.subr.mxu0 0.0
        %4625 = vmatpush1.msra.mxu0 0.0
        %4626 = vmatprep.subr.mxu0 0.0
        %4627 = vmatpush1.msra.mxu0 0.0
        %4628 = vmatprep.subr.mxu0 0.0
        %4629 = vmatpush1.msra.mxu0 0.0
        %4630 = vmatprep.subr.mxu0 0.0
        %4631 = vmatpush1.msra.mxu0 0.0
        %4632 = vmatprep.subr.mxu0 0.0
        %4633 = vmatpush1.msra.mxu0 0.0
        %4634 = vmatprep.subr.mxu0 0.0
        %4635 = vmatpush1.msra.mxu0 0.0
        %4636 = vmatprep.subr.mxu0 0.0
        %4637 = vmatpush1.msra.mxu0 0.0
        %4638 = vmatprep.subr.mxu0 0.0
        %4639 = vmatpush1.msra.mxu0 0.0
        %4640 = vmatprep.subr.mxu0 0.0
        %4641 = vmatpush1.msra.mxu0 0.0
        %4642 = vmatprep.subr.mxu0 0.0
        %4643 = vmatpush1.msra.mxu0 0.0
        %4644 = vmatprep.subr.mxu0 0.0
        %4645 = vmatpush1.msra.mxu0 0.0
        %4646 = vmatprep.subr.mxu0 0.0
        %4647 = vmatpush1.msra.mxu0 0.0
        %4648 = vmatprep.subr.mxu0 0.0
        %4649 = vmatpush1.msra.mxu0 0.0
        %4650 = vmatprep.subr.mxu0 0.0
        %4651 = vmatpush1.msra.mxu0 0.0
        %4652 = vmatprep.subr.mxu0 0.0
        %4653 = vmatpush1.msra.mxu0 0.0
        %4654 = vmatprep.subr.mxu0 0.0
        %4655 = vmatpush1.msra.mxu0 0.0
        %4656 = vmatprep.mubr.f32.mxu0 0.0
        %4657 = vmatmul.mubr.f32.gmra.mrb[0].mxu0 %v4587
        %v4658 = vpop.f32.mrb[0].mxu0
        %v4659 = vadd.f32 %v4578, %v4658
        %v4660 = vpop.f32.mrb[0].mxu0
        %v4661 = vadd.f32 %v4578, %v4660
        %4662 = vmatprep.mubr.f32.mxu0 0.0
        %4663 = vmatmul.mubr.f32.gmra.mrb[0].mxu0 %v4590
        %v4664 = vpop.f32.mrb[0].mxu0
        %v4665 = vadd.f32 %v4583, %v4664
        %v4666 = vpop.f32.mrb[0].mxu0
        %v4667 = vadd.f32 %v4583, %v4666
        %4668 = vdwg.mxu0
        %4669 = vst [vmem:[%s368] sm:$0xff] %v4659
        %4670 = vst [vmem:[%s368 + $0x8] sm:$0xff] %v4661
        %4671 = vst [vmem:[%s368 + $0x10] sm:$0x1] %v4665
        %4672 = vst [vmem:[%s368 + $0x18] sm:$0x1] %v4667
        %s4673 = sand.u32 %s248, 1
        %s4674 = scalar_lea.sflag [#allocation6], %s4673
        %s4675 = sand.u32 %s248, 1
        %s4676 = smul.addr %s4675, 32
        %s4677 = scalar_lea.vmem [#allocation7], %s4676
        // Predicated region
        $region72: #{tpu_custom_call.1} parent=59 // pred_check
          %p4678 = pneg %p258
        $region73: #{tpu_custom_call.1} parent=59 // pred_check_branch
          %4680 = sbr.rel (%p4678) target = $region75
        $region74: #{tpu_custom_call.1} parent=59 // pred_region
          %s4681 = smul.u32 2, %s25
          %s4683 = ssub.s32 512, 512
          %4684 = vsyncadd %s4674, %s4683
          %s4685 = smul.addr %s4681, 128
          %s4686 = scalar_lea.hbm %s10, %s4685
          %s4687 = sshll.u32 %s4677, 4
          %s4688 = int_to_ptr.vmem [resolvable:$true] %s4687
          %4693 = dma.vmem_to_hbm [thread:$0]  %s4688, 512, %s4686, %s4674, 256, 512, 16
        $region75: #{tpu_custom_call.1} parent=59 // pred_fallthru
          _
      $region60: #{tpu_custom_call.1} parent=5 // pred_fallthru
        _
      %p4694 = scmp.le.s32.totalorder 2, %s20
      // Predicated region
      $region76: #{tpu_custom_call.1} parent=5 // pred_check
        %p4695 = pneg %p4694
      $region77: #{tpu_custom_call.1} parent=5 // pred_check_branch
        %4697 = sbr.rel (%p4695) target = $region79
      $region78: #{tpu_custom_call.1} parent=5 // pred_region
        %s4698 = ssub.s32 %s20, 2
        // Predicated region
        $region80: #{tpu_custom_call.1} parent=78 // pred_check
          %p4699 = pneg %p264
        $region81: #{tpu_custom_call.1} parent=78 // pred_check_branch
          %4701 = sbr.rel (%p4699) target = $region83
        $region82: #{tpu_custom_call.1} parent=78 // pred_region
          %s4702 = sand.u32 %s249, 1
          %s4703 = scalar_lea.sflag [#allocation6], %s4702
          %s4704 = sand.u32 %s249, 1
          %s4705 = smul.addr %s4704, 32
          %s4706 = scalar_lea.vmem [#allocation7], %s4705
          %4707 = dma.done %s4703, 512
        $region83: #{tpu_custom_call.1} parent=78 // pred_fallthru
          _
      $region79: #{tpu_custom_call.1} parent=5 // pred_fallthru
        _
    $region6: #{tpu_custom_call.1} parent=1 // loop_footer
      %s24 = sadd.s32 1, %s20
    $region7: #{tpu_custom_call.1} parent=1 // loop_footer_branch
      %19 = sbr.rel target = $region3
    $region8: #{tpu_custom_call.1} parent=1 // loop_exit
      _
    %4708 = vsyncpa [#allocation5], 1
    %s4709 = scalar_lea.sflag [#allocation5], 1
    %4710 = vsyncpa %s4709, 1
    %4711 = vsyncpa [#allocation6], 1
    %s4712 = scalar_lea.sflag [#allocation6], 1
    %4713 = vsyncpa %s4712, 1

</llo_original>
